<compile_context>
chip_gen: v6e
topology: v6e:2x2x1
jax: 0.10.0
libtpu: 0.0.40
codegen_flags: <defaults>
</compile_context>

<pallas_src>
import numpy as np
import jax
import jax.numpy as jnp
from jax.experimental import pallas as pl
from jax.experimental.pallas import tpu as pltpu

# ----------------------------------------------------------------------------- SMPL skeleton
NJ = 24
ROOT_ID = 0
JOINT_TREES = np.array(
    [0, 0, 0, 0, 1, 2, 3, 4, 5, 6, 7, 8, 9, 9, 9, 12, 13, 14, 16, 17, 18, 19, 20, 21],
    dtype=np.int32,
)
PARENT_IDS = JOINT_TREES[1:]  # parents of joints 1..23 (root_id == 0)


# ----------------------------------------------------------------------------- kernel
def pose_kinematic_kernel(bones_ref, pelvis_ref, consts_ref, rots_ref, l2w_ref, skt_ref):
    B = bones_ref.shape[-1]                 # poses per block (lane dim, multiple of 128)

    bx = bones_ref[0 * NJ:1 * NJ, :]        # (24, B) axis-angle components
    by = bones_ref[1 * NJ:2 * NJ, :]
    bz = bones_ref[2 * NJ:3 * NJ, :]
    px = pelvis_ref[0:1, :]                 # (1, B) pelvis translation
    py = pelvis_ref[1:2, :]
    pz = pelvis_ref[2:3, :]
    consts = consts_ref[...]                # (24, 3): row0 = rest_pose[root],
                                            #          rows 1..23 = child - parent rest offsets

    # ---- axis-angle -> rotation matrices (Rodrigues), all 24 joints x B poses at once ----
    angle = jnp.sqrt(bx * bx + by * by + bz * bz)
    inv_ang = pl.reciprocal(angle + 1e-8, approx=True)        # EUP slot, off the VALU path
    x = bx * inv_ang; y = by * inv_ang; z = bz * inv_ang
    c = jnp.cos(angle); s = jnp.sin(angle); C = 1.0 - c
    r00 = c + x * x * C;      r01 = x * y * C - z * s;  r02 = x * z * C + y * s
    r10 = y * x * C + z * s;  r11 = c + y * y * C;      r12 = y * z * C - x * s
    r20 = z * x * C - y * s;  r21 = z * y * C + x * s;  r22 = c + z * z * C
    R = [r00, r01, r02, r10, r11, r12, r20, r21, r22]          # each (24, B)

    rots_ref[...] = jnp.concatenate(R, axis=0)                 # (216, B): one full store

    # ---- unrolled SMPL kinematic chain; matrices kept as 12 scalar planes per level ----
    def level(pR, pT, a, b):
        # child = parent @ [[Rj, d], [0, 1]] for joints a..b-1 (row-aligned with parents)
        Rj = [r[a:b, :] for r in R]                                     # (L, B)
        dx = consts[a:b, 0:1]; dy = consts[a:b, 1:2]; dz = consts[a:b, 2:3]   # (L, 1)
        cR = []
        for i in range(3):
            cR += [pR[3 * i] * Rj[k] + pR[3 * i + 1] * Rj[3 + k] + pR[3 * i + 2] * Rj[6 + k]
                   for k in range(3)]
        cT = [pR[3 * i] * dx + pR[3 * i + 1] * dy + pR[3 * i + 2] * dz + pT[i]
              for i in range(3)]
        return cR, cT

    rootR = [r[0:1, :] for r in R]                      # (1, B) each
    rootT = [consts[0:1, k:k + 1] for k in range(3)]    # (1, 1) rest-pose root location

    c1R, c1T = level(rootR, rootT, 1, 4)                # joints 1..3   (parents 0,0,0)
    c2R, c2T = level(c1R, c1T, 4, 7)                    # joints 4..6   (parents 1,2,3)
    c3R, c3T = level(c2R, c2T, 7, 10)                   # joints 7..9   (parents 4,5,6)
    dup = lambda m: jnp.concatenate([m, m[2:3], m[2:3]], axis=0)   # parents 7,8,9,9,9
    c4R, c4T = level([dup(m) for m in c3R], [dup(m) for m in c3T], 10, 15)   # joints 10..14
    c5R, c5T = level([m[2:5] for m in c4R], [m[2:5] for m in c4T], 15, 18)   # joints 15..17
    c6R, c6T = level([m[1:3] for m in c5R], [m[1:3] for m in c5T], 18, 20)   # joints 18..19
    c7R, c7T = level(c6R, c6T, 20, 22)                                       # joints 20..21
    c8R, c8T = level(c7R, c7T, 22, 24)                                       # joints 22..23

    levelsR = [rootR, c1R, c2R, c3R, c4R, c5R, c6R, c7R, c8R]
    rootT_b = [jnp.broadcast_to(t, (1, B)) for t in rootT]
    levelsT = [rootT_b, c1T, c2T, c3T, c4T, c5T, c6T, c7T, c8T]

    # single assembly of the full (24, B) planes (joint order 0..23 is preserved by levels)
    a00, a01, a02, a10, a11, a12, a20, a21, a22 = (
        jnp.concatenate([lv[e] for lv in levelsR], axis=0) for e in range(9))
    ft0, ft1, ft2 = (jnp.concatenate([lv[e] for lv in levelsT], axis=0) for e in range(3))
    t0 = ft0 + px; t1 = ft1 + py; t2 = ft2 + pz        # pelvis added to every joint's column

    l2w_ref[...] = jnp.concatenate(                     # (288, B): one full store
        [a00, a01, a02, t0, a10, a11, a12, t1, a20, a21, a22, t2], axis=0)

    # ---- homogeneous inverse (torch.inverse equivalent), single pass over all 24 joints ----
    c00 = a11 * a22 - a12 * a21; c01 = a02 * a21 - a01 * a22; c02 = a01 * a12 - a02 * a11
    c10 = a12 * a20 - a10 * a22; c11 = a00 * a22 - a02 * a20; c12 = a02 * a10 - a00 * a12
    c20 = a10 * a21 - a11 * a20; c21 = a01 * a20 - a00 * a21; c22 = a00 * a11 - a01 * a10
    inv_det = 1.0 / (a00 * c00 + a01 * c10 + a02 * c20)   # exact divide (skts accuracy)
    i00 = c00 * inv_det; i01 = c01 * inv_det; i02 = c02 * inv_det
    i10 = c10 * inv_det; i11 = c11 * inv_det; i12 = c12 * inv_det
    i20 = c20 * inv_det; i21 = c21 * inv_det; i22 = c22 * inv_det
    it0 = -(i00 * t0 + i01 * t1 + i02 * t2)
    it1 = -(i10 * t0 + i11 * t1 + i12 * t2)
    it2 = -(i20 * t0 + i21 * t1 + i22 * t2)

    skt_ref[...] = jnp.concatenate(                     # (288, B): one full store
        [i00, i01, i02, it0, i10, i11, i12, it1, i20, i21, i22, it2], axis=0)


# ----------------------------------------------------------------------------- wrapper
def _run_kernel(bones_u, pelvis_u, consts, *, block=None):
    """bones_u: (Nu, 24, 3); pelvis_u: (Nu, 3); consts: (24, 3)."""
    nu = bones_u.shape[0]
    if block is None:
        block = 128
        while block < 512 and block < nu:
            block *= 2
    npad = max(block, ((nu + block - 1) // block) * block)

    # lane-dense layout: pose axis -> lanes
    bones_t = jnp.transpose(bones_u, (2, 1, 0)).reshape(3 * NJ, nu)   # row = c*24 + j
    pel_t = jnp.transpose(pelvis_u, (1, 0))                           # (3, Nu)
    if npad != nu:
        bones_t = jnp.pad(bones_t, ((0, 0), (0, npad - nu)))
        pel_t = jnp.pad(pel_t, ((0, 0), (0, npad - nu)))

    rots_f, l2w_f, skt_f = pl.pallas_call(
        pose_kinematic_kernel,
        out_shape=(
            jax.ShapeDtypeStruct((9 * NJ, npad), jnp.float32),    # rots planes
            jax.ShapeDtypeStruct((12 * NJ, npad), jnp.float32),   # l2ws (3x4) planes
            jax.ShapeDtypeStruct((12 * NJ, npad), jnp.float32),   # skts (3x4) planes
        ),
        grid=(npad // block,),
        in_specs=[
            pl.BlockSpec((3 * NJ, block), lambda i: (0, i)),      # bones
            pl.BlockSpec((3, block), lambda i: (0, i)),           # pelvis
            pl.BlockSpec((NJ, 3), lambda i: (0, 0)),              # shared constants, resident
        ],
        out_specs=(
            pl.BlockSpec((9 * NJ, block), lambda i: (0, i)),
            pl.BlockSpec((12 * NJ, block), lambda i: (0, i)),
            pl.BlockSpec((12 * NJ, block), lambda i: (0, i)),
        ),
        compiler_params=pltpu.CompilerParams(
            dimension_semantics=("parallel",)),   # independent pose blocks (v7x: 2 TCs)
    )(bones_t, pel_t, consts)

    # back to (Nu, 24, ...) layouts in plain XLA
    rots = rots_f.reshape(9, NJ, npad).transpose(2, 1, 0)[:nu].reshape(nu, NJ, 3, 3)
    l2w34 = l2w_f.reshape(12, NJ, npad).transpose(2, 1, 0)[:nu].reshape(nu, NJ, 3, 4)
    skt34 = skt_f.reshape(12, NJ, npad).transpose(2, 1, 0)[:nu].reshape(nu, NJ, 3, 4)
    bottom = jnp.broadcast_to(jnp.array([0.0, 0.0, 0.0, 1.0], jnp.float32), (nu, NJ, 1, 4))
    l2ws = jnp.concatenate([l2w34, bottom], axis=-2)
    skts = jnp.concatenate([skt34, bottom], axis=-2)
    return rots, l2ws, skts


class PoseOptLayerPallas:
    """JAX/Pallas port of PoseOptLayer.forward (SMPLSkeleton, use_rot6d=False,
    kp_map=None, use_cache=False, single shared rest pose).
    # TODO(synk): use_rot6d / kp_map multi-view / beta / rest_pose_idxs / cache paths
    # of the original module are not ported (not exercised by the default config).
    """

    def __init__(self, kps, bones, rest_pose):
        # kps: (N, 24, 3), bones: (N, 24, 3), rest_pose: (1, 24, 3)
        self.rest_pose = jnp.asarray(rest_pose, jnp.float32)
        self.pelvis = jnp.asarray(kps, jnp.float32)[:, ROOT_ID]   # (N, 3) parameter
        self.bones = jnp.asarray(bones, jnp.float32)              # (N, 24, 3) parameter
        self.N_kps = self.pelvis.shape[0]
        rest = self.rest_pose[0]
        reloff = rest[1:] - rest[PARENT_IDS]                      # (23, 3) child - parent
        self.consts = jnp.concatenate([rest[0:1], reloff], axis=0)  # (24, 3)

    def forward(self, idxs):
        if idxs is None:
            idxs = np.arange(self.N_kps)
        idxs = np.asarray(idxs).reshape(-1)
        unique_idxs, inverse_idxs = np.unique(idxs, return_inverse=True)

        bones_u = self.bones[unique_idxs]       # (Nu, 24, 3)
        pelvis_u = self.pelvis[unique_idxs]     # (Nu, 3)

        rots, l2ws, skts = _run_kernel(bones_u, pelvis_u, self.consts)

        rots = rots[inverse_idxs]
        l2ws = l2ws[inverse_idxs]
        skts = skts[inverse_idxs]
        bone = bones_u[inverse_idxs]
        kp = l2ws[..., :3, 3]                   # kp comes straight from l2ws
        return kp, bone, skts, l2ws, rots

    __call__ = forward


# ----------------------------------------------------------------------------- pure-JAX reference
def _reference_forward(bones, pelvis, rest):
    """Plain-JAX reference matching the torch module (sequential kinematic chain)."""
    N = bones.shape[0]
    angle = jnp.sqrt(jnp.sum(bones * bones, axis=-1, keepdims=True))   # (N,24,1)
    axis = bones / (angle + 1e-8)
    ax, ay, az = axis[..., 0], axis[..., 1], axis[..., 2]
    ang = angle[..., 0]
    c = jnp.cos(ang); s = jnp.sin(ang); C = 1.0 - c
    R = jnp.stack([
        jnp.stack([c + ax * ax * C, ax * ay * C - az * s, ax * az * C + ay * s], -1),
        jnp.stack([ay * ax * C + az * s, c + ay * ay * C, ay * az * C - ax * s], -1),
        jnp.stack([az * ax * C - ay * s, az * ay * C + ax * s, c + az * az * C], -1)], -2)

    def hom(Rm, t):
        top = jnp.concatenate([Rm, t[..., None]], axis=-1)
        bot = jnp.broadcast_to(jnp.array([0.0, 0.0, 0.0, 1.0], jnp.float32),
                               top.shape[:-2] + (1, 4))
        return jnp.concatenate([top, bot], axis=-2)

    l2ws = [hom(R[:, 0], jnp.broadcast_to(rest[0], (N, 3)))]
    for j in range(1, NJ):
        p = int(JOINT_TREES[j])
        rel = hom(R[:, j], jnp.broadcast_to(rest[j] - rest[p], (N, 3)))
        l2ws.append(l2ws[p] @ rel)
    l2ws = jnp.stack(l2ws, axis=1)
    pel = jnp.zeros((N, 4, 4), jnp.float32).at[:, :3, 3].set(pelvis)
    l2ws = l2ws + pel[:, None]
    skts = jnp.linalg.inv(l2ws)
    kp = l2ws[..., :3, 3]
    return kp, skts, l2ws, R


# ----------------------------------------------------------------------------- main
if __name__ == "__main__":
    key = jax.random.PRNGKey(0)
    k1, k2, k3 = jax.random.split(key, 3)

    N = 4  # number of stored poses
    kps = jax.random.normal(k1, (N, NJ, 3), jnp.float32) * 0.5
    bones = jax.random.normal(k2, (N, NJ, 3), jnp.float32) * 0.3   # axis-angle per joint
    rest_pose = jax.random.normal(k3, (1, NJ, 3), jnp.float32) * 0.2

    layer = PoseOptLayerPallas(kps, bones, rest_pose)

    idxs = np.array([0, 2, 1, 2, 3, 0])  # exercises unique / inverse indexing
    kp, bone, skts, l2ws, rots = layer(idxs)
    kp, bone, skts, l2ws, rots = jax.block_until_ready((kp, bone, skts, l2ws, rots))

    M = len(idxs)
    assert kp.shape == (M, NJ, 3)
    assert bone.shape == (M, NJ, 3)
    assert skts.shape == (M, NJ, 4, 4)
    assert l2ws.shape == (M, NJ, 4, 4)
    assert rots.shape == (M, NJ, 3, 3)

    # skts must invert l2ws (independent of the approx axis-normalization)
    eye = jnp.eye(4, dtype=jnp.float32)[None, None]
    inv_err = float(jnp.max(jnp.abs(jnp.matmul(l2ws, skts) - eye)))
    assert inv_err < 2e-3, f"skts is not the inverse of l2ws (err={inv_err})"

    # compare against a plain-JAX reference of the torch forward
    kp_r, skts_r, l2ws_r, rots_r = _reference_forward(
        jnp.asarray(bones)[idxs], jnp.asarray(kps)[idxs, ROOT_ID],
        jnp.asarray(rest_pose)[0])
    for name, a, b in (("l2ws", l2ws, l2ws_r), ("skts", skts, skts_r),
                       ("rots", rots, rots_r), ("kp", kp, kp_r)):
        err = float(jnp.max(jnp.abs(a - b)))
        assert err < 5e-2, f"{name} mismatch vs reference (err={err})"
    assert float(jnp.max(jnp.abs(bone - jnp.asarray(bones)[idxs]))) == 0.0

    print("KERNEL_OK")
</pallas_src>

<mosaic_0001>
module attributes {stable_mosaic.version = 11 : i64} {
  func.func @pose_kinematic_kernel(%arg0: i32, %arg1: memref<72x128xf32, #tpu.memory_space<vmem>>, %arg2: memref<3x128xf32, #tpu.memory_space<vmem>>, %arg3: memref<24x3xf32, #tpu.memory_space<vmem>>, %arg4: memref<216x128xf32, #tpu.memory_space<vmem>>, %arg5: memref<288x128xf32, #tpu.memory_space<vmem>>, %arg6: memref<288x128xf32, #tpu.memory_space<vmem>>) attributes {dimension_semantics = [#tpu.dimension_semantics<parallel>], iteration_bounds = array<i64: 1>, scalar_prefetch = 0 : i64, scratch_operands = 0 : i64, tpu.core_type = #tpu.core_type<tc>, window_params = [{transform_indices = @transform_0, window_bounds = array<i64: 72, 128>}, {transform_indices = @transform_1, window_bounds = array<i64: 3, 128>}, {pipeline_mode = #tpu.pipeline_mode<synchronous>, transform_indices = @transform_2, window_bounds = array<i64: 24, 3>}, {transform_indices = @transform_3, window_bounds = array<i64: 216, 128>}, {transform_indices = @transform_4, window_bounds = array<i64: 288, 128>}, {transform_indices = @transform_5, window_bounds = array<i64: 288, 128>}]} {
    %c0 = arith.constant 0 : index
    %c0_0 = arith.constant 0 : index
    %0 = vector.load %arg1[%c0, %c0_0] : memref<72x128xf32, #tpu.memory_space<vmem>>, vector<24x128xf32>
    %c24 = arith.constant 24 : index
    %c0_1 = arith.constant 0 : index
    %1 = vector.load %arg1[%c24, %c0_1] : memref<72x128xf32, #tpu.memory_space<vmem>>, vector<24x128xf32>
    %c48 = arith.constant 48 : index
    %c0_2 = arith.constant 0 : index
    %2 = vector.load %arg1[%c48, %c0_2] : memref<72x128xf32, #tpu.memory_space<vmem>>, vector<24x128xf32>
    %c0_3 = arith.constant 0 : index
    %c0_4 = arith.constant 0 : index
    %3 = vector.load %arg2[%c0_3, %c0_4] : memref<3x128xf32, #tpu.memory_space<vmem>>, vector<1x128xf32>
    %c1 = arith.constant 1 : index
    %c0_5 = arith.constant 0 : index
    %4 = vector.load %arg2[%c1, %c0_5] : memref<3x128xf32, #tpu.memory_space<vmem>>, vector<1x128xf32>
    %c2 = arith.constant 2 : index
    %c0_6 = arith.constant 0 : index
    %5 = vector.load %arg2[%c2, %c0_6] : memref<3x128xf32, #tpu.memory_space<vmem>>, vector<1x128xf32>
    %c0_7 = arith.constant 0 : index
    %c0_8 = arith.constant 0 : index
    %6 = vector.load %arg3[%c0_7, %c0_8] : memref<24x3xf32, #tpu.memory_space<vmem>>, vector<24x3xf32>
    %7 = arith.mulf %0, %0 : vector<24x128xf32>
    %8 = arith.mulf %1, %1 : vector<24x128xf32>
    %9 = arith.addf %7, %8 : vector<24x128xf32>
    %10 = arith.mulf %2, %2 : vector<24x128xf32>
    %11 = arith.addf %9, %10 : vector<24x128xf32>
    %12 = math.sqrt %11 : vector<24x128xf32>
    %cst = arith.constant 9.99999993E-9 : f32
    %13 = vector.broadcast %cst : f32 to vector<24x128xf32>
    %14 = arith.addf %12, %13 : vector<24x128xf32>
    %15 = tpu.reciprocal %14 {approx = true} : vector<24x128xf32> -> vector<24x128xf32>
    %16 = arith.mulf %0, %15 : vector<24x128xf32>
    %17 = arith.mulf %1, %15 : vector<24x128xf32>
    %18 = arith.mulf %2, %15 : vector<24x128xf32>
    %19 = math.cos %12 : vector<24x128xf32>
    %20 = math.sin %12 : vector<24x128xf32>
    %cst_9 = arith.constant 1.000000e+00 : f32
    %21 = vector.broadcast %cst_9 : f32 to vector<24x128xf32>
    %22 = arith.subf %21, %19 : vector<24x128xf32>
    %23 = arith.mulf %16, %16 : vector<24x128xf32>
    %24 = arith.mulf %23, %22 : vector<24x128xf32>
    %25 = arith.addf %19, %24 : vector<24x128xf32>
    %26 = arith.mulf %16, %17 : vector<24x128xf32>
    %27 = arith.mulf %26, %22 : vector<24x128xf32>
    %28 = arith.mulf %18, %20 : vector<24x128xf32>
    %29 = arith.subf %27, %28 : vector<24x128xf32>
    %30 = arith.mulf %16, %18 : vector<24x128xf32>
    %31 = arith.mulf %30, %22 : vector<24x128xf32>
    %32 = arith.mulf %17, %20 : vector<24x128xf32>
    %33 = arith.addf %31, %32 : vector<24x128xf32>
    %34 = arith.mulf %17, %16 : vector<24x128xf32>
    %35 = arith.mulf %34, %22 : vector<24x128xf32>
    %36 = arith.mulf %18, %20 : vector<24x128xf32>
    %37 = arith.addf %35, %36 : vector<24x128xf32>
    %38 = arith.mulf %17, %17 : vector<24x128xf32>
    %39 = arith.mulf %38, %22 : vector<24x128xf32>
    %40 = arith.addf %19, %39 : vector<24x128xf32>
    %41 = arith.mulf %17, %18 : vector<24x128xf32>
    %42 = arith.mulf %41, %22 : vector<24x128xf32>
    %43 = arith.mulf %16, %20 : vector<24x128xf32>
    %44 = arith.subf %42, %43 : vector<24x128xf32>
    %45 = arith.mulf %18, %16 : vector<24x128xf32>
    %46 = arith.mulf %45, %22 : vector<24x128xf32>
    %47 = arith.mulf %17, %20 : vector<24x128xf32>
    %48 = arith.subf %46, %47 : vector<24x128xf32>
    %49 = arith.mulf %18, %17 : vector<24x128xf32>
    %50 = arith.mulf %49, %22 : vector<24x128xf32>
    %51 = arith.mulf %16, %20 : vector<24x128xf32>
    %52 = arith.addf %50, %51 : vector<24x128xf32>
    %53 = arith.mulf %18, %18 : vector<24x128xf32>
    %54 = arith.mulf %53, %22 : vector<24x128xf32>
    %55 = arith.addf %19, %54 : vector<24x128xf32>
    %56 = tpu.concatenate %25, %29, %33, %37, %40, %44, %48, %52, %55 in 0 : vector<24x128xf32>, vector<24x128xf32>, vector<24x128xf32>, vector<24x128xf32>, vector<24x128xf32>, vector<24x128xf32>, vector<24x128xf32>, vector<24x128xf32>, vector<24x128xf32> -> vector<216x128xf32>
    %c0_10 = arith.constant 0 : index
    %c0_11 = arith.constant 0 : index
    %57 = vector.load %arg4[%c0_10, %c0_11] : memref<216x128xf32, #tpu.memory_space<vmem>>, vector<216x128xf32>
    tpu.vector_store %arg4[%c0_10, %c0_11], %56 {strides = array<i32>} : memref<216x128xf32, #tpu.memory_space<vmem>>, vector<216x128xf32>,
    %58 = vector.extract_strided_slice %25 {offsets = [0, 0], sizes = [1, 128], strides = [1, 1]} : vector<24x128xf32> to vector<1x128xf32>
    %59 = vector.extract_strided_slice %29 {offsets = [0, 0], sizes = [1, 128], strides = [1, 1]} : vector<24x128xf32> to vector<1x128xf32>
    %60 = vector.extract_strided_slice %33 {offsets = [0, 0], sizes = [1, 128], strides = [1, 1]} : vector<24x128xf32> to vector<1x128xf32>
    %61 = vector.extract_strided_slice %37 {offsets = [0, 0], sizes = [1, 128], strides = [1, 1]} : vector<24x128xf32> to vector<1x128xf32>
    %62 = vector.extract_strided_slice %40 {offsets = [0, 0], sizes = [1, 128], strides = [1, 1]} : vector<24x128xf32> to vector<1x128xf32>
    %63 = vector.extract_strided_slice %44 {offsets = [0, 0], sizes = [1, 128], strides = [1, 1]} : vector<24x128xf32> to vector<1x128xf32>
    %64 = vector.extract_strided_slice %48 {offsets = [0, 0], sizes = [1, 128], strides = [1, 1]} : vector<24x128xf32> to vector<1x128xf32>
    %65 = vector.extract_strided_slice %52 {offsets = [0, 0], sizes = [1, 128], strides = [1, 1]} : vector<24x128xf32> to vector<1x128xf32>
    %66 = vector.extract_strided_slice %55 {offsets = [0, 0], sizes = [1, 128], strides = [1, 1]} : vector<24x128xf32> to vector<1x128xf32>
    %67 = vector.extract_strided_slice %6 {offsets = [0, 0], sizes = [1, 1], strides = [1, 1]} : vector<24x3xf32> to vector<1x1xf32>
    %68 = vector.extract_strided_slice %6 {offsets = [0, 1], sizes = [1, 1], strides = [1, 1]} : vector<24x3xf32> to vector<1x1xf32>
    %69 = vector.extract_strided_slice %6 {offsets = [0, 2], sizes = [1, 1], strides = [1, 1]} : vector<24x3xf32> to vector<1x1xf32>
    %70 = vector.extract_strided_slice %25 {offsets = [1, 0], sizes = [3, 128], strides = [1, 1]} : vector<24x128xf32> to vector<3x128xf32>
    %71 = vector.extract_strided_slice %29 {offsets = [1, 0], sizes = [3, 128], strides = [1, 1]} : vector<24x128xf32> to vector<3x128xf32>
    %72 = vector.extract_strided_slice %33 {offsets = [1, 0], sizes = [3, 128], strides = [1, 1]} : vector<24x128xf32> to vector<3x128xf32>
    %73 = vector.extract_strided_slice %37 {offsets = [1, 0], sizes = [3, 128], strides = [1, 1]} : vector<24x128xf32> to vector<3x128xf32>
    %74 = vector.extract_strided_slice %40 {offsets = [1, 0], sizes = [3, 128], strides = [1, 1]} : vector<24x128xf32> to vector<3x128xf32>
    %75 = vector.extract_strided_slice %44 {offsets = [1, 0], sizes = [3, 128], strides = [1, 1]} : vector<24x128xf32> to vector<3x128xf32>
    %76 = vector.extract_strided_slice %48 {offsets = [1, 0], sizes = [3, 128], strides = [1, 1]} : vector<24x128xf32> to vector<3x128xf32>
    %77 = vector.extract_strided_slice %52 {offsets = [1, 0], sizes = [3, 128], strides = [1, 1]} : vector<24x128xf32> to vector<3x128xf32>
    %78 = vector.extract_strided_slice %55 {offsets = [1, 0], sizes = [3, 128], strides = [1, 1]} : vector<24x128xf32> to vector<3x128xf32>
    %79 = vector.extract_strided_slice %6 {offsets = [1, 0], sizes = [3, 1], strides = [1, 1]} : vector<24x3xf32> to vector<3x1xf32>
    %80 = vector.extract_strided_slice %6 {offsets = [1, 1], sizes = [3, 1], strides = [1, 1]} : vector<24x3xf32> to vector<3x1xf32>
    %81 = vector.extract_strided_slice %6 {offsets = [1, 2], sizes = [3, 1], strides = [1, 1]} : vector<24x3xf32> to vector<3x1xf32>
    %82 = vector.broadcast %58 : vector<1x128xf32> to vector<3x128xf32>
    %83 = arith.mulf %82, %70 : vector<3x128xf32>
    %84 = vector.broadcast %59 : vector<1x128xf32> to vector<3x128xf32>
    %85 = arith.mulf %84, %73 : vector<3x128xf32>
    %86 = arith.addf %83, %85 : vector<3x128xf32>
    %87 = vector.broadcast %60 : vector<1x128xf32> to vector<3x128xf32>
    %88 = arith.mulf %87, %76 : vector<3x128xf32>
    %89 = arith.addf %86, %88 : vector<3x128xf32>
    %90 = vector.broadcast %58 : vector<1x128xf32> to vector<3x128xf32>
    %91 = arith.mulf %90, %71 : vector<3x128xf32>
    %92 = vector.broadcast %59 : vector<1x128xf32> to vector<3x128xf32>
    %93 = arith.mulf %92, %74 : vector<3x128xf32>
    %94 = arith.addf %91, %93 : vector<3x128xf32>
    %95 = vector.broadcast %60 : vector<1x128xf32> to vector<3x128xf32>
    %96 = arith.mulf %95, %77 : vector<3x128xf32>
    %97 = arith.addf %94, %96 : vector<3x128xf32>
    %98 = vector.broadcast %58 : vector<1x128xf32> to vector<3x128xf32>
    %99 = arith.mulf %98, %72 : vector<3x128xf32>
    %100 = vector.broadcast %59 : vector<1x128xf32> to vector<3x128xf32>
    %101 = arith.mulf %100, %75 : vector<3x128xf32>
    %102 = arith.addf %99, %101 : vector<3x128xf32>
    %103 = vector.broadcast %60 : vector<1x128xf32> to vector<3x128xf32>
    %104 = arith.mulf %103, %78 : vector<3x128xf32>
    %105 = arith.addf %102, %104 : vector<3x128xf32>
    %106 = vector.broadcast %61 : vector<1x128xf32> to vector<3x128xf32>
    %107 = arith.mulf %106, %70 : vector<3x128xf32>
    %108 = vector.broadcast %62 : vector<1x128xf32> to vector<3x128xf32>
    %109 = arith.mulf %108, %73 : vector<3x128xf32>
    %110 = arith.addf %107, %109 : vector<3x128xf32>
    %111 = vector.broadcast %63 : vector<1x128xf32> to vector<3x128xf32>
    %112 = arith.mulf %111, %76 : vector<3x128xf32>
    %113 = arith.addf %110, %112 : vector<3x128xf32>
    %114 = vector.broadcast %61 : vector<1x128xf32> to vector<3x128xf32>
    %115 = arith.mulf %114, %71 : vector<3x128xf32>
    %116 = vector.broadcast %62 : vector<1x128xf32> to vector<3x128xf32>
    %117 = arith.mulf %116, %74 : vector<3x128xf32>
    %118 = arith.addf %115, %117 : vector<3x128xf32>
    %119 = vector.broadcast %63 : vector<1x128xf32> to vector<3x128xf32>
    %120 = arith.mulf %119, %77 : vector<3x128xf32>
    %121 = arith.addf %118, %120 : vector<3x128xf32>
    %122 = vector.broadcast %61 : vector<1x128xf32> to vector<3x128xf32>
    %123 = arith.mulf %122, %72 : vector<3x128xf32>
    %124 = vector.broadcast %62 : vector<1x128xf32> to vector<3x128xf32>
    %125 = arith.mulf %124, %75 : vector<3x128xf32>
    %126 = arith.addf %123, %125 : vector<3x128xf32>
    %127 = vector.broadcast %63 : vector<1x128xf32> to vector<3x128xf32>
    %128 = arith.mulf %127, %78 : vector<3x128xf32>
    %129 = arith.addf %126, %128 : vector<3x128xf32>
    %130 = vector.broadcast %64 : vector<1x128xf32> to vector<3x128xf32>
    %131 = arith.mulf %130, %70 : vector<3x128xf32>
    %132 = vector.broadcast %65 : vector<1x128xf32> to vector<3x128xf32>
    %133 = arith.mulf %132, %73 : vector<3x128xf32>
    %134 = arith.addf %131, %133 : vector<3x128xf32>
    %135 = vector.broadcast %66 : vector<1x128xf32> to vector<3x128xf32>
    %136 = arith.mulf %135, %76 : vector<3x128xf32>
    %137 = arith.addf %134, %136 : vector<3x128xf32>
    %138 = vector.broadcast %64 : vector<1x128xf32> to vector<3x128xf32>
    %139 = arith.mulf %138, %71 : vector<3x128xf32>
    %140 = vector.broadcast %65 : vector<1x128xf32> to vector<3x128xf32>
    %141 = arith.mulf %140, %74 : vector<3x128xf32>
    %142 = arith.addf %139, %141 : vector<3x128xf32>
    %143 = vector.broadcast %66 : vector<1x128xf32> to vector<3x128xf32>
    %144 = arith.mulf %143, %77 : vector<3x128xf32>
    %145 = arith.addf %142, %144 : vector<3x128xf32>
    %146 = vector.broadcast %64 : vector<1x128xf32> to vector<3x128xf32>
    %147 = arith.mulf %146, %72 : vector<3x128xf32>
    %148 = vector.broadcast %65 : vector<1x128xf32> to vector<3x128xf32>
    %149 = arith.mulf %148, %75 : vector<3x128xf32>
    %150 = arith.addf %147, %149 : vector<3x128xf32>
    %151 = vector.broadcast %66 : vector<1x128xf32> to vector<3x128xf32>
    %152 = arith.mulf %151, %78 : vector<3x128xf32>
    %153 = arith.addf %150, %152 : vector<3x128xf32>
    %154 = vector.broadcast %58 : vector<1x128xf32> to vector<3x128xf32>
    %155 = vector.broadcast %79 : vector<3x1xf32> to vector<3x128xf32>
    %156 = arith.mulf %154, %155 : vector<3x128xf32>
    %157 = vector.broadcast %59 : vector<1x128xf32> to vector<3x128xf32>
    %158 = vector.broadcast %80 : vector<3x1xf32> to vector<3x128xf32>
    %159 = arith.mulf %157, %158 : vector<3x128xf32>
    %160 = arith.addf %156, %159 : vector<3x128xf32>
    %161 = vector.broadcast %60 : vector<1x128xf32> to vector<3x128xf32>
    %162 = vector.broadcast %81 : vector<3x1xf32> to vector<3x128xf32>
    %163 = arith.mulf %161, %162 : vector<3x128xf32>
    %164 = arith.addf %160, %163 : vector<3x128xf32>
    %165 = vector.broadcast %67 : vector<1x1xf32> to vector<3x128xf32>
    %166 = arith.addf %164, %165 : vector<3x128xf32>
    %167 = vector.broadcast %61 : vector<1x128xf32> to vector<3x128xf32>
    %168 = vector.broadcast %79 : vector<3x1xf32> to vector<3x128xf32>
    %169 = arith.mulf %167, %168 : vector<3x128xf32>
    %170 = vector.broadcast %62 : vector<1x128xf32> to vector<3x128xf32>
    %171 = vector.broadcast %80 : vector<3x1xf32> to vector<3x128xf32>
    %172 = arith.mulf %170, %171 : vector<3x128xf32>
    %173 = arith.addf %169, %172 : vector<3x128xf32>
    %174 = vector.broadcast %63 : vector<1x128xf32> to vector<3x128xf32>
    %175 = vector.broadcast %81 : vector<3x1xf32> to vector<3x128xf32>
    %176 = arith.mulf %174, %175 : vector<3x128xf32>
    %177 = arith.addf %173, %176 : vector<3x128xf32>
    %178 = vector.broadcast %68 : vector<1x1xf32> to vector<3x128xf32>
    %179 = arith.addf %177, %178 : vector<3x128xf32>
    %180 = vector.broadcast %64 : vector<1x128xf32> to vector<3x128xf32>
    %181 = vector.broadcast %79 : vector<3x1xf32> to vector<3x128xf32>
    %182 = arith.mulf %180, %181 : vector<3x128xf32>
    %183 = vector.broadcast %65 : vector<1x128xf32> to vector<3x128xf32>
    %184 = vector.broadcast %80 : vector<3x1xf32> to vector<3x128xf32>
    %185 = arith.mulf %183, %184 : vector<3x128xf32>
    %186 = arith.addf %182, %185 : vector<3x128xf32>
    %187 = vector.broadcast %66 : vector<1x128xf32> to vector<3x128xf32>
    %188 = vector.broadcast %81 : vector<3x1xf32> to vector<3x128xf32>
    %189 = arith.mulf %187, %188 : vector<3x128xf32>
    %190 = arith.addf %186, %189 : vector<3x128xf32>
    %191 = vector.broadcast %69 : vector<1x1xf32> to vector<3x128xf32>
    %192 = arith.addf %190, %191 : vector<3x128xf32>
    %193 = vector.extract_strided_slice %25 {offsets = [4, 0], sizes = [3, 128], strides = [1, 1]} : vector<24x128xf32> to vector<3x128xf32>
    %194 = vector.extract_strided_slice %29 {offsets = [4, 0], sizes = [3, 128], strides = [1, 1]} : vector<24x128xf32> to vector<3x128xf32>
    %195 = vector.extract_strided_slice %33 {offsets = [4, 0], sizes = [3, 128], strides = [1, 1]} : vector<24x128xf32> to vector<3x128xf32>
    %196 = vector.extract_strided_slice %37 {offsets = [4, 0], sizes = [3, 128], strides = [1, 1]} : vector<24x128xf32> to vector<3x128xf32>
    %197 = vector.extract_strided_slice %40 {offsets = [4, 0], sizes = [3, 128], strides = [1, 1]} : vector<24x128xf32> to vector<3x128xf32>
    %198 = vector.extract_strided_slice %44 {offsets = [4, 0], sizes = [3, 128], strides = [1, 1]} : vector<24x128xf32> to vector<3x128xf32>
    %199 = vector.extract_strided_slice %48 {offsets = [4, 0], sizes = [3, 128], strides = [1, 1]} : vector<24x128xf32> to vector<3x128xf32>
    %200 = vector.extract_strided_slice %52 {offsets = [4, 0], sizes = [3, 128], strides = [1, 1]} : vector<24x128xf32> to vector<3x128xf32>
    %201 = vector.extract_strided_slice %55 {offsets = [4, 0], sizes = [3, 128], strides = [1, 1]} : vector<24x128xf32> to vector<3x128xf32>
    %202 = vector.extract_strided_slice %6 {offsets = [4, 0], sizes = [3, 1], strides = [1, 1]} : vector<24x3xf32> to vector<3x1xf32>
    %203 = vector.extract_strided_slice %6 {offsets = [4, 1], sizes = [3, 1], strides = [1, 1]} : vector<24x3xf32> to vector<3x1xf32>
    %204 = vector.extract_strided_slice %6 {offsets = [4, 2], sizes = [3, 1], strides = [1, 1]} : vector<24x3xf32> to vector<3x1xf32>
    %205 = arith.mulf %89, %193 : vector<3x128xf32>
    %206 = arith.mulf %97, %196 : vector<3x128xf32>
    %207 = arith.addf %205, %206 : vector<3x128xf32>
    %208 = arith.mulf %105, %199 : vector<3x128xf32>
    %209 = arith.addf %207, %208 : vector<3x128xf32>
    %210 = arith.mulf %89, %194 : vector<3x128xf32>
    %211 = arith.mulf %97, %197 : vector<3x128xf32>
    %212 = arith.addf %210, %211 : vector<3x128xf32>
    %213 = arith.mulf %105, %200 : vector<3x128xf32>
    %214 = arith.addf %212, %213 : vector<3x128xf32>
    %215 = arith.mulf %89, %195 : vector<3x128xf32>
    %216 = arith.mulf %97, %198 : vector<3x128xf32>
    %217 = arith.addf %215, %216 : vector<3x128xf32>
    %218 = arith.mulf %105, %201 : vector<3x128xf32>
    %219 = arith.addf %217, %218 : vector<3x128xf32>
    %220 = arith.mulf %113, %193 : vector<3x128xf32>
    %221 = arith.mulf %121, %196 : vector<3x128xf32>
    %222 = arith.addf %220, %221 : vector<3x128xf32>
    %223 = arith.mulf %129, %199 : vector<3x128xf32>
    %224 = arith.addf %222, %223 : vector<3x128xf32>
    %225 = arith.mulf %113, %194 : vector<3x128xf32>
    %226 = arith.mulf %121, %197 : vector<3x128xf32>
    %227 = arith.addf %225, %226 : vector<3x128xf32>
    %228 = arith.mulf %129, %200 : vector<3x128xf32>
    %229 = arith.addf %227, %228 : vector<3x128xf32>
    %230 = arith.mulf %113, %195 : vector<3x128xf32>
    %231 = arith.mulf %121, %198 : vector<3x128xf32>
    %232 = arith.addf %230, %231 : vector<3x128xf32>
    %233 = arith.mulf %129, %201 : vector<3x128xf32>
    %234 = arith.addf %232, %233 : vector<3x128xf32>
    %235 = arith.mulf %137, %193 : vector<3x128xf32>
    %236 = arith.mulf %145, %196 : vector<3x128xf32>
    %237 = arith.addf %235, %236 : vector<3x128xf32>
    %238 = arith.mulf %153, %199 : vector<3x128xf32>
    %239 = arith.addf %237, %238 : vector<3x128xf32>
    %240 = arith.mulf %137, %194 : vector<3x128xf32>
    %241 = arith.mulf %145, %197 : vector<3x128xf32>
    %242 = arith.addf %240, %241 : vector<3x128xf32>
    %243 = arith.mulf %153, %200 : vector<3x128xf32>
    %244 = arith.addf %242, %243 : vector<3x128xf32>
    %245 = arith.mulf %137, %195 : vector<3x128xf32>
    %246 = arith.mulf %145, %198 : vector<3x128xf32>
    %247 = arith.addf %245, %246 : vector<3x128xf32>
    %248 = arith.mulf %153, %201 : vector<3x128xf32>
    %249 = arith.addf %247, %248 : vector<3x128xf32>
    %250 = vector.broadcast %202 : vector<3x1xf32> to vector<3x128xf32>
    %251 = arith.mulf %89, %250 : vector<3x128xf32>
    %252 = vector.broadcast %203 : vector<3x1xf32> to vector<3x128xf32>
    %253 = arith.mulf %97, %252 : vector<3x128xf32>
    %254 = arith.addf %251, %253 : vector<3x128xf32>
    %255 = vector.broadcast %204 : vector<3x1xf32> to vector<3x128xf32>
    %256 = arith.mulf %105, %255 : vector<3x128xf32>
    %257 = arith.addf %254, %256 : vector<3x128xf32>
    %258 = arith.addf %257, %166 : vector<3x128xf32>
    %259 = vector.broadcast %202 : vector<3x1xf32> to vector<3x128xf32>
    %260 = arith.mulf %113, %259 : vector<3x128xf32>
    %261 = vector.broadcast %203 : vector<3x1xf32> to vector<3x128xf32>
    %262 = arith.mulf %121, %261 : vector<3x128xf32>
    %263 = arith.addf %260, %262 : vector<3x128xf32>
    %264 = vector.broadcast %204 : vector<3x1xf32> to vector<3x128xf32>
    %265 = arith.mulf %129, %264 : vector<3x128xf32>
    %266 = arith.addf %263, %265 : vector<3x128xf32>
    %267 = arith.addf %266, %179 : vector<3x128xf32>
    %268 = vector.broadcast %202 : vector<3x1xf32> to vector<3x128xf32>
    %269 = arith.mulf %137, %268 : vector<3x128xf32>
    %270 = vector.broadcast %203 : vector<3x1xf32> to vector<3x128xf32>
    %271 = arith.mulf %145, %270 : vector<3x128xf32>
    %272 = arith.addf %269, %271 : vector<3x128xf32>
    %273 = vector.broadcast %204 : vector<3x1xf32> to vector<3x128xf32>
    %274 = arith.mulf %153, %273 : vector<3x128xf32>
    %275 = arith.addf %272, %274 : vector<3x128xf32>
    %276 = arith.addf %275, %192 : vector<3x128xf32>
    %277 = vector.extract_strided_slice %25 {offsets = [7, 0], sizes = [3, 128], strides = [1, 1]} : vector<24x128xf32> to vector<3x128xf32>
    %278 = vector.extract_strided_slice %29 {offsets = [7, 0], sizes = [3, 128], strides = [1, 1]} : vector<24x128xf32> to vector<3x128xf32>
    %279 = vector.extract_strided_slice %33 {offsets = [7, 0], sizes = [3, 128], strides = [1, 1]} : vector<24x128xf32> to vector<3x128xf32>
    %280 = vector.extract_strided_slice %37 {offsets = [7, 0], sizes = [3, 128], strides = [1, 1]} : vector<24x128xf32> to vector<3x128xf32>
    %281 = vector.extract_strided_slice %40 {offsets = [7, 0], sizes = [3, 128], strides = [1, 1]} : vector<24x128xf32> to vector<3x128xf32>
    %282 = vector.extract_strided_slice %44 {offsets = [7, 0], sizes = [3, 128], strides = [1, 1]} : vector<24x128xf32> to vector<3x128xf32>
    %283 = vector.extract_strided_slice %48 {offsets = [7, 0], sizes = [3, 128], strides = [1, 1]} : vector<24x128xf32> to vector<3x128xf32>
    %284 = vector.extract_strided_slice %52 {offsets = [7, 0], sizes = [3, 128], strides = [1, 1]} : vector<24x128xf32> to vector<3x128xf32>
    %285 = vector.extract_strided_slice %55 {offsets = [7, 0], sizes = [3, 128], strides = [1, 1]} : vector<24x128xf32> to vector<3x128xf32>
    %286 = vector.extract_strided_slice %6 {offsets = [7, 0], sizes = [3, 1], strides = [1, 1]} : vector<24x3xf32> to vector<3x1xf32>
    %287 = vector.extract_strided_slice %6 {offsets = [7, 1], sizes = [3, 1], strides = [1, 1]} : vector<24x3xf32> to vector<3x1xf32>
    %288 = vector.extract_strided_slice %6 {offsets = [7, 2], sizes = [3, 1], strides = [1, 1]} : vector<24x3xf32> to vector<3x1xf32>
    %289 = arith.mulf %209, %277 : vector<3x128xf32>
    %290 = arith.mulf %214, %280 : vector<3x128xf32>
    %291 = arith.addf %289, %290 : vector<3x128xf32>
    %292 = arith.mulf %219, %283 : vector<3x128xf32>
    %293 = arith.addf %291, %292 : vector<3x128xf32>
    %294 = arith.mulf %209, %278 : vector<3x128xf32>
    %295 = arith.mulf %214, %281 : vector<3x128xf32>
    %296 = arith.addf %294, %295 : vector<3x128xf32>
    %297 = arith.mulf %219, %284 : vector<3x128xf32>
    %298 = arith.addf %296, %297 : vector<3x128xf32>
    %299 = arith.mulf %209, %279 : vector<3x128xf32>
    %300 = arith.mulf %214, %282 : vector<3x128xf32>
    %301 = arith.addf %299, %300 : vector<3x128xf32>
    %302 = arith.mulf %219, %285 : vector<3x128xf32>
    %303 = arith.addf %301, %302 : vector<3x128xf32>
    %304 = arith.mulf %224, %277 : vector<3x128xf32>
    %305 = arith.mulf %229, %280 : vector<3x128xf32>
    %306 = arith.addf %304, %305 : vector<3x128xf32>
    %307 = arith.mulf %234, %283 : vector<3x128xf32>
    %308 = arith.addf %306, %307 : vector<3x128xf32>
    %309 = arith.mulf %224, %278 : vector<3x128xf32>
    %310 = arith.mulf %229, %281 : vector<3x128xf32>
    %311 = arith.addf %309, %310 : vector<3x128xf32>
    %312 = arith.mulf %234, %284 : vector<3x128xf32>
    %313 = arith.addf %311, %312 : vector<3x128xf32>
    %314 = arith.mulf %224, %279 : vector<3x128xf32>
    %315 = arith.mulf %229, %282 : vector<3x128xf32>
    %316 = arith.addf %314, %315 : vector<3x128xf32>
    %317 = arith.mulf %234, %285 : vector<3x128xf32>
    %318 = arith.addf %316, %317 : vector<3x128xf32>
    %319 = arith.mulf %239, %277 : vector<3x128xf32>
    %320 = arith.mulf %244, %280 : vector<3x128xf32>
    %321 = arith.addf %319, %320 : vector<3x128xf32>
    %322 = arith.mulf %249, %283 : vector<3x128xf32>
    %323 = arith.addf %321, %322 : vector<3x128xf32>
    %324 = arith.mulf %239, %278 : vector<3x128xf32>
    %325 = arith.mulf %244, %281 : vector<3x128xf32>
    %326 = arith.addf %324, %325 : vector<3x128xf32>
    %327 = arith.mulf %249, %284 : vector<3x128xf32>
    %328 = arith.addf %326, %327 : vector<3x128xf32>
    %329 = arith.mulf %239, %279 : vector<3x128xf32>
    %330 = arith.mulf %244, %282 : vector<3x128xf32>
    %331 = arith.addf %329, %330 : vector<3x128xf32>
    %332 = arith.mulf %249, %285 : vector<3x128xf32>
    %333 = arith.addf %331, %332 : vector<3x128xf32>
    %334 = vector.broadcast %286 : vector<3x1xf32> to vector<3x128xf32>
    %335 = arith.mulf %209, %334 : vector<3x128xf32>
    %336 = vector.broadcast %287 : vector<3x1xf32> to vector<3x128xf32>
    %337 = arith.mulf %214, %336 : vector<3x128xf32>
    %338 = arith.addf %335, %337 : vector<3x128xf32>
    %339 = vector.broadcast %288 : vector<3x1xf32> to vector<3x128xf32>
    %340 = arith.mulf %219, %339 : vector<3x128xf32>
    %341 = arith.addf %338, %340 : vector<3x128xf32>
    %342 = arith.addf %341, %258 : vector<3x128xf32>
    %343 = vector.broadcast %286 : vector<3x1xf32> to vector<3x128xf32>
    %344 = arith.mulf %224, %343 : vector<3x128xf32>
    %345 = vector.broadcast %287 : vector<3x1xf32> to vector<3x128xf32>
    %346 = arith.mulf %229, %345 : vector<3x128xf32>
    %347 = arith.addf %344, %346 : vector<3x128xf32>
    %348 = vector.broadcast %288 : vector<3x1xf32> to vector<3x128xf32>
    %349 = arith.mulf %234, %348 : vector<3x128xf32>
    %350 = arith.addf %347, %349 : vector<3x128xf32>
    %351 = arith.addf %350, %267 : vector<3x128xf32>
    %352 = vector.broadcast %286 : vector<3x1xf32> to vector<3x128xf32>
    %353 = arith.mulf %239, %352 : vector<3x128xf32>
    %354 = vector.broadcast %287 : vector<3x1xf32> to vector<3x128xf32>
    %355 = arith.mulf %244, %354 : vector<3x128xf32>
    %356 = arith.addf %353, %355 : vector<3x128xf32>
    %357 = vector.broadcast %288 : vector<3x1xf32> to vector<3x128xf32>
    %358 = arith.mulf %249, %357 : vector<3x128xf32>
    %359 = arith.addf %356, %358 : vector<3x128xf32>
    %360 = arith.addf %359, %276 : vector<3x128xf32>
    %361 = vector.extract_strided_slice %293 {offsets = [2, 0], sizes = [1, 128], strides = [1, 1]} : vector<3x128xf32> to vector<1x128xf32>
    %362 = vector.extract_strided_slice %293 {offsets = [2, 0], sizes = [1, 128], strides = [1, 1]} : vector<3x128xf32> to vector<1x128xf32>
    %363 = tpu.concatenate %293, %361, %362 in 0 : vector<3x128xf32>, vector<1x128xf32>, vector<1x128xf32> -> vector<5x128xf32>
    %364 = vector.extract_strided_slice %298 {offsets = [2, 0], sizes = [1, 128], strides = [1, 1]} : vector<3x128xf32> to vector<1x128xf32>
    %365 = vector.extract_strided_slice %298 {offsets = [2, 0], sizes = [1, 128], strides = [1, 1]} : vector<3x128xf32> to vector<1x128xf32>
    %366 = tpu.concatenate %298, %364, %365 in 0 : vector<3x128xf32>, vector<1x128xf32>, vector<1x128xf32> -> vector<5x128xf32>
    %367 = vector.extract_strided_slice %303 {offsets = [2, 0], sizes = [1, 128], strides = [1, 1]} : vector<3x128xf32> to vector<1x128xf32>
    %368 = vector.extract_strided_slice %303 {offsets = [2, 0], sizes = [1, 128], strides = [1, 1]} : vector<3x128xf32> to vector<1x128xf32>
    %369 = tpu.concatenate %303, %367, %368 in 0 : vector<3x128xf32>, vector<1x128xf32>, vector<1x128xf32> -> vector<5x128xf32>
    %370 = vector.extract_strided_slice %308 {offsets = [2, 0], sizes = [1, 128], strides = [1, 1]} : vector<3x128xf32> to vector<1x128xf32>
    %371 = vector.extract_strided_slice %308 {offsets = [2, 0], sizes = [1, 128], strides = [1, 1]} : vector<3x128xf32> to vector<1x128xf32>
    %372 = tpu.concatenate %308, %370, %371 in 0 : vector<3x128xf32>, vector<1x128xf32>, vector<1x128xf32> -> vector<5x128xf32>
    %373 = vector.extract_strided_slice %313 {offsets = [2, 0], sizes = [1, 128], strides = [1, 1]} : vector<3x128xf32> to vector<1x128xf32>
    %374 = vector.extract_strided_slice %313 {offsets = [2, 0], sizes = [1, 128], strides = [1, 1]} : vector<3x128xf32> to vector<1x128xf32>
    %375 = tpu.concatenate %313, %373, %374 in 0 : vector<3x128xf32>, vector<1x128xf32>, vector<1x128xf32> -> vector<5x128xf32>
    %376 = vector.extract_strided_slice %318 {offsets = [2, 0], sizes = [1, 128], strides = [1, 1]} : vector<3x128xf32> to vector<1x128xf32>
    %377 = vector.extract_strided_slice %318 {offsets = [2, 0], sizes = [1, 128], strides = [1, 1]} : vector<3x128xf32> to vector<1x128xf32>
    %378 = tpu.concatenate %318, %376, %377 in 0 : vector<3x128xf32>, vector<1x128xf32>, vector<1x128xf32> -> vector<5x128xf32>
    %379 = vector.extract_strided_slice %323 {offsets = [2, 0], sizes = [1, 128], strides = [1, 1]} : vector<3x128xf32> to vector<1x128xf32>
    %380 = vector.extract_strided_slice %323 {offsets = [2, 0], sizes = [1, 128], strides = [1, 1]} : vector<3x128xf32> to vector<1x128xf32>
    %381 = tpu.concatenate %323, %379, %380 in 0 : vector<3x128xf32>, vector<1x128xf32>, vector<1x128xf32> -> vector<5x128xf32>
    %382 = vector.extract_strided_slice %328 {offsets = [2, 0], sizes = [1, 128], strides = [1, 1]} : vector<3x128xf32> to vector<1x128xf32>
    %383 = vector.extract_strided_slice %328 {offsets = [2, 0], sizes = [1, 128], strides = [1, 1]} : vector<3x128xf32> to vector<1x128xf32>
    %384 = tpu.concatenate %328, %382, %383 in 0 : vector<3x128xf32>, vector<1x128xf32>, vector<1x128xf32> -> vector<5x128xf32>
    %385 = vector.extract_strided_slice %333 {offsets = [2, 0], sizes = [1, 128], strides = [1, 1]} : vector<3x128xf32> to vector<1x128xf32>
    %386 = vector.extract_strided_slice %333 {offsets = [2, 0], sizes = [1, 128], strides = [1, 1]} : vector<3x128xf32> to vector<1x128xf32>
    %387 = tpu.concatenate %333, %385, %386 in 0 : vector<3x128xf32>, vector<1x128xf32>, vector<1x128xf32> -> vector<5x128xf32>
    %388 = vector.extract_strided_slice %342 {offsets = [2, 0], sizes = [1, 128], strides = [1, 1]} : vector<3x128xf32> to vector<1x128xf32>
    %389 = vector.extract_strided_slice %342 {offsets = [2, 0], sizes = [1, 128], strides = [1, 1]} : vector<3x128xf32> to vector<1x128xf32>
    %390 = tpu.concatenate %342, %388, %389 in 0 : vector<3x128xf32>, vector<1x128xf32>, vector<1x128xf32> -> vector<5x128xf32>
    %391 = vector.extract_strided_slice %351 {offsets = [2, 0], sizes = [1, 128], strides = [1, 1]} : vector<3x128xf32> to vector<1x128xf32>
    %392 = vector.extract_strided_slice %351 {offsets = [2, 0], sizes = [1, 128], strides = [1, 1]} : vector<3x128xf32> to vector<1x128xf32>
    %393 = tpu.concatenate %351, %391, %392 in 0 : vector<3x128xf32>, vector<1x128xf32>, vector<1x128xf32> -> vector<5x128xf32>
    %394 = vector.extract_strided_slice %360 {offsets = [2, 0], sizes = [1, 128], strides = [1, 1]} : vector<3x128xf32> to vector<1x128xf32>
    %395 = vector.extract_strided_slice %360 {offsets = [2, 0], sizes = [1, 128], strides = [1, 1]} : vector<3x128xf32> to vector<1x128xf32>
    %396 = tpu.concatenate %360, %394, %395 in 0 : vector<3x128xf32>, vector<1x128xf32>, vector<1x128xf32> -> vector<5x128xf32>
    %397 = vector.extract_strided_slice %25 {offsets = [10, 0], sizes = [5, 128], strides = [1, 1]} : vector<24x128xf32> to vector<5x128xf32>
    %398 = vector.extract_strided_slice %29 {offsets = [10, 0], sizes = [5, 128], strides = [1, 1]} : vector<24x128xf32> to vector<5x128xf32>
    %399 = vector.extract_strided_slice %33 {offsets = [10, 0], sizes = [5, 128], strides = [1, 1]} : vector<24x128xf32> to vector<5x128xf32>
    %400 = vector.extract_strided_slice %37 {offsets = [10, 0], sizes = [5, 128], strides = [1, 1]} : vector<24x128xf32> to vector<5x128xf32>
    %401 = vector.extract_strided_slice %40 {offsets = [10, 0], sizes = [5, 128], strides = [1, 1]} : vector<24x128xf32> to vector<5x128xf32>
    %402 = vector.extract_strided_slice %44 {offsets = [10, 0], sizes = [5, 128], strides = [1, 1]} : vector<24x128xf32> to vector<5x128xf32>
    %403 = vector.extract_strided_slice %48 {offsets = [10, 0], sizes = [5, 128], strides = [1, 1]} : vector<24x128xf32> to vector<5x128xf32>
    %404 = vector.extract_strided_slice %52 {offsets = [10, 0], sizes = [5, 128], strides = [1, 1]} : vector<24x128xf32> to vector<5x128xf32>
    %405 = vector.extract_strided_slice %55 {offsets = [10, 0], sizes = [5, 128], strides = [1, 1]} : vector<24x128xf32> to vector<5x128xf32>
    %406 = vector.extract_strided_slice %6 {offsets = [10, 0], sizes = [5, 1], strides = [1, 1]} : vector<24x3xf32> to vector<5x1xf32>
    %407 = vector.extract_strided_slice %6 {offsets = [10, 1], sizes = [5, 1], strides = [1, 1]} : vector<24x3xf32> to vector<5x1xf32>
    %408 = vector.extract_strided_slice %6 {offsets = [10, 2], sizes = [5, 1], strides = [1, 1]} : vector<24x3xf32> to vector<5x1xf32>
    %409 = arith.mulf %363, %397 : vector<5x128xf32>
    %410 = arith.mulf %366, %400 : vector<5x128xf32>
    %411 = arith.addf %409, %410 : vector<5x128xf32>
    %412 = arith.mulf %369, %403 : vector<5x128xf32>
    %413 = arith.addf %411, %412 : vector<5x128xf32>
    %414 = arith.mulf %363, %398 : vector<5x128xf32>
    %415 = arith.mulf %366, %401 : vector<5x128xf32>
    %416 = arith.addf %414, %415 : vector<5x128xf32>
    %417 = arith.mulf %369, %404 : vector<5x128xf32>
    %418 = arith.addf %416, %417 : vector<5x128xf32>
    %419 = arith.mulf %363, %399 : vector<5x128xf32>
    %420 = arith.mulf %366, %402 : vector<5x128xf32>
    %421 = arith.addf %419, %420 : vector<5x128xf32>
    %422 = arith.mulf %369, %405 : vector<5x128xf32>
    %423 = arith.addf %421, %422 : vector<5x128xf32>
    %424 = arith.mulf %372, %397 : vector<5x128xf32>
    %425 = arith.mulf %375, %400 : vector<5x128xf32>
    %426 = arith.addf %424, %425 : vector<5x128xf32>
    %427 = arith.mulf %378, %403 : vector<5x128xf32>
    %428 = arith.addf %426, %427 : vector<5x128xf32>
    %429 = arith.mulf %372, %398 : vector<5x128xf32>
    %430 = arith.mulf %375, %401 : vector<5x128xf32>
    %431 = arith.addf %429, %430 : vector<5x128xf32>
    %432 = arith.mulf %378, %404 : vector<5x128xf32>
    %433 = arith.addf %431, %432 : vector<5x128xf32>
    %434 = arith.mulf %372, %399 : vector<5x128xf32>
    %435 = arith.mulf %375, %402 : vector<5x128xf32>
    %436 = arith.addf %434, %435 : vector<5x128xf32>
    %437 = arith.mulf %378, %405 : vector<5x128xf32>
    %438 = arith.addf %436, %437 : vector<5x128xf32>
    %439 = arith.mulf %381, %397 : vector<5x128xf32>
    %440 = arith.mulf %384, %400 : vector<5x128xf32>
    %441 = arith.addf %439, %440 : vector<5x128xf32>
    %442 = arith.mulf %387, %403 : vector<5x128xf32>
    %443 = arith.addf %441, %442 : vector<5x128xf32>
    %444 = arith.mulf %381, %398 : vector<5x128xf32>
    %445 = arith.mulf %384, %401 : vector<5x128xf32>
    %446 = arith.addf %444, %445 : vector<5x128xf32>
    %447 = arith.mulf %387, %404 : vector<5x128xf32>
    %448 = arith.addf %446, %447 : vector<5x128xf32>
    %449 = arith.mulf %381, %399 : vector<5x128xf32>
    %450 = arith.mulf %384, %402 : vector<5x128xf32>
    %451 = arith.addf %449, %450 : vector<5x128xf32>
    %452 = arith.mulf %387, %405 : vector<5x128xf32>
    %453 = arith.addf %451, %452 : vector<5x128xf32>
    %454 = vector.broadcast %406 : vector<5x1xf32> to vector<5x128xf32>
    %455 = arith.mulf %363, %454 : vector<5x128xf32>
    %456 = vector.broadcast %407 : vector<5x1xf32> to vector<5x128xf32>
    %457 = arith.mulf %366, %456 : vector<5x128xf32>
    %458 = arith.addf %455, %457 : vector<5x128xf32>
    %459 = vector.broadcast %408 : vector<5x1xf32> to vector<5x128xf32>
    %460 = arith.mulf %369, %459 : vector<5x128xf32>
    %461 = arith.addf %458, %460 : vector<5x128xf32>
    %462 = arith.addf %461, %390 : vector<5x128xf32>
    %463 = vector.broadcast %406 : vector<5x1xf32> to vector<5x128xf32>
    %464 = arith.mulf %372, %463 : vector<5x128xf32>
    %465 = vector.broadcast %407 : vector<5x1xf32> to vector<5x128xf32>
    %466 = arith.mulf %375, %465 : vector<5x128xf32>
    %467 = arith.addf %464, %466 : vector<5x128xf32>
    %468 = vector.broadcast %408 : vector<5x1xf32> to vector<5x128xf32>
    %469 = arith.mulf %378, %468 : vector<5x128xf32>
    %470 = arith.addf %467, %469 : vector<5x128xf32>
    %471 = arith.addf %470, %393 : vector<5x128xf32>
    %472 = vector.broadcast %406 : vector<5x1xf32> to vector<5x128xf32>
    %473 = arith.mulf %381, %472 : vector<5x128xf32>
    %474 = vector.broadcast %407 : vector<5x1xf32> to vector<5x128xf32>
    %475 = arith.mulf %384, %474 : vector<5x128xf32>
    %476 = arith.addf %473, %475 : vector<5x128xf32>
    %477 = vector.broadcast %408 : vector<5x1xf32> to vector<5x128xf32>
    %478 = arith.mulf %387, %477 : vector<5x128xf32>
    %479 = arith.addf %476, %478 : vector<5x128xf32>
    %480 = arith.addf %479, %396 : vector<5x128xf32>
    %481 = vector.extract_strided_slice %413 {offsets = [2, 0], sizes = [3, 128], strides = [1, 1]} : vector<5x128xf32> to vector<3x128xf32>
    %482 = vector.extract_strided_slice %418 {offsets = [2, 0], sizes = [3, 128], strides = [1, 1]} : vector<5x128xf32> to vector<3x128xf32>
    %483 = vector.extract_strided_slice %423 {offsets = [2, 0], sizes = [3, 128], strides = [1, 1]} : vector<5x128xf32> to vector<3x128xf32>
    %484 = vector.extract_strided_slice %428 {offsets = [2, 0], sizes = [3, 128], strides = [1, 1]} : vector<5x128xf32> to vector<3x128xf32>
    %485 = vector.extract_strided_slice %433 {offsets = [2, 0], sizes = [3, 128], strides = [1, 1]} : vector<5x128xf32> to vector<3x128xf32>
    %486 = vector.extract_strided_slice %438 {offsets = [2, 0], sizes = [3, 128], strides = [1, 1]} : vector<5x128xf32> to vector<3x128xf32>
    %487 = vector.extract_strided_slice %443 {offsets = [2, 0], sizes = [3, 128], strides = [1, 1]} : vector<5x128xf32> to vector<3x128xf32>
    %488 = vector.extract_strided_slice %448 {offsets = [2, 0], sizes = [3, 128], strides = [1, 1]} : vector<5x128xf32> to vector<3x128xf32>
    %489 = vector.extract_strided_slice %453 {offsets = [2, 0], sizes = [3, 128], strides = [1, 1]} : vector<5x128xf32> to vector<3x128xf32>
    %490 = vector.extract_strided_slice %462 {offsets = [2, 0], sizes = [3, 128], strides = [1, 1]} : vector<5x128xf32> to vector<3x128xf32>
    %491 = vector.extract_strided_slice %471 {offsets = [2, 0], sizes = [3, 128], strides = [1, 1]} : vector<5x128xf32> to vector<3x128xf32>
    %492 = vector.extract_strided_slice %480 {offsets = [2, 0], sizes = [3, 128], strides = [1, 1]} : vector<5x128xf32> to vector<3x128xf32>
    %493 = vector.extract_strided_slice %25 {offsets = [15, 0], sizes = [3, 128], strides = [1, 1]} : vector<24x128xf32> to vector<3x128xf32>
    %494 = vector.extract_strided_slice %29 {offsets = [15, 0], sizes = [3, 128], strides = [1, 1]} : vector<24x128xf32> to vector<3x128xf32>
    %495 = vector.extract_strided_slice %33 {offsets = [15, 0], sizes = [3, 128], strides = [1, 1]} : vector<24x128xf32> to vector<3x128xf32>
    %496 = vector.extract_strided_slice %37 {offsets = [15, 0], sizes = [3, 128], strides = [1, 1]} : vector<24x128xf32> to vector<3x128xf32>
    %497 = vector.extract_strided_slice %40 {offsets = [15, 0], sizes = [3, 128], strides = [1, 1]} : vector<24x128xf32> to vector<3x128xf32>
    %498 = vector.extract_strided_slice %44 {offsets = [15, 0], sizes = [3, 128], strides = [1, 1]} : vector<24x128xf32> to vector<3x128xf32>
    %499 = vector.extract_strided_slice %48 {offsets = [15, 0], sizes = [3, 128], strides = [1, 1]} : vector<24x128xf32> to vector<3x128xf32>
    %500 = vector.extract_strided_slice %52 {offsets = [15, 0], sizes = [3, 128], strides = [1, 1]} : vector<24x128xf32> to vector<3x128xf32>
    %501 = vector.extract_strided_slice %55 {offsets = [15, 0], sizes = [3, 128], strides = [1, 1]} : vector<24x128xf32> to vector<3x128xf32>
    %502 = vector.extract_strided_slice %6 {offsets = [15, 0], sizes = [3, 1], strides = [1, 1]} : vector<24x3xf32> to vector<3x1xf32>
    %503 = vector.extract_strided_slice %6 {offsets = [15, 1], sizes = [3, 1], strides = [1, 1]} : vector<24x3xf32> to vector<3x1xf32>
    %504 = vector.extract_strided_slice %6 {offsets = [15, 2], sizes = [3, 1], strides = [1, 1]} : vector<24x3xf32> to vector<3x1xf32>
    %505 = arith.mulf %481, %493 : vector<3x128xf32>
    %506 = arith.mulf %482, %496 : vector<3x128xf32>
    %507 = arith.addf %505, %506 : vector<3x128xf32>
    %508 = arith.mulf %483, %499 : vector<3x128xf32>
    %509 = arith.addf %507, %508 : vector<3x128xf32>
    %510 = arith.mulf %481, %494 : vector<3x128xf32>
    %511 = arith.mulf %482, %497 : vector<3x128xf32>
    %512 = arith.addf %510, %511 : vector<3x128xf32>
    %513 = arith.mulf %483, %500 : vector<3x128xf32>
    %514 = arith.addf %512, %513 : vector<3x128xf32>
    %515 = arith.mulf %481, %495 : vector<3x128xf32>
    %516 = arith.mulf %482, %498 : vector<3x128xf32>
    %517 = arith.addf %515, %516 : vector<3x128xf32>
    %518 = arith.mulf %483, %501 : vector<3x128xf32>
    %519 = arith.addf %517, %518 : vector<3x128xf32>
    %520 = arith.mulf %484, %493 : vector<3x128xf32>
    %521 = arith.mulf %485, %496 : vector<3x128xf32>
    %522 = arith.addf %520, %521 : vector<3x128xf32>
    %523 = arith.mulf %486, %499 : vector<3x128xf32>
    %524 = arith.addf %522, %523 : vector<3x128xf32>
    %525 = arith.mulf %484, %494 : vector<3x128xf32>
    %526 = arith.mulf %485, %497 : vector<3x128xf32>
    %527 = arith.addf %525, %526 : vector<3x128xf32>
    %528 = arith.mulf %486, %500 : vector<3x128xf32>
    %529 = arith.addf %527, %528 : vector<3x128xf32>
    %530 = arith.mulf %484, %495 : vector<3x128xf32>
    %531 = arith.mulf %485, %498 : vector<3x128xf32>
    %532 = arith.addf %530, %531 : vector<3x128xf32>
    %533 = arith.mulf %486, %501 : vector<3x128xf32>
    %534 = arith.addf %532, %533 : vector<3x128xf32>
    %535 = arith.mulf %487, %493 : vector<3x128xf32>
    %536 = arith.mulf %488, %496 : vector<3x128xf32>
    %537 = arith.addf %535, %536 : vector<3x128xf32>
    %538 = arith.mulf %489, %499 : vector<3x128xf32>
    %539 = arith.addf %537, %538 : vector<3x128xf32>
    %540 = arith.mulf %487, %494 : vector<3x128xf32>
    %541 = arith.mulf %488, %497 : vector<3x128xf32>
    %542 = arith.addf %540, %541 : vector<3x128xf32>
    %543 = arith.mulf %489, %500 : vector<3x128xf32>
    %544 = arith.addf %542, %543 : vector<3x128xf32>
    %545 = arith.mulf %487, %495 : vector<3x128xf32>
    %546 = arith.mulf %488, %498 : vector<3x128xf32>
    %547 = arith.addf %545, %546 : vector<3x128xf32>
    %548 = arith.mulf %489, %501 : vector<3x128xf32>
    %549 = arith.addf %547, %548 : vector<3x128xf32>
    %550 = vector.broadcast %502 : vector<3x1xf32> to vector<3x128xf32>
    %551 = arith.mulf %481, %550 : vector<3x128xf32>
    %552 = vector.broadcast %503 : vector<3x1xf32> to vector<3x128xf32>
    %553 = arith.mulf %482, %552 : vector<3x128xf32>
    %554 = arith.addf %551, %553 : vector<3x128xf32>
    %555 = vector.broadcast %504 : vector<3x1xf32> to vector<3x128xf32>
    %556 = arith.mulf %483, %555 : vector<3x128xf32>
    %557 = arith.addf %554, %556 : vector<3x128xf32>
    %558 = arith.addf %557, %490 : vector<3x128xf32>
    %559 = vector.broadcast %502 : vector<3x1xf32> to vector<3x128xf32>
    %560 = arith.mulf %484, %559 : vector<3x128xf32>
    %561 = vector.broadcast %503 : vector<3x1xf32> to vector<3x128xf32>
    %562 = arith.mulf %485, %561 : vector<3x128xf32>
    %563 = arith.addf %560, %562 : vector<3x128xf32>
    %564 = vector.broadcast %504 : vector<3x1xf32> to vector<3x128xf32>
    %565 = arith.mulf %486, %564 : vector<3x128xf32>
    %566 = arith.addf %563, %565 : vector<3x128xf32>
    %567 = arith.addf %566, %491 : vector<3x128xf32>
    %568 = vector.broadcast %502 : vector<3x1xf32> to vector<3x128xf32>
    %569 = arith.mulf %487, %568 : vector<3x128xf32>
    %570 = vector.broadcast %503 : vector<3x1xf32> to vector<3x128xf32>
    %571 = arith.mulf %488, %570 : vector<3x128xf32>
    %572 = arith.addf %569, %571 : vector<3x128xf32>
    %573 = vector.broadcast %504 : vector<3x1xf32> to vector<3x128xf32>
    %574 = arith.mulf %489, %573 : vector<3x128xf32>
    %575 = arith.addf %572, %574 : vector<3x128xf32>
    %576 = arith.addf %575, %492 : vector<3x128xf32>
    %577 = vector.extract_strided_slice %509 {offsets = [1, 0], sizes = [2, 128], strides = [1, 1]} : vector<3x128xf32> to vector<2x128xf32>
    %578 = vector.extract_strided_slice %514 {offsets = [1, 0], sizes = [2, 128], strides = [1, 1]} : vector<3x128xf32> to vector<2x128xf32>
    %579 = vector.extract_strided_slice %519 {offsets = [1, 0], sizes = [2, 128], strides = [1, 1]} : vector<3x128xf32> to vector<2x128xf32>
    %580 = vector.extract_strided_slice %524 {offsets = [1, 0], sizes = [2, 128], strides = [1, 1]} : vector<3x128xf32> to vector<2x128xf32>
    %581 = vector.extract_strided_slice %529 {offsets = [1, 0], sizes = [2, 128], strides = [1, 1]} : vector<3x128xf32> to vector<2x128xf32>
    %582 = vector.extract_strided_slice %534 {offsets = [1, 0], sizes = [2, 128], strides = [1, 1]} : vector<3x128xf32> to vector<2x128xf32>
    %583 = vector.extract_strided_slice %539 {offsets = [1, 0], sizes = [2, 128], strides = [1, 1]} : vector<3x128xf32> to vector<2x128xf32>
    %584 = vector.extract_strided_slice %544 {offsets = [1, 0], sizes = [2, 128], strides = [1, 1]} : vector<3x128xf32> to vector<2x128xf32>
    %585 = vector.extract_strided_slice %549 {offsets = [1, 0], sizes = [2, 128], strides = [1, 1]} : vector<3x128xf32> to vector<2x128xf32>
    %586 = vector.extract_strided_slice %558 {offsets = [1, 0], sizes = [2, 128], strides = [1, 1]} : vector<3x128xf32> to vector<2x128xf32>
    %587 = vector.extract_strided_slice %567 {offsets = [1, 0], sizes = [2, 128], strides = [1, 1]} : vector<3x128xf32> to vector<2x128xf32>
    %588 = vector.extract_strided_slice %576 {offsets = [1, 0], sizes = [2, 128], strides = [1, 1]} : vector<3x128xf32> to vector<2x128xf32>
    %589 = vector.extract_strided_slice %25 {offsets = [18, 0], sizes = [2, 128], strides = [1, 1]} : vector<24x128xf32> to vector<2x128xf32>
    %590 = vector.extract_strided_slice %29 {offsets = [18, 0], sizes = [2, 128], strides = [1, 1]} : vector<24x128xf32> to vector<2x128xf32>
    %591 = vector.extract_strided_slice %33 {offsets = [18, 0], sizes = [2, 128], strides = [1, 1]} : vector<24x128xf32> to vector<2x128xf32>
    %592 = vector.extract_strided_slice %37 {offsets = [18, 0], sizes = [2, 128], strides = [1, 1]} : vector<24x128xf32> to vector<2x128xf32>
    %593 = vector.extract_strided_slice %40 {offsets = [18, 0], sizes = [2, 128], strides = [1, 1]} : vector<24x128xf32> to vector<2x128xf32>
    %594 = vector.extract_strided_slice %44 {offsets = [18, 0], sizes = [2, 128], strides = [1, 1]} : vector<24x128xf32> to vector<2x128xf32>
    %595 = vector.extract_strided_slice %48 {offsets = [18, 0], sizes = [2, 128], strides = [1, 1]} : vector<24x128xf32> to vector<2x128xf32>
    %596 = vector.extract_strided_slice %52 {offsets = [18, 0], sizes = [2, 128], strides = [1, 1]} : vector<24x128xf32> to vector<2x128xf32>
    %597 = vector.extract_strided_slice %55 {offsets = [18, 0], sizes = [2, 128], strides = [1, 1]} : vector<24x128xf32> to vector<2x128xf32>
    %598 = vector.extract_strided_slice %6 {offsets = [18, 0], sizes = [2, 1], strides = [1, 1]} : vector<24x3xf32> to vector<2x1xf32>
    %599 = vector.extract_strided_slice %6 {offsets = [18, 1], sizes = [2, 1], strides = [1, 1]} : vector<24x3xf32> to vector<2x1xf32>
    %600 = vector.extract_strided_slice %6 {offsets = [18, 2], sizes = [2, 1], strides = [1, 1]} : vector<24x3xf32> to vector<2x1xf32>
    %601 = arith.mulf %577, %589 : vector<2x128xf32>
    %602 = arith.mulf %578, %592 : vector<2x128xf32>
    %603 = arith.addf %601, %602 : vector<2x128xf32>
    %604 = arith.mulf %579, %595 : vector<2x128xf32>
    %605 = arith.addf %603, %604 : vector<2x128xf32>
    %606 = arith.mulf %577, %590 : vector<2x128xf32>
    %607 = arith.mulf %578, %593 : vector<2x128xf32>
    %608 = arith.addf %606, %607 : vector<2x128xf32>
    %609 = arith.mulf %579, %596 : vector<2x128xf32>
    %610 = arith.addf %608, %609 : vector<2x128xf32>
    %611 = arith.mulf %577, %591 : vector<2x128xf32>
    %612 = arith.mulf %578, %594 : vector<2x128xf32>
    %613 = arith.addf %611, %612 : vector<2x128xf32>
    %614 = arith.mulf %579, %597 : vector<2x128xf32>
    %615 = arith.addf %613, %614 : vector<2x128xf32>
    %616 = arith.mulf %580, %589 : vector<2x128xf32>
    %617 = arith.mulf %581, %592 : vector<2x128xf32>
    %618 = arith.addf %616, %617 : vector<2x128xf32>
    %619 = arith.mulf %582, %595 : vector<2x128xf32>
    %620 = arith.addf %618, %619 : vector<2x128xf32>
    %621 = arith.mulf %580, %590 : vector<2x128xf32>
    %622 = arith.mulf %581, %593 : vector<2x128xf32>
    %623 = arith.addf %621, %622 : vector<2x128xf32>
    %624 = arith.mulf %582, %596 : vector<2x128xf32>
    %625 = arith.addf %623, %624 : vector<2x128xf32>
    %626 = arith.mulf %580, %591 : vector<2x128xf32>
    %627 = arith.mulf %581, %594 : vector<2x128xf32>
    %628 = arith.addf %626, %627 : vector<2x128xf32>
    %629 = arith.mulf %582, %597 : vector<2x128xf32>
    %630 = arith.addf %628, %629 : vector<2x128xf32>
    %631 = arith.mulf %583, %589 : vector<2x128xf32>
    %632 = arith.mulf %584, %592 : vector<2x128xf32>
    %633 = arith.addf %631, %632 : vector<2x128xf32>
    %634 = arith.mulf %585, %595 : vector<2x128xf32>
    %635 = arith.addf %633, %634 : vector<2x128xf32>
    %636 = arith.mulf %583, %590 : vector<2x128xf32>
    %637 = arith.mulf %584, %593 : vector<2x128xf32>
    %638 = arith.addf %636, %637 : vector<2x128xf32>
    %639 = arith.mulf %585, %596 : vector<2x128xf32>
    %640 = arith.addf %638, %639 : vector<2x128xf32>
    %641 = arith.mulf %583, %591 : vector<2x128xf32>
    %642 = arith.mulf %584, %594 : vector<2x128xf32>
    %643 = arith.addf %641, %642 : vector<2x128xf32>
    %644 = arith.mulf %585, %597 : vector<2x128xf32>
    %645 = arith.addf %643, %644 : vector<2x128xf32>
    %646 = vector.broadcast %598 : vector<2x1xf32> to vector<2x128xf32>
    %647 = arith.mulf %577, %646 : vector<2x128xf32>
    %648 = vector.broadcast %599 : vector<2x1xf32> to vector<2x128xf32>
    %649 = arith.mulf %578, %648 : vector<2x128xf32>
    %650 = arith.addf %647, %649 : vector<2x128xf32>
    %651 = vector.broadcast %600 : vector<2x1xf32> to vector<2x128xf32>
    %652 = arith.mulf %579, %651 : vector<2x128xf32>
    %653 = arith.addf %650, %652 : vector<2x128xf32>
    %654 = arith.addf %653, %586 : vector<2x128xf32>
    %655 = vector.broadcast %598 : vector<2x1xf32> to vector<2x128xf32>
    %656 = arith.mulf %580, %655 : vector<2x128xf32>
    %657 = vector.broadcast %599 : vector<2x1xf32> to vector<2x128xf32>
    %658 = arith.mulf %581, %657 : vector<2x128xf32>
    %659 = arith.addf %656, %658 : vector<2x128xf32>
    %660 = vector.broadcast %600 : vector<2x1xf32> to vector<2x128xf32>
    %661 = arith.mulf %582, %660 : vector<2x128xf32>
    %662 = arith.addf %659, %661 : vector<2x128xf32>
    %663 = arith.addf %662, %587 : vector<2x128xf32>
    %664 = vector.broadcast %598 : vector<2x1xf32> to vector<2x128xf32>
    %665 = arith.mulf %583, %664 : vector<2x128xf32>
    %666 = vector.broadcast %599 : vector<2x1xf32> to vector<2x128xf32>
    %667 = arith.mulf %584, %666 : vector<2x128xf32>
    %668 = arith.addf %665, %667 : vector<2x128xf32>
    %669 = vector.broadcast %600 : vector<2x1xf32> to vector<2x128xf32>
    %670 = arith.mulf %585, %669 : vector<2x128xf32>
    %671 = arith.addf %668, %670 : vector<2x128xf32>
    %672 = arith.addf %671, %588 : vector<2x128xf32>
    %673 = vector.extract_strided_slice %25 {offsets = [20, 0], sizes = [2, 128], strides = [1, 1]} : vector<24x128xf32> to vector<2x128xf32>
    %674 = vector.extract_strided_slice %29 {offsets = [20, 0], sizes = [2, 128], strides = [1, 1]} : vector<24x128xf32> to vector<2x128xf32>
    %675 = vector.extract_strided_slice %33 {offsets = [20, 0], sizes = [2, 128], strides = [1, 1]} : vector<24x128xf32> to vector<2x128xf32>
    %676 = vector.extract_strided_slice %37 {offsets = [20, 0], sizes = [2, 128], strides = [1, 1]} : vector<24x128xf32> to vector<2x128xf32>
    %677 = vector.extract_strided_slice %40 {offsets = [20, 0], sizes = [2, 128], strides = [1, 1]} : vector<24x128xf32> to vector<2x128xf32>
    %678 = vector.extract_strided_slice %44 {offsets = [20, 0], sizes = [2, 128], strides = [1, 1]} : vector<24x128xf32> to vector<2x128xf32>
    %679 = vector.extract_strided_slice %48 {offsets = [20, 0], sizes = [2, 128], strides = [1, 1]} : vector<24x128xf32> to vector<2x128xf32>
    %680 = vector.extract_strided_slice %52 {offsets = [20, 0], sizes = [2, 128], strides = [1, 1]} : vector<24x128xf32> to vector<2x128xf32>
    %681 = vector.extract_strided_slice %55 {offsets = [20, 0], sizes = [2, 128], strides = [1, 1]} : vector<24x128xf32> to vector<2x128xf32>
    %682 = vector.extract_strided_slice %6 {offsets = [20, 0], sizes = [2, 1], strides = [1, 1]} : vector<24x3xf32> to vector<2x1xf32>
    %683 = vector.extract_strided_slice %6 {offsets = [20, 1], sizes = [2, 1], strides = [1, 1]} : vector<24x3xf32> to vector<2x1xf32>
    %684 = vector.extract_strided_slice %6 {offsets = [20, 2], sizes = [2, 1], strides = [1, 1]} : vector<24x3xf32> to vector<2x1xf32>
    %685 = arith.mulf %605, %673 : vector<2x128xf32>
    %686 = arith.mulf %610, %676 : vector<2x128xf32>
    %687 = arith.addf %685, %686 : vector<2x128xf32>
    %688 = arith.mulf %615, %679 : vector<2x128xf32>
    %689 = arith.addf %687, %688 : vector<2x128xf32>
    %690 = arith.mulf %605, %674 : vector<2x128xf32>
    %691 = arith.mulf %610, %677 : vector<2x128xf32>
    %692 = arith.addf %690, %691 : vector<2x128xf32>
    %693 = arith.mulf %615, %680 : vector<2x128xf32>
    %694 = arith.addf %692, %693 : vector<2x128xf32>
    %695 = arith.mulf %605, %675 : vector<2x128xf32>
    %696 = arith.mulf %610, %678 : vector<2x128xf32>
    %697 = arith.addf %695, %696 : vector<2x128xf32>
    %698 = arith.mulf %615, %681 : vector<2x128xf32>
    %699 = arith.addf %697, %698 : vector<2x128xf32>
    %700 = arith.mulf %620, %673 : vector<2x128xf32>
    %701 = arith.mulf %625, %676 : vector<2x128xf32>
    %702 = arith.addf %700, %701 : vector<2x128xf32>
    %703 = arith.mulf %630, %679 : vector<2x128xf32>
    %704 = arith.addf %702, %703 : vector<2x128xf32>
    %705 = arith.mulf %620, %674 : vector<2x128xf32>
    %706 = arith.mulf %625, %677 : vector<2x128xf32>
    %707 = arith.addf %705, %706 : vector<2x128xf32>
    %708 = arith.mulf %630, %680 : vector<2x128xf32>
    %709 = arith.addf %707, %708 : vector<2x128xf32>
    %710 = arith.mulf %620, %675 : vector<2x128xf32>
    %711 = arith.mulf %625, %678 : vector<2x128xf32>
    %712 = arith.addf %710, %711 : vector<2x128xf32>
    %713 = arith.mulf %630, %681 : vector<2x128xf32>
    %714 = arith.addf %712, %713 : vector<2x128xf32>
    %715 = arith.mulf %635, %673 : vector<2x128xf32>
    %716 = arith.mulf %640, %676 : vector<2x128xf32>
    %717 = arith.addf %715, %716 : vector<2x128xf32>
    %718 = arith.mulf %645, %679 : vector<2x128xf32>
    %719 = arith.addf %717, %718 : vector<2x128xf32>
    %720 = arith.mulf %635, %674 : vector<2x128xf32>
    %721 = arith.mulf %640, %677 : vector<2x128xf32>
    %722 = arith.addf %720, %721 : vector<2x128xf32>
    %723 = arith.mulf %645, %680 : vector<2x128xf32>
    %724 = arith.addf %722, %723 : vector<2x128xf32>
    %725 = arith.mulf %635, %675 : vector<2x128xf32>
    %726 = arith.mulf %640, %678 : vector<2x128xf32>
    %727 = arith.addf %725, %726 : vector<2x128xf32>
    %728 = arith.mulf %645, %681 : vector<2x128xf32>
    %729 = arith.addf %727, %728 : vector<2x128xf32>
    %730 = vector.broadcast %682 : vector<2x1xf32> to vector<2x128xf32>
    %731 = arith.mulf %605, %730 : vector<2x128xf32>
    %732 = vector.broadcast %683 : vector<2x1xf32> to vector<2x128xf32>
    %733 = arith.mulf %610, %732 : vector<2x128xf32>
    %734 = arith.addf %731, %733 : vector<2x128xf32>
    %735 = vector.broadcast %684 : vector<2x1xf32> to vector<2x128xf32>
    %736 = arith.mulf %615, %735 : vector<2x128xf32>
    %737 = arith.addf %734, %736 : vector<2x128xf32>
    %738 = arith.addf %737, %654 : vector<2x128xf32>
    %739 = vector.broadcast %682 : vector<2x1xf32> to vector<2x128xf32>
    %740 = arith.mulf %620, %739 : vector<2x128xf32>
    %741 = vector.broadcast %683 : vector<2x1xf32> to vector<2x128xf32>
    %742 = arith.mulf %625, %741 : vector<2x128xf32>
    %743 = arith.addf %740, %742 : vector<2x128xf32>
    %744 = vector.broadcast %684 : vector<2x1xf32> to vector<2x128xf32>
    %745 = arith.mulf %630, %744 : vector<2x128xf32>
    %746 = arith.addf %743, %745 : vector<2x128xf32>
    %747 = arith.addf %746, %663 : vector<2x128xf32>
    %748 = vector.broadcast %682 : vector<2x1xf32> to vector<2x128xf32>
    %749 = arith.mulf %635, %748 : vector<2x128xf32>
    %750 = vector.broadcast %683 : vector<2x1xf32> to vector<2x128xf32>
    %751 = arith.mulf %640, %750 : vector<2x128xf32>
    %752 = arith.addf %749, %751 : vector<2x128xf32>
    %753 = vector.broadcast %684 : vector<2x1xf32> to vector<2x128xf32>
    %754 = arith.mulf %645, %753 : vector<2x128xf32>
    %755 = arith.addf %752, %754 : vector<2x128xf32>
    %756 = arith.addf %755, %672 : vector<2x128xf32>
    %757 = vector.extract_strided_slice %25 {offsets = [22, 0], sizes = [2, 128], strides = [1, 1]} : vector<24x128xf32> to vector<2x128xf32>
    %758 = vector.extract_strided_slice %29 {offsets = [22, 0], sizes = [2, 128], strides = [1, 1]} : vector<24x128xf32> to vector<2x128xf32>
    %759 = vector.extract_strided_slice %33 {offsets = [22, 0], sizes = [2, 128], strides = [1, 1]} : vector<24x128xf32> to vector<2x128xf32>
    %760 = vector.extract_strided_slice %37 {offsets = [22, 0], sizes = [2, 128], strides = [1, 1]} : vector<24x128xf32> to vector<2x128xf32>
    %761 = vector.extract_strided_slice %40 {offsets = [22, 0], sizes = [2, 128], strides = [1, 1]} : vector<24x128xf32> to vector<2x128xf32>
    %762 = vector.extract_strided_slice %44 {offsets = [22, 0], sizes = [2, 128], strides = [1, 1]} : vector<24x128xf32> to vector<2x128xf32>
    %763 = vector.extract_strided_slice %48 {offsets = [22, 0], sizes = [2, 128], strides = [1, 1]} : vector<24x128xf32> to vector<2x128xf32>
    %764 = vector.extract_strided_slice %52 {offsets = [22, 0], sizes = [2, 128], strides = [1, 1]} : vector<24x128xf32> to vector<2x128xf32>
    %765 = vector.extract_strided_slice %55 {offsets = [22, 0], sizes = [2, 128], strides = [1, 1]} : vector<24x128xf32> to vector<2x128xf32>
    %766 = vector.extract_strided_slice %6 {offsets = [22, 0], sizes = [2, 1], strides = [1, 1]} : vector<24x3xf32> to vector<2x1xf32>
    %767 = vector.extract_strided_slice %6 {offsets = [22, 1], sizes = [2, 1], strides = [1, 1]} : vector<24x3xf32> to vector<2x1xf32>
    %768 = vector.extract_strided_slice %6 {offsets = [22, 2], sizes = [2, 1], strides = [1, 1]} : vector<24x3xf32> to vector<2x1xf32>
    %769 = arith.mulf %689, %757 : vector<2x128xf32>
    %770 = arith.mulf %694, %760 : vector<2x128xf32>
    %771 = arith.addf %769, %770 : vector<2x128xf32>
    %772 = arith.mulf %699, %763 : vector<2x128xf32>
    %773 = arith.addf %771, %772 : vector<2x128xf32>
    %774 = arith.mulf %689, %758 : vector<2x128xf32>
    %775 = arith.mulf %694, %761 : vector<2x128xf32>
    %776 = arith.addf %774, %775 : vector<2x128xf32>
    %777 = arith.mulf %699, %764 : vector<2x128xf32>
    %778 = arith.addf %776, %777 : vector<2x128xf32>
    %779 = arith.mulf %689, %759 : vector<2x128xf32>
    %780 = arith.mulf %694, %762 : vector<2x128xf32>
    %781 = arith.addf %779, %780 : vector<2x128xf32>
    %782 = arith.mulf %699, %765 : vector<2x128xf32>
    %783 = arith.addf %781, %782 : vector<2x128xf32>
    %784 = arith.mulf %704, %757 : vector<2x128xf32>
    %785 = arith.mulf %709, %760 : vector<2x128xf32>
    %786 = arith.addf %784, %785 : vector<2x128xf32>
    %787 = arith.mulf %714, %763 : vector<2x128xf32>
    %788 = arith.addf %786, %787 : vector<2x128xf32>
    %789 = arith.mulf %704, %758 : vector<2x128xf32>
    %790 = arith.mulf %709, %761 : vector<2x128xf32>
    %791 = arith.addf %789, %790 : vector<2x128xf32>
    %792 = arith.mulf %714, %764 : vector<2x128xf32>
    %793 = arith.addf %791, %792 : vector<2x128xf32>
    %794 = arith.mulf %704, %759 : vector<2x128xf32>
    %795 = arith.mulf %709, %762 : vector<2x128xf32>
    %796 = arith.addf %794, %795 : vector<2x128xf32>
    %797 = arith.mulf %714, %765 : vector<2x128xf32>
    %798 = arith.addf %796, %797 : vector<2x128xf32>
    %799 = arith.mulf %719, %757 : vector<2x128xf32>
    %800 = arith.mulf %724, %760 : vector<2x128xf32>
    %801 = arith.addf %799, %800 : vector<2x128xf32>
    %802 = arith.mulf %729, %763 : vector<2x128xf32>
    %803 = arith.addf %801, %802 : vector<2x128xf32>
    %804 = arith.mulf %719, %758 : vector<2x128xf32>
    %805 = arith.mulf %724, %761 : vector<2x128xf32>
    %806 = arith.addf %804, %805 : vector<2x128xf32>
    %807 = arith.mulf %729, %764 : vector<2x128xf32>
    %808 = arith.addf %806, %807 : vector<2x128xf32>
    %809 = arith.mulf %719, %759 : vector<2x128xf32>
    %810 = arith.mulf %724, %762 : vector<2x128xf32>
    %811 = arith.addf %809, %810 : vector<2x128xf32>
    %812 = arith.mulf %729, %765 : vector<2x128xf32>
    %813 = arith.addf %811, %812 : vector<2x128xf32>
    %814 = vector.broadcast %766 : vector<2x1xf32> to vector<2x128xf32>
    %815 = arith.mulf %689, %814 : vector<2x128xf32>
    %816 = vector.broadcast %767 : vector<2x1xf32> to vector<2x128xf32>
    %817 = arith.mulf %694, %816 : vector<2x128xf32>
    %818 = arith.addf %815, %817 : vector<2x128xf32>
    %819 = vector.broadcast %768 : vector<2x1xf32> to vector<2x128xf32>
    %820 = arith.mulf %699, %819 : vector<2x128xf32>
    %821 = arith.addf %818, %820 : vector<2x128xf32>
    %822 = arith.addf %821, %738 : vector<2x128xf32>
    %823 = vector.broadcast %766 : vector<2x1xf32> to vector<2x128xf32>
    %824 = arith.mulf %704, %823 : vector<2x128xf32>
    %825 = vector.broadcast %767 : vector<2x1xf32> to vector<2x128xf32>
    %826 = arith.mulf %709, %825 : vector<2x128xf32>
    %827 = arith.addf %824, %826 : vector<2x128xf32>
    %828 = vector.broadcast %768 : vector<2x1xf32> to vector<2x128xf32>
    %829 = arith.mulf %714, %828 : vector<2x128xf32>
    %830 = arith.addf %827, %829 : vector<2x128xf32>
    %831 = arith.addf %830, %747 : vector<2x128xf32>
    %832 = vector.broadcast %766 : vector<2x1xf32> to vector<2x128xf32>
    %833 = arith.mulf %719, %832 : vector<2x128xf32>
    %834 = vector.broadcast %767 : vector<2x1xf32> to vector<2x128xf32>
    %835 = arith.mulf %724, %834 : vector<2x128xf32>
    %836 = arith.addf %833, %835 : vector<2x128xf32>
    %837 = vector.broadcast %768 : vector<2x1xf32> to vector<2x128xf32>
    %838 = arith.mulf %729, %837 : vector<2x128xf32>
    %839 = arith.addf %836, %838 : vector<2x128xf32>
    %840 = arith.addf %839, %756 : vector<2x128xf32>
    %841 = vector.shape_cast %67 : vector<1x1xf32> to vector<1x1xf32>
    %842 = vector.broadcast %841 : vector<1x1xf32> to vector<1x128xf32>
    %843 = vector.shape_cast %68 : vector<1x1xf32> to vector<1x1xf32>
    %844 = vector.broadcast %843 : vector<1x1xf32> to vector<1x128xf32>
    %845 = vector.shape_cast %69 : vector<1x1xf32> to vector<1x1xf32>
    %846 = vector.broadcast %845 : vector<1x1xf32> to vector<1x128xf32>
    %847 = tpu.concatenate %58, %89, %209, %293, %413, %509, %605, %689, %773 in 0 : vector<1x128xf32>, vector<3x128xf32>, vector<3x128xf32>, vector<3x128xf32>, vector<5x128xf32>, vector<3x128xf32>, vector<2x128xf32>, vector<2x128xf32>, vector<2x128xf32> -> vector<24x128xf32>
    %848 = tpu.concatenate %59, %97, %214, %298, %418, %514, %610, %694, %778 in 0 : vector<1x128xf32>, vector<3x128xf32>, vector<3x128xf32>, vector<3x128xf32>, vector<5x128xf32>, vector<3x128xf32>, vector<2x128xf32>, vector<2x128xf32>, vector<2x128xf32> -> vector<24x128xf32>
    %849 = tpu.concatenate %60, %105, %219, %303, %423, %519, %615, %699, %783 in 0 : vector<1x128xf32>, vector<3x128xf32>, vector<3x128xf32>, vector<3x128xf32>, vector<5x128xf32>, vector<3x128xf32>, vector<2x128xf32>, vector<2x128xf32>, vector<2x128xf32> -> vector<24x128xf32>
    %850 = tpu.concatenate %61, %113, %224, %308, %428, %524, %620, %704, %788 in 0 : vector<1x128xf32>, vector<3x128xf32>, vector<3x128xf32>, vector<3x128xf32>, vector<5x128xf32>, vector<3x128xf32>, vector<2x128xf32>, vector<2x128xf32>, vector<2x128xf32> -> vector<24x128xf32>
    %851 = tpu.concatenate %62, %121, %229, %313, %433, %529, %625, %709, %793 in 0 : vector<1x128xf32>, vector<3x128xf32>, vector<3x128xf32>, vector<3x128xf32>, vector<5x128xf32>, vector<3x128xf32>, vector<2x128xf32>, vector<2x128xf32>, vector<2x128xf32> -> vector<24x128xf32>
    %852 = tpu.concatenate %63, %129, %234, %318, %438, %534, %630, %714, %798 in 0 : vector<1x128xf32>, vector<3x128xf32>, vector<3x128xf32>, vector<3x128xf32>, vector<5x128xf32>, vector<3x128xf32>, vector<2x128xf32>, vector<2x128xf32>, vector<2x128xf32> -> vector<24x128xf32>
    %853 = tpu.concatenate %64, %137, %239, %323, %443, %539, %635, %719, %803 in 0 : vector<1x128xf32>, vector<3x128xf32>, vector<3x128xf32>, vector<3x128xf32>, vector<5x128xf32>, vector<3x128xf32>, vector<2x128xf32>, vector<2x128xf32>, vector<2x128xf32> -> vector<24x128xf32>
    %854 = tpu.concatenate %65, %145, %244, %328, %448, %544, %640, %724, %808 in 0 : vector<1x128xf32>, vector<3x128xf32>, vector<3x128xf32>, vector<3x128xf32>, vector<5x128xf32>, vector<3x128xf32>, vector<2x128xf32>, vector<2x128xf32>, vector<2x128xf32> -> vector<24x128xf32>
    %855 = tpu.concatenate %66, %153, %249, %333, %453, %549, %645, %729, %813 in 0 : vector<1x128xf32>, vector<3x128xf32>, vector<3x128xf32>, vector<3x128xf32>, vector<5x128xf32>, vector<3x128xf32>, vector<2x128xf32>, vector<2x128xf32>, vector<2x128xf32> -> vector<24x128xf32>
    %856 = tpu.concatenate %842, %166, %258, %342, %462, %558, %654, %738, %822 in 0 : vector<1x128xf32>, vector<3x128xf32>, vector<3x128xf32>, vector<3x128xf32>, vector<5x128xf32>, vector<3x128xf32>, vector<2x128xf32>, vector<2x128xf32>, vector<2x128xf32> -> vector<24x128xf32>
    %857 = tpu.concatenate %844, %179, %267, %351, %471, %567, %663, %747, %831 in 0 : vector<1x128xf32>, vector<3x128xf32>, vector<3x128xf32>, vector<3x128xf32>, vector<5x128xf32>, vector<3x128xf32>, vector<2x128xf32>, vector<2x128xf32>, vector<2x128xf32> -> vector<24x128xf32>
    %858 = tpu.concatenate %846, %192, %276, %360, %480, %576, %672, %756, %840 in 0 : vector<1x128xf32>, vector<3x128xf32>, vector<3x128xf32>, vector<3x128xf32>, vector<5x128xf32>, vector<3x128xf32>, vector<2x128xf32>, vector<2x128xf32>, vector<2x128xf32> -> vector<24x128xf32>
    %859 = vector.broadcast %3 : vector<1x128xf32> to vector<24x128xf32>
    %860 = arith.addf %856, %859 : vector<24x128xf32>
    %861 = vector.broadcast %4 : vector<1x128xf32> to vector<24x128xf32>
    %862 = arith.addf %857, %861 : vector<24x128xf32>
    %863 = vector.broadcast %5 : vector<1x128xf32> to vector<24x128xf32>
    %864 = arith.addf %858, %863 : vector<24x128xf32>
    %865 = tpu.concatenate %847, %848, %849, %860, %850, %851, %852, %862, %853, %854, %855, %864 in 0 : vector<24x128xf32>, vector<24x128xf32>, vector<24x128xf32>, vector<24x128xf32>, vector<24x128xf32>, vector<24x128xf32>, vector<24x128xf32>, vector<24x128xf32>, vector<24x128xf32>, vector<24x128xf32>, vector<24x128xf32>, vector<24x128xf32> -> vector<288x128xf32>
    %c0_12 = arith.constant 0 : index
    %c0_13 = arith.constant 0 : index
    %866 = vector.load %arg5[%c0_12, %c0_13] : memref<288x128xf32, #tpu.memory_space<vmem>>, vector<288x128xf32>
    tpu.vector_store %arg5[%c0_12, %c0_13], %865 {strides = array<i32>} : memref<288x128xf32, #tpu.memory_space<vmem>>, vector<288x128xf32>,
    %867 = arith.mulf %851, %855 : vector<24x128xf32>
    %868 = arith.mulf %852, %854 : vector<24x128xf32>
    %869 = arith.subf %867, %868 : vector<24x128xf32>
    %870 = arith.mulf %849, %854 : vector<24x128xf32>
    %871 = arith.mulf %848, %855 : vector<24x128xf32>
    %872 = arith.subf %870, %871 : vector<24x128xf32>
    %873 = arith.mulf %848, %852 : vector<24x128xf32>
    %874 = arith.mulf %849, %851 : vector<24x128xf32>
    %875 = arith.subf %873, %874 : vector<24x128xf32>
    %876 = arith.mulf %852, %853 : vector<24x128xf32>
    %877 = arith.mulf %850, %855 : vector<24x128xf32>
    %878 = arith.subf %876, %877 : vector<24x128xf32>
    %879 = arith.mulf %847, %855 : vector<24x128xf32>
    %880 = arith.mulf %849, %853 : vector<24x128xf32>
    %881 = arith.subf %879, %880 : vector<24x128xf32>
    %882 = arith.mulf %849, %850 : vector<24x128xf32>
    %883 = arith.mulf %847, %852 : vector<24x128xf32>
    %884 = arith.subf %882, %883 : vector<24x128xf32>
    %885 = arith.mulf %850, %854 : vector<24x128xf32>
    %886 = arith.mulf %851, %853 : vector<24x128xf32>
    %887 = arith.subf %885, %886 : vector<24x128xf32>
    %888 = arith.mulf %848, %853 : vector<24x128xf32>
    %889 = arith.mulf %847, %854 : vector<24x128xf32>
    %890 = arith.subf %888, %889 : vector<24x128xf32>
    %891 = arith.mulf %847, %851 : vector<24x128xf32>
    %892 = arith.mulf %848, %850 : vector<24x128xf32>
    %893 = arith.subf %891, %892 : vector<24x128xf32>
    %894 = arith.mulf %847, %869 : vector<24x128xf32>
    %895 = arith.mulf %848, %878 : vector<24x128xf32>
    %896 = arith.addf %894, %895 : vector<24x128xf32>
    %897 = arith.mulf %849, %887 : vector<24x128xf32>
    %898 = arith.addf %896, %897 : vector<24x128xf32>
    %cst_14 = arith.constant 1.000000e+00 : f32
    %899 = vector.broadcast %cst_14 : f32 to vector<24x128xf32>
    %900 = arith.divf %899, %898 : vector<24x128xf32>
    %901 = arith.mulf %869, %900 : vector<24x128xf32>
    %902 = arith.mulf %872, %900 : vector<24x128xf32>
    %903 = arith.mulf %875, %900 : vector<24x128xf32>
    %904 = arith.mulf %878, %900 : vector<24x128xf32>
    %905 = arith.mulf %881, %900 : vector<24x128xf32>
    %906 = arith.mulf %884, %900 : vector<24x128xf32>
    %907 = arith.mulf %887, %900 : vector<24x128xf32>
    %908 = arith.mulf %890, %900 : vector<24x128xf32>
    %909 = arith.mulf %893, %900 : vector<24x128xf32>
    %910 = arith.mulf %901, %860 : vector<24x128xf32>
    %911 = arith.mulf %902, %862 : vector<24x128xf32>
    %912 = arith.addf %910, %911 : vector<24x128xf32>
    %913 = arith.mulf %903, %864 : vector<24x128xf32>
    %914 = arith.addf %912, %913 : vector<24x128xf32>
    %cst_15 = arith.constant 0.000000e+00 : f32
    %915 = vector.broadcast %cst_15 : f32 to vector<24x128xf32>
    %916 = arith.subf %915, %914 : vector<24x128xf32>
    %917 = arith.mulf %904, %860 : vector<24x128xf32>
    %918 = arith.mulf %905, %862 : vector<24x128xf32>
    %919 = arith.addf %917, %918 : vector<24x128xf32>
    %920 = arith.mulf %906, %864 : vector<24x128xf32>
    %921 = arith.addf %919, %920 : vector<24x128xf32>
    %cst_16 = arith.constant 0.000000e+00 : f32
    %922 = vector.broadcast %cst_16 : f32 to vector<24x128xf32>
    %923 = arith.subf %922, %921 : vector<24x128xf32>
    %924 = arith.mulf %907, %860 : vector<24x128xf32>
    %925 = arith.mulf %908, %862 : vector<24x128xf32>
    %926 = arith.addf %924, %925 : vector<24x128xf32>
    %927 = arith.mulf %909, %864 : vector<24x128xf32>
    %928 = arith.addf %926, %927 : vector<24x128xf32>
    %cst_17 = arith.constant 0.000000e+00 : f32
    %929 = vector.broadcast %cst_17 : f32 to vector<24x128xf32>
    %930 = arith.subf %929, %928 : vector<24x128xf32>
    %931 = tpu.concatenate %901, %902, %903, %916, %904, %905, %906, %923, %907, %908, %909, %930 in 0 : vector<24x128xf32>, vector<24x128xf32>, vector<24x128xf32>, vector<24x128xf32>, vector<24x128xf32>, vector<24x128xf32>, vector<24x128xf32>, vector<24x128xf32>, vector<24x128xf32>, vector<24x128xf32>, vector<24x128xf32>, vector<24x128xf32> -> vector<288x128xf32>
    %c0_18 = arith.constant 0 : index
    %c0_19 = arith.constant 0 : index
    %932 = vector.load %arg6[%c0_18, %c0_19] : memref<288x128xf32, #tpu.memory_space<vmem>>, vector<288x128xf32>
    tpu.vector_store %arg6[%c0_18, %c0_19], %931 {strides = array<i32>} : memref<288x128xf32, #tpu.memory_space<vmem>>, vector<288x128xf32>,
    return
  }
  func.func @transform_0(%arg0: i32) -> (i32, i32) {
    %c0_i32 = arith.constant 0 : i32
    %c0_i32_0 = arith.constant 0 : i32
    return %c0_i32, %arg0 : i32, i32
  }
  func.func @transform_1(%arg0: i32) -> (i32, i32) {
    %c0_i32 = arith.constant 0 : i32
    %c0_i32_0 = arith.constant 0 : i32
    return %c0_i32, %arg0 : i32, i32
  }
  func.func @transform_2(%arg0: i32) -> (i32, i32) {
    %c0_i32 = arith.constant 0 : i32
    %c0_i32_0 = arith.constant 0 : i32
    %c0_i32_1 = arith.constant 0 : i32
    return %c0_i32, %c0_i32_0 : i32, i32
  }
  func.func @transform_3(%arg0: i32) -> (i32, i32) {
    %c0_i32 = arith.constant 0 : i32
    %c0_i32_0 = arith.constant 0 : i32
    return %c0_i32, %arg0 : i32, i32
  }
  func.func @transform_4(%arg0: i32) -> (i32, i32) {
    %c0_i32 = arith.constant 0 : i32
    %c0_i32_0 = arith.constant 0 : i32
    return %c0_i32, %arg0 : i32, i32
  }
  func.func @transform_5(%arg0: i32) -> (i32, i32) {
    %c0_i32 = arith.constant 0 : i32
    %c0_i32_0 = arith.constant 0 : i32
    return %c0_i32, %arg0 : i32, i32
  }
}

</mosaic_0001>

<llo_original>
// kernel: tpu_custom_call.1
$region0: #{tpu_custom_call.1}
  #allocation0 [shape = 'u32[]', space=smem, size = 0x4, offset = 0x4, fixed_abs, tag = 'smem constant byte address 0x4 - core index']
  #allocation1 [shape = 'u32[144,128]{1,0:T(1,128)}', space=vmem, size = 0x12000, scoped, tag = 'internal scratch']
  %s0 = inlined_call_operand.hbm [shape: f32[72,128], index: 0, kind: input, shape index: {}]
  %s1 = inlined_call_operand.vmem [shape: f32[3,128], index: 1, kind: input, shape index: {}]
  %s2 = inlined_call_operand.vmem [shape: f32[24,3], index: 2, kind: input, shape index: {}]
  %s3 = inlined_call_operand.hbm [shape: f32[216,128], index: 3, kind: output, shape index: {0}]
  %s4 = inlined_call_operand.hbm [shape: f32[288,128], index: 4, kind: output, shape index: {1}]
  %s5 = inlined_call_operand.hbm [shape: f32[288,128], index: 5, kind: output, shape index: {2}]
  %6 = xla_tuple %s3, %s4, %s5
  %s7 = sld [smem:[#allocation0]]
  $region42: #{tpu_custom_call.1} parent=0
    _
  %s9 = ssub.s32 1, %s7
  %s10 = scalar_select 0, %s9, %s7
  $region1: #{tpu_custom_call.1} parent=0
    #allocation2 [shape = 'u8[36864]{0}', space=vmem, size = 0x9000, scoped, tag = 'input window, operand 0, single buffered']
    #allocation3 [shape = 's32[1]{0}', space=sflag, size = 0x4, scoped, tag = 'scoped memory for tpu_custom_call.1']
    #allocation4 [shape = 's32[1]{0}', space=sflag, size = 0x4, scoped, tag = 'scoped memory for tpu_custom_call.1']
    #allocation5 [shape = 'u8[110592]{0}', space=vmem, size = 0x1b000, scoped, tag = 'output window, operand 0, single buffered']
    #allocation6 [shape = 'u8[147456]{0}', space=vmem, size = 0x24000, scoped, tag = 'output window, operand 1, single buffered']
    #allocation7 [shape = 's32[1]{0}', space=sflag, size = 0x4, scoped, tag = 'scoped memory for tpu_custom_call.1']
    #allocation8 [shape = 'u8[147456]{0}', space=vmem, size = 0x24000, scoped, tag = 'output window, operand 2, single buffered']
    %11 = vsyncpa [#allocation3], 0
    %12 = vsyncpa [#allocation4], 0
    %13 = vsyncpa [#allocation7], 0
    // Predicated region
    $region2: #{tpu_custom_call.1} parent=1 // pred_check
      _
    $region3: #{tpu_custom_call.1} parent=1 // pred_check_branch
      %15 = sbr.rel (0) target = $region5
    $region4: #{tpu_custom_call.1} parent=1 // pred_region
      %s17 = ssub.s32 1152, 1152
      %18 = vsyncadd [#allocation3], %s17
      %s19 = sshll.u32 [#allocation2], 4
      %s20 = int_to_ptr.vmem [resolvable:$true] %s19
      %25 = dma.hbm_to_vmem [thread:$0]  %s0, 1152, %s20, [#allocation3], 128, 128, 8
    $region5: #{tpu_custom_call.1} parent=1 // pred_fallthru
      _
    // Predicated region
    $region6: #{tpu_custom_call.1} parent=1 // pred_check
      _
    $region7: #{tpu_custom_call.1} parent=1 // pred_check_branch
      %27 = sbr.rel (0) target = $region9
    $region8: #{tpu_custom_call.1} parent=1 // pred_region
      _
    $region9: #{tpu_custom_call.1} parent=1 // pred_fallthru
      _
    // Predicated region
    $region10: #{tpu_custom_call.1} parent=1 // pred_check
      _
    $region11: #{tpu_custom_call.1} parent=1 // pred_check_branch
      %29 = sbr.rel (0) target = $region13
    $region12: #{tpu_custom_call.1} parent=1 // pred_region
      _
    $region13: #{tpu_custom_call.1} parent=1 // pred_fallthru
      _
    // Predicated region
    $region14: #{tpu_custom_call.1} parent=1 // pred_check
      _
    $region15: #{tpu_custom_call.1} parent=1 // pred_check_branch
      %31 = sbr.rel (0) target = $region17
    $region16: #{tpu_custom_call.1} parent=1 // pred_region
      %32 = dma.done [#allocation3], 1152
    $region17: #{tpu_custom_call.1} parent=1 // pred_fallthru
      _
    %v33 = vld [vmem:[#allocation2] sm:$0xff]
    %v34 = vld [vmem:[#allocation2 + $0x8] sm:$0xff]
    %v35 = vld [vmem:[#allocation2 + $0x10] sm:$0xff]
    %v36 = vld [vmem:[#allocation2 + $0x18] sm:$0xff]
    %v37 = vld [vmem:[#allocation2 + $0x20] sm:$0xff]
    %v38 = vld [vmem:[#allocation2 + $0x28] sm:$0xff]
    %v39 = vld [vmem:[#allocation2 + $0x30] sm:$0xff]
    %v40 = vld [vmem:[#allocation2 + $0x38] sm:$0xff]
    %v41 = vld [vmem:[#allocation2 + $0x40] sm:$0xff]
    %v42 = vld [vmem:[%s1] sm:$0x1]
    %v43 = vld [vmem:[%s1 + $0x1] sm:$0x1]
    %v44 = vld [vmem:[%s1 + $0x2] sm:$0x1]
    %v45 = vld [vmem:[%s2] sm:$0xff]
    %v46 = vld [vmem:[%s2 + $0x8] sm:$0xff]
    %v47 = vld [vmem:[%s2 + $0x10] sm:$0xff]
    %v48 = vmul.f32 %v33, %v33
    %v49 = vmul.f32 %v34, %v34
    %v50 = vmul.f32 %v35, %v35
    %v51 = vmul.f32 %v36, %v36
    %v52 = vmul.f32 %v37, %v37
    %v53 = vmul.f32 %v38, %v38
    %v54 = vadd.f32 %v48, %v51
    %v55 = vadd.f32 %v49, %v52
    %v56 = vadd.f32 %v50, %v53
    %v57 = vmul.f32 %v39, %v39
    %v58 = vmul.f32 %v40, %v40
    %v59 = vmul.f32 %v41, %v41
    %v60 = vadd.f32 %v54, %v57
    %v61 = vadd.f32 %v55, %v58
    %v62 = vadd.f32 %v56, %v59
    %v63 = vrsqrt.pop %v60
    %v64 = vmul.f32 %v60, %v63
    %vm65 = vcmp.eq.f32.partialorder %v60, inf
    %v66 = vsel %vm65, %v60, %v64
    %vm67 = vcmp.eq.f32.partialorder %v60, 0.0
    %v68 = vand.u32 %v60, 2147483648
    %v69 = vsel %vm67, %v68, %v66
    %v70 = vrsqrt.pop %v61
    %v71 = vmul.f32 %v61, %v70
    %vm72 = vcmp.eq.f32.partialorder %v61, inf
    %v73 = vsel %vm72, %v61, %v71
    %vm74 = vcmp.eq.f32.partialorder %v61, 0.0
    %v75 = vand.u32 %v61, 2147483648
    %v76 = vsel %vm74, %v75, %v73
    %v77 = vrsqrt.pop %v62
    %v78 = vmul.f32 %v62, %v77
    %vm79 = vcmp.eq.f32.partialorder %v62, inf
    %v80 = vsel %vm79, %v62, %v78
    %vm81 = vcmp.eq.f32.partialorder %v62, 0.0
    %v82 = vand.u32 %v62, 2147483648
    %v83 = vsel %vm81, %v82, %v80
    %v84 = vadd.f32 %v69, 1e-08
    %v85 = vadd.f32 %v76, 1e-08
    %v86 = vadd.f32 %v83, 1e-08
    %v87 = vrcp.pop %v84
    %v88 = vrcp.pop %v85
    %v89 = vrcp.pop %v86
    %v90 = vmul.f32 %v33, %v87
    %v91 = vmul.f32 %v34, %v88
    %v92 = vmul.f32 %v35, %v89
    %v93 = vmul.f32 %v36, %v87
    %v94 = vmul.f32 %v37, %v88
    %v95 = vmul.f32 %v38, %v89
    %v96 = vmul.f32 %v39, %v87
    %v97 = vmul.f32 %v40, %v88
    %v98 = vmul.f32 %v41, %v89
    %v99 = vand.u32 2147483647, %v69
    %vm100 = vcmp.le.f32.partialorder %v99, 0.7853982
    %vm101 = vcmp.lt.s32.totalorder %v69, 0
    %v102 = vand.u32 %v69, 2139095040
    %v103 = vshrl.u32 %v102, 23
    %v104 = vsub.s32 %v103, 127
    %v105 = vand.u32 2147483647, %v69
    %v106 = vand.u32 %v105, 8388607
    %v107 = vor.u32 %v106, 8388608
    %v108 = vsub.s32 0, %v107
    %v109 = vadd.s32 %v104, 1
    %vm110 = vcmp.gt.s32.totalorder %v109, 0
    %v111 = vsel %vm110, %v109, 0
    %v112 = vshrl.u32 %v111, 5
    %v113 = vand.u32 %v111, 31
    %v114 = vsub.s32 32, %v113
    %v115 = vshrl.u32 683565275, %v114
    %v116 = vshll.u32 683565275, %v113
    %v117 = vshrl.u32 2475754826, %v114
    %v118 = vor.u32 %v116, %v117
    %v119 = vshll.u32 2475754826, %v113
    %v120 = vshrl.u32 2131351028, %v114
    %v121 = vor.u32 %v119, %v120
    %v122 = vshll.u32 2131351028, %v113
    %v123 = vshrl.u32 2102212464, %v114
    %v124 = vor.u32 %v122, %v123
    %v125 = vshll.u32 2102212464, %v113
    %v126 = vshrl.u32 920167782, %v114
    %v127 = vor.u32 %v125, %v126
    %v128 = vshll.u32 920167782, %v113
    %v129 = vshrl.u32 1326507024, %v114
    %v130 = vor.u32 %v128, %v129
    %vm131 = vcmp.lt.s32.totalorder %v112, 1
    %vm132 = vcmp.lt.s32.totalorder %v112, 2
    %vm133 = vcmp.lt.s32.totalorder %v112, 3
    %vm134 = vcmp.lt.s32.totalorder %v112, 4
    %v135 = vsel %vm131, %v115, %v118
    %v136 = vsel %vm134, %v124, 2102212464
    %v137 = vsel %vm133, %v121, %v136
    %v138 = vsel %vm132, %v135, %v137
    %v139 = vsel %vm131, %v118, %v121
    %v140 = vsel %vm134, %v127, 920167782
    %v141 = vsel %vm133, %v124, %v140
    %v142 = vsel %vm132, %v139, %v141
    %v143 = vsel %vm131, %v121, %v124
    %v144 = vsel %vm134, %v130, 1326507024
    %v145 = vsel %vm133, %v127, %v144
    %v146 = vsel %vm132, %v143, %v145
    %v147 = vshll.u32 %v107, 8
    %v148 = vmul.u32.u64.compose %v147, %v146
    %v149 = vextract.low.u32 %v148
    %v150 = vextract.high.u32 %v148
    %v151 = vmul.u32.u64.compose %v147, %v142
    %v152 = vextract.low.u32 %v151
    %v153 = vextract.high.u32 %v151
    %v154 = vmul.u32 %v147, %v138
    %v155 = vadd.s32 %v150, %v152
    %vm156 = vc.u32 %v150, %v152
    %v157 = vadd.s32 %v153, 1
    %v158 = vsel %vm156, %v157, %v153
    %v159 = vadd.s32 %v154, %v158
    %v160 = vadd.s32 %v159, 536870912
    %v161 = vshrl.u32 %v160, 30
    %v162 = vshll.u32 %v161, 30
    %v163 = vsub.s32 %v159, %v162
    %vm164 = vcmp.lt.s32.totalorder %v163, 0
    %v165 = vsub.s32 0, %v163
    %v166 = vsel %vm164, %v165, %v163
    %v167 = vclz %v166
    %v168 = vsub.s32 %v167, 2
    %vm169 = vcmp.gt.s32.totalorder 0, %v168
    %v170 = vsel %vm169, 0, %v168
    %v171 = vsub.s32 32, %v170
    %v172 = vshll.u32 %v163, %v170
    %v173 = vshrl.u32 %v155, %v171
    %v174 = vor.u32 %v172, %v173
    %v175 = vsub.s32 4294967266, %v170
    %v176 = vadd.s32 %v175, 127
    %v177 = vshll.u32 %v176, 23
    %v178 = vor.u32 4788187, %v177
    %v179 = vand.u32 2147483647, %v178
    %v181 = vcvt.s32.f32 %v174
    %v182 = vmul.f32 %v181, %v179
    %v183 = vxor.u32 %v182, 2147483648
    %v184 = vsel %vm101, %v183, %v182
    %v185 = vsub.s32 4, %v161
    %v186 = vsel %vm101, %v185, %v161
    %v187 = vsel %vm100, %v69, %v184
    %v188 = vsel %vm100, 0, %v186
    %v189 = vcosq.f32.pop %v187
    %v190 = vsinq.f32.pop %v187
    %vm191 = vweird.f32 %v69
    %v192 = vand.u32 %v188, 3
    %vm193 = vcmp.lt.s32.totalorder %v192, 2
    %vm194 = vcmp.eq.s32.totalorder %v192, 0
    %v195 = vxor.u32 %v190, 2147483648
    %v196 = vsel %vm194, %v189, %v195
    %vm197 = vcmp.eq.s32.totalorder %v192, 2
    %v198 = vxor.u32 %v189, 2147483648
    %v199 = vsel %vm197, %v198, %v190
    %v200 = vsel %vm193, %v196, %v199
    %v201 = vsel %vm191, nan, %v200
    %v202 = vand.u32 2147483647, %v76
    %vm203 = vcmp.le.f32.partialorder %v202, 0.7853982
    %vm204 = vcmp.lt.s32.totalorder %v76, 0
    %v205 = vand.u32 %v76, 2139095040
    %v206 = vshrl.u32 %v205, 23
    %v207 = vsub.s32 %v206, 127
    %v208 = vand.u32 2147483647, %v76
    %v209 = vand.u32 %v208, 8388607
    %v210 = vor.u32 %v209, 8388608
    %v211 = vsub.s32 0, %v210
    %v212 = vadd.s32 %v207, 1
    %vm213 = vcmp.gt.s32.totalorder %v212, 0
    %v214 = vsel %vm213, %v212, 0
    %v215 = vshrl.u32 %v214, 5
    %v216 = vand.u32 %v214, 31
    %v217 = vsub.s32 32, %v216
    %v218 = vshrl.u32 683565275, %v217
    %v219 = vshll.u32 683565275, %v216
    %v220 = vshrl.u32 2475754826, %v217
    %v221 = vor.u32 %v219, %v220
    %v222 = vshll.u32 2475754826, %v216
    %v223 = vshrl.u32 2131351028, %v217
    %v224 = vor.u32 %v222, %v223
    %v225 = vshll.u32 2131351028, %v216
    %v226 = vshrl.u32 2102212464, %v217
    %v227 = vor.u32 %v225, %v226
    %v228 = vshll.u32 2102212464, %v216
    %v229 = vshrl.u32 920167782, %v217
    %v230 = vor.u32 %v228, %v229
    %v231 = vshll.u32 920167782, %v216
    %v232 = vshrl.u32 1326507024, %v217
    %v233 = vor.u32 %v231, %v232
    %vm234 = vcmp.lt.s32.totalorder %v215, 1
    %vm235 = vcmp.lt.s32.totalorder %v215, 2
    %vm236 = vcmp.lt.s32.totalorder %v215, 3
    %vm237 = vcmp.lt.s32.totalorder %v215, 4
    %v238 = vsel %vm234, %v218, %v221
    %v239 = vsel %vm237, %v227, 2102212464
    %v240 = vsel %vm236, %v224, %v239
    %v241 = vsel %vm235, %v238, %v240
    %v242 = vsel %vm234, %v221, %v224
    %v243 = vsel %vm237, %v230, 920167782
    %v244 = vsel %vm236, %v227, %v243
    %v245 = vsel %vm235, %v242, %v244
    %v246 = vsel %vm234, %v224, %v227
    %v247 = vsel %vm237, %v233, 1326507024
    %v248 = vsel %vm236, %v230, %v247
    %v249 = vsel %vm235, %v246, %v248
    %v250 = vshll.u32 %v210, 8
    %v251 = vmul.u32.u64.compose %v250, %v249
    %v252 = vextract.low.u32 %v251
    %v253 = vextract.high.u32 %v251
    %v254 = vmul.u32.u64.compose %v250, %v245
    %v255 = vextract.low.u32 %v254
    %v256 = vextract.high.u32 %v254
    %v257 = vmul.u32 %v250, %v241
    %v258 = vadd.s32 %v253, %v255
    %vm259 = vc.u32 %v253, %v255
    %v260 = vadd.s32 %v256, 1
    %v261 = vsel %vm259, %v260, %v256
    %v262 = vadd.s32 %v257, %v261
    %v263 = vadd.s32 %v262, 536870912
    %v264 = vshrl.u32 %v263, 30
    %v265 = vshll.u32 %v264, 30
    %v266 = vsub.s32 %v262, %v265
    %vm267 = vcmp.lt.s32.totalorder %v266, 0
    %v268 = vsub.s32 0, %v266
    %v269 = vsel %vm267, %v268, %v266
    %v270 = vclz %v269
    %v271 = vsub.s32 %v270, 2
    %vm272 = vcmp.gt.s32.totalorder 0, %v271
    %v273 = vsel %vm272, 0, %v271
    %v274 = vsub.s32 32, %v273
    %v275 = vshll.u32 %v266, %v273
    %v276 = vshrl.u32 %v258, %v274
    %v277 = vor.u32 %v275, %v276
    %v278 = vsub.s32 4294967266, %v273
    %v279 = vadd.s32 %v278, 127
    %v280 = vshll.u32 %v279, 23
    %v281 = vor.u32 4788187, %v280
    %v282 = vand.u32 2147483647, %v281
    %v284 = vcvt.s32.f32 %v277
    %v285 = vmul.f32 %v284, %v282
    %v286 = vxor.u32 %v285, 2147483648
    %v287 = vsel %vm204, %v286, %v285
    %v288 = vsub.s32 4, %v264
    %v289 = vsel %vm204, %v288, %v264
    %v290 = vsel %vm203, %v76, %v287
    %v291 = vsel %vm203, 0, %v289
    %v292 = vcosq.f32.pop %v290
    %v293 = vsinq.f32.pop %v290
    %vm294 = vweird.f32 %v76
    %v295 = vand.u32 %v291, 3
    %vm296 = vcmp.lt.s32.totalorder %v295, 2
    %vm297 = vcmp.eq.s32.totalorder %v295, 0
    %v298 = vxor.u32 %v293, 2147483648
    %v299 = vsel %vm297, %v292, %v298
    %vm300 = vcmp.eq.s32.totalorder %v295, 2
    %v301 = vxor.u32 %v292, 2147483648
    %v302 = vsel %vm300, %v301, %v293
    %v303 = vsel %vm296, %v299, %v302
    %v304 = vsel %vm294, nan, %v303
    %v305 = vand.u32 2147483647, %v83
    %vm306 = vcmp.le.f32.partialorder %v305, 0.7853982
    %vm307 = vcmp.lt.s32.totalorder %v83, 0
    %v308 = vand.u32 %v83, 2139095040
    %v309 = vshrl.u32 %v308, 23
    %v310 = vsub.s32 %v309, 127
    %v311 = vand.u32 2147483647, %v83
    %v312 = vand.u32 %v311, 8388607
    %v313 = vor.u32 %v312, 8388608
    %v314 = vsub.s32 0, %v313
    %v315 = vadd.s32 %v310, 1
    %vm316 = vcmp.gt.s32.totalorder %v315, 0
    %v317 = vsel %vm316, %v315, 0
    %v318 = vshrl.u32 %v317, 5
    %v319 = vand.u32 %v317, 31
    %v320 = vsub.s32 32, %v319
    %v321 = vshrl.u32 683565275, %v320
    %v322 = vshll.u32 683565275, %v319
    %v323 = vshrl.u32 2475754826, %v320
    %v324 = vor.u32 %v322, %v323
    %v325 = vshll.u32 2475754826, %v319
    %v326 = vshrl.u32 2131351028, %v320
    %v327 = vor.u32 %v325, %v326
    %v328 = vshll.u32 2131351028, %v319
    %v329 = vshrl.u32 2102212464, %v320
    %v330 = vor.u32 %v328, %v329
    %v331 = vshll.u32 2102212464, %v319
    %v332 = vshrl.u32 920167782, %v320
    %v333 = vor.u32 %v331, %v332
    %v334 = vshll.u32 920167782, %v319
    %v335 = vshrl.u32 1326507024, %v320
    %v336 = vor.u32 %v334, %v335
    %vm337 = vcmp.lt.s32.totalorder %v318, 1
    %vm338 = vcmp.lt.s32.totalorder %v318, 2
    %vm339 = vcmp.lt.s32.totalorder %v318, 3
    %vm340 = vcmp.lt.s32.totalorder %v318, 4
    %v341 = vsel %vm337, %v321, %v324
    %v342 = vsel %vm340, %v330, 2102212464
    %v343 = vsel %vm339, %v327, %v342
    %v344 = vsel %vm338, %v341, %v343
    %v345 = vsel %vm337, %v324, %v327
    %v346 = vsel %vm340, %v333, 920167782
    %v347 = vsel %vm339, %v330, %v346
    %v348 = vsel %vm338, %v345, %v347
    %v349 = vsel %vm337, %v327, %v330
    %v350 = vsel %vm340, %v336, 1326507024
    %v351 = vsel %vm339, %v333, %v350
    %v352 = vsel %vm338, %v349, %v351
    %v353 = vshll.u32 %v313, 8
    %v354 = vmul.u32.u64.compose %v353, %v352
    %v355 = vextract.low.u32 %v354
    %v356 = vextract.high.u32 %v354
    %v357 = vmul.u32.u64.compose %v353, %v348
    %v358 = vextract.low.u32 %v357
    %v359 = vextract.high.u32 %v357
    %v360 = vmul.u32 %v353, %v344
    %v361 = vadd.s32 %v356, %v358
    %vm362 = vc.u32 %v356, %v358
    %v363 = vadd.s32 %v359, 1
    %v364 = vsel %vm362, %v363, %v359
    %v365 = vadd.s32 %v360, %v364
    %v366 = vadd.s32 %v365, 536870912
    %v367 = vshrl.u32 %v366, 30
    %v368 = vshll.u32 %v367, 30
    %v369 = vsub.s32 %v365, %v368
    %vm370 = vcmp.lt.s32.totalorder %v369, 0
    %v371 = vsub.s32 0, %v369
    %v372 = vsel %vm370, %v371, %v369
    %v373 = vclz %v372
    %v374 = vsub.s32 %v373, 2
    %vm375 = vcmp.gt.s32.totalorder 0, %v374
    %v376 = vsel %vm375, 0, %v374
    %v377 = vsub.s32 32, %v376
    %v378 = vshll.u32 %v369, %v376
    %v379 = vshrl.u32 %v361, %v377
    %v380 = vor.u32 %v378, %v379
    %v381 = vsub.s32 4294967266, %v376
    %v382 = vadd.s32 %v381, 127
    %v383 = vshll.u32 %v382, 23
    %v384 = vor.u32 4788187, %v383
    %v385 = vand.u32 2147483647, %v384
    %v387 = vcvt.s32.f32 %v380
    %v388 = vmul.f32 %v387, %v385
    %v389 = vxor.u32 %v388, 2147483648
    %v390 = vsel %vm307, %v389, %v388
    %v391 = vsub.s32 4, %v367
    %v392 = vsel %vm307, %v391, %v367
    %v393 = vsel %vm306, %v83, %v390
    %v394 = vsel %vm306, 0, %v392
    %v395 = vcosq.f32.pop %v393
    %v396 = vsinq.f32.pop %v393
    %vm397 = vweird.f32 %v83
    %v398 = vand.u32 %v394, 3
    %vm399 = vcmp.lt.s32.totalorder %v398, 2
    %vm400 = vcmp.eq.s32.totalorder %v398, 0
    %v401 = vxor.u32 %v396, 2147483648
    %v402 = vsel %vm400, %v395, %v401
    %vm403 = vcmp.eq.s32.totalorder %v398, 2
    %v404 = vxor.u32 %v395, 2147483648
    %v405 = vsel %vm403, %v404, %v396
    %v406 = vsel %vm399, %v402, %v405
    %v407 = vsel %vm397, nan, %v406
    %v408 = vand.u32 2147483647, %v69
    %vm409 = vcmp.le.f32.partialorder %v408, 0.7853982
    %vm410 = vcmp.lt.s32.totalorder %v69, 0
    %v411 = vand.u32 %v69, 2139095040
    %v412 = vshrl.u32 %v411, 23
    %v413 = vsub.s32 %v412, 127
    %v414 = vand.u32 2147483647, %v69
    %v415 = vand.u32 %v414, 8388607
    %v416 = vor.u32 %v415, 8388608
    %v417 = vsub.s32 0, %v416
    %v418 = vadd.s32 %v413, 1
    %vm419 = vcmp.gt.s32.totalorder %v418, 0
    %v420 = vsel %vm419, %v418, 0
    %v421 = vshrl.u32 %v420, 5
    %v422 = vand.u32 %v420, 31
    %v423 = vsub.s32 32, %v422
    %v424 = vshrl.u32 683565275, %v423
    %v425 = vshll.u32 683565275, %v422
    %v426 = vshrl.u32 2475754826, %v423
    %v427 = vor.u32 %v425, %v426
    %v428 = vshll.u32 2475754826, %v422
    %v429 = vshrl.u32 2131351028, %v423
    %v430 = vor.u32 %v428, %v429
    %v431 = vshll.u32 2131351028, %v422
    %v432 = vshrl.u32 2102212464, %v423
    %v433 = vor.u32 %v431, %v432
    %v434 = vshll.u32 2102212464, %v422
    %v435 = vshrl.u32 920167782, %v423
    %v436 = vor.u32 %v434, %v435
    %v437 = vshll.u32 920167782, %v422
    %v438 = vshrl.u32 1326507024, %v423
    %v439 = vor.u32 %v437, %v438
    %vm440 = vcmp.lt.s32.totalorder %v421, 1
    %vm441 = vcmp.lt.s32.totalorder %v421, 2
    %vm442 = vcmp.lt.s32.totalorder %v421, 3
    %vm443 = vcmp.lt.s32.totalorder %v421, 4
    %v444 = vsel %vm440, %v424, %v427
    %v445 = vsel %vm443, %v433, 2102212464
    %v446 = vsel %vm442, %v430, %v445
    %v447 = vsel %vm441, %v444, %v446
    %v448 = vsel %vm440, %v427, %v430
    %v449 = vsel %vm443, %v436, 920167782
    %v450 = vsel %vm442, %v433, %v449
    %v451 = vsel %vm441, %v448, %v450
    %v452 = vsel %vm440, %v430, %v433
    %v453 = vsel %vm443, %v439, 1326507024
    %v454 = vsel %vm442, %v436, %v453
    %v455 = vsel %vm441, %v452, %v454
    %v456 = vshll.u32 %v416, 8
    %v457 = vmul.u32.u64.compose %v456, %v455
    %v458 = vextract.low.u32 %v457
    %v459 = vextract.high.u32 %v457
    %v460 = vmul.u32.u64.compose %v456, %v451
    %v461 = vextract.low.u32 %v460
    %v462 = vextract.high.u32 %v460
    %v463 = vmul.u32 %v456, %v447
    %v464 = vadd.s32 %v459, %v461
    %vm465 = vc.u32 %v459, %v461
    %v466 = vadd.s32 %v462, 1
    %v467 = vsel %vm465, %v466, %v462
    %v468 = vadd.s32 %v463, %v467
    %v469 = vadd.s32 %v468, 536870912
    %v470 = vshrl.u32 %v469, 30
    %v471 = vshll.u32 %v470, 30
    %v472 = vsub.s32 %v468, %v471
    %vm473 = vcmp.lt.s32.totalorder %v472, 0
    %v474 = vsub.s32 0, %v472
    %v475 = vsel %vm473, %v474, %v472
    %v476 = vclz %v475
    %v477 = vsub.s32 %v476, 2
    %vm478 = vcmp.gt.s32.totalorder 0, %v477
    %v479 = vsel %vm478, 0, %v477
    %v480 = vsub.s32 32, %v479
    %v481 = vshll.u32 %v472, %v479
    %v482 = vshrl.u32 %v464, %v480
    %v483 = vor.u32 %v481, %v482
    %v484 = vsub.s32 4294967266, %v479
    %v485 = vadd.s32 %v484, 127
    %v486 = vshll.u32 %v485, 23
    %v487 = vor.u32 4788187, %v486
    %v488 = vand.u32 2147483647, %v487
    %v490 = vcvt.s32.f32 %v483
    %v491 = vmul.f32 %v490, %v488
    %v492 = vxor.u32 %v491, 2147483648
    %v493 = vsel %vm410, %v492, %v491
    %v494 = vsub.s32 4, %v470
    %v495 = vsel %vm410, %v494, %v470
    %v496 = vsel %vm409, %v69, %v493
    %v497 = vsel %vm409, 0, %v495
    %v498 = vcosq.f32.pop %v496
    %v499 = vsinq.f32.pop %v496
    %vm500 = vweird.f32 %v69
    %v501 = vadd.s32 %v497, 3
    %v502 = vand.u32 %v501, 3
    %vm503 = vcmp.lt.s32.totalorder %v502, 2
    %vm504 = vcmp.eq.s32.totalorder %v502, 0
    %v505 = vxor.u32 %v499, 2147483648
    %v506 = vsel %vm504, %v498, %v505
    %vm507 = vcmp.eq.s32.totalorder %v502, 2
    %v508 = vxor.u32 %v498, 2147483648
    %v509 = vsel %vm507, %v508, %v499
    %v510 = vsel %vm503, %v506, %v509
    %v511 = vsel %vm500, nan, %v510
    %v512 = vand.u32 2147483647, %v76
    %vm513 = vcmp.le.f32.partialorder %v512, 0.7853982
    %vm514 = vcmp.lt.s32.totalorder %v76, 0
    %v515 = vand.u32 %v76, 2139095040
    %v516 = vshrl.u32 %v515, 23
    %v517 = vsub.s32 %v516, 127
    %v518 = vand.u32 2147483647, %v76
    %v519 = vand.u32 %v518, 8388607
    %v520 = vor.u32 %v519, 8388608
    %v521 = vsub.s32 0, %v520
    %v522 = vadd.s32 %v517, 1
    %vm523 = vcmp.gt.s32.totalorder %v522, 0
    %v524 = vsel %vm523, %v522, 0
    %v525 = vshrl.u32 %v524, 5
    %v526 = vand.u32 %v524, 31
    %v527 = vsub.s32 32, %v526
    %v528 = vshrl.u32 683565275, %v527
    %v529 = vshll.u32 683565275, %v526
    %v530 = vshrl.u32 2475754826, %v527
    %v531 = vor.u32 %v529, %v530
    %v532 = vshll.u32 2475754826, %v526
    %v533 = vshrl.u32 2131351028, %v527
    %v534 = vor.u32 %v532, %v533
    %v535 = vshll.u32 2131351028, %v526
    %v536 = vshrl.u32 2102212464, %v527
    %v537 = vor.u32 %v535, %v536
    %v538 = vshll.u32 2102212464, %v526
    %v539 = vshrl.u32 920167782, %v527
    %v540 = vor.u32 %v538, %v539
    %v541 = vshll.u32 920167782, %v526
    %v542 = vshrl.u32 1326507024, %v527
    %v543 = vor.u32 %v541, %v542
    %vm544 = vcmp.lt.s32.totalorder %v525, 1
    %vm545 = vcmp.lt.s32.totalorder %v525, 2
    %vm546 = vcmp.lt.s32.totalorder %v525, 3
    %vm547 = vcmp.lt.s32.totalorder %v525, 4
    %v548 = vsel %vm544, %v528, %v531
    %v549 = vsel %vm547, %v537, 2102212464
    %v550 = vsel %vm546, %v534, %v549
    %v551 = vsel %vm545, %v548, %v550
    %v552 = vsel %vm544, %v531, %v534
    %v553 = vsel %vm547, %v540, 920167782
    %v554 = vsel %vm546, %v537, %v553
    %v555 = vsel %vm545, %v552, %v554
    %v556 = vsel %vm544, %v534, %v537
    %v557 = vsel %vm547, %v543, 1326507024
    %v558 = vsel %vm546, %v540, %v557
    %v559 = vsel %vm545, %v556, %v558
    %v560 = vshll.u32 %v520, 8
    %v561 = vmul.u32.u64.compose %v560, %v559
    %v562 = vextract.low.u32 %v561
    %v563 = vextract.high.u32 %v561
    %v564 = vmul.u32.u64.compose %v560, %v555
    %v565 = vextract.low.u32 %v564
    %v566 = vextract.high.u32 %v564
    %v567 = vmul.u32 %v560, %v551
    %v568 = vadd.s32 %v563, %v565
    %vm569 = vc.u32 %v563, %v565
    %v570 = vadd.s32 %v566, 1
    %v571 = vsel %vm569, %v570, %v566
    %v572 = vadd.s32 %v567, %v571
    %v573 = vadd.s32 %v572, 536870912
    %v574 = vshrl.u32 %v573, 30
    %v575 = vshll.u32 %v574, 30
    %v576 = vsub.s32 %v572, %v575
    %vm577 = vcmp.lt.s32.totalorder %v576, 0
    %v578 = vsub.s32 0, %v576
    %v579 = vsel %vm577, %v578, %v576
    %v580 = vclz %v579
    %v581 = vsub.s32 %v580, 2
    %vm582 = vcmp.gt.s32.totalorder 0, %v581
    %v583 = vsel %vm582, 0, %v581
    %v584 = vsub.s32 32, %v583
    %v585 = vshll.u32 %v576, %v583
    %v586 = vshrl.u32 %v568, %v584
    %v587 = vor.u32 %v585, %v586
    %v588 = vsub.s32 4294967266, %v583
    %v589 = vadd.s32 %v588, 127
    %v590 = vshll.u32 %v589, 23
    %v591 = vor.u32 4788187, %v590
    %v592 = vand.u32 2147483647, %v591
    %v594 = vcvt.s32.f32 %v587
    %v595 = vmul.f32 %v594, %v592
    %v596 = vxor.u32 %v595, 2147483648
    %v597 = vsel %vm514, %v596, %v595
    %v598 = vsub.s32 4, %v574
    %v599 = vsel %vm514, %v598, %v574
    %v600 = vsel %vm513, %v76, %v597
    %v601 = vsel %vm513, 0, %v599
    %v602 = vcosq.f32.pop %v600
    %v603 = vsinq.f32.pop %v600
    %vm604 = vweird.f32 %v76
    %v605 = vadd.s32 %v601, 3
    %v606 = vand.u32 %v605, 3
    %vm607 = vcmp.lt.s32.totalorder %v606, 2
    %vm608 = vcmp.eq.s32.totalorder %v606, 0
    %v609 = vxor.u32 %v603, 2147483648
    %v610 = vsel %vm608, %v602, %v609
    %vm611 = vcmp.eq.s32.totalorder %v606, 2
    %v612 = vxor.u32 %v602, 2147483648
    %v613 = vsel %vm611, %v612, %v603
    %v614 = vsel %vm607, %v610, %v613
    %v615 = vsel %vm604, nan, %v614
    %v616 = vand.u32 2147483647, %v83
    %vm617 = vcmp.le.f32.partialorder %v616, 0.7853982
    %vm618 = vcmp.lt.s32.totalorder %v83, 0
    %v619 = vand.u32 %v83, 2139095040
    %v620 = vshrl.u32 %v619, 23
    %v621 = vsub.s32 %v620, 127
    %v622 = vand.u32 2147483647, %v83
    %v623 = vand.u32 %v622, 8388607
    %v624 = vor.u32 %v623, 8388608
    %v625 = vsub.s32 0, %v624
    %v626 = vadd.s32 %v621, 1
    %vm627 = vcmp.gt.s32.totalorder %v626, 0
    %v628 = vsel %vm627, %v626, 0
    %v629 = vshrl.u32 %v628, 5
    %v630 = vand.u32 %v628, 31
    %v631 = vsub.s32 32, %v630
    %v632 = vshrl.u32 683565275, %v631
    %v633 = vshll.u32 683565275, %v630
    %v634 = vshrl.u32 2475754826, %v631
    %v635 = vor.u32 %v633, %v634
    %v636 = vshll.u32 2475754826, %v630
    %v637 = vshrl.u32 2131351028, %v631
    %v638 = vor.u32 %v636, %v637
    %v639 = vshll.u32 2131351028, %v630
    %v640 = vshrl.u32 2102212464, %v631
    %v641 = vor.u32 %v639, %v640
    %v642 = vshll.u32 2102212464, %v630
    %v643 = vshrl.u32 920167782, %v631
    %v644 = vor.u32 %v642, %v643
    %v645 = vshll.u32 920167782, %v630
    %v646 = vshrl.u32 1326507024, %v631
    %v647 = vor.u32 %v645, %v646
    %vm648 = vcmp.lt.s32.totalorder %v629, 1
    %vm649 = vcmp.lt.s32.totalorder %v629, 2
    %vm650 = vcmp.lt.s32.totalorder %v629, 3
    %vm651 = vcmp.lt.s32.totalorder %v629, 4
    %v652 = vsel %vm648, %v632, %v635
    %v653 = vsel %vm651, %v641, 2102212464
    %v654 = vsel %vm650, %v638, %v653
    %v655 = vsel %vm649, %v652, %v654
    %v656 = vsel %vm648, %v635, %v638
    %v657 = vsel %vm651, %v644, 920167782
    %v658 = vsel %vm650, %v641, %v657
    %v659 = vsel %vm649, %v656, %v658
    %v660 = vsel %vm648, %v638, %v641
    %v661 = vsel %vm651, %v647, 1326507024
    %v662 = vsel %vm650, %v644, %v661
    %v663 = vsel %vm649, %v660, %v662
    %v664 = vshll.u32 %v624, 8
    %v665 = vmul.u32.u64.compose %v664, %v663
    %v666 = vextract.low.u32 %v665
    %v667 = vextract.high.u32 %v665
    %v668 = vmul.u32.u64.compose %v664, %v659
    %v669 = vextract.low.u32 %v668
    %v670 = vextract.high.u32 %v668
    %v671 = vmul.u32 %v664, %v655
    %v672 = vadd.s32 %v667, %v669
    %vm673 = vc.u32 %v667, %v669
    %v674 = vadd.s32 %v670, 1
    %v675 = vsel %vm673, %v674, %v670
    %v676 = vadd.s32 %v671, %v675
    %v677 = vadd.s32 %v676, 536870912
    %v678 = vshrl.u32 %v677, 30
    %v679 = vshll.u32 %v678, 30
    %v680 = vsub.s32 %v676, %v679
    %vm681 = vcmp.lt.s32.totalorder %v680, 0
    %v682 = vsub.s32 0, %v680
    %v683 = vsel %vm681, %v682, %v680
    %v684 = vclz %v683
    %v685 = vsub.s32 %v684, 2
    %vm686 = vcmp.gt.s32.totalorder 0, %v685
    %v687 = vsel %vm686, 0, %v685
    %v688 = vsub.s32 32, %v687
    %v689 = vshll.u32 %v680, %v687
    %v690 = vshrl.u32 %v672, %v688
    %v691 = vor.u32 %v689, %v690
    %v692 = vsub.s32 4294967266, %v687
    %v693 = vadd.s32 %v692, 127
    %v694 = vshll.u32 %v693, 23
    %v695 = vor.u32 4788187, %v694
    %v696 = vand.u32 2147483647, %v695
    %v698 = vcvt.s32.f32 %v691
    %v699 = vmul.f32 %v698, %v696
    %v700 = vxor.u32 %v699, 2147483648
    %v701 = vsel %vm618, %v700, %v699
    %v702 = vsub.s32 4, %v678
    %v703 = vsel %vm618, %v702, %v678
    %v704 = vsel %vm617, %v83, %v701
    %v705 = vsel %vm617, 0, %v703
    %v706 = vcosq.f32.pop %v704
    %v707 = vsinq.f32.pop %v704
    %vm708 = vweird.f32 %v83
    %v709 = vadd.s32 %v705, 3
    %v710 = vand.u32 %v709, 3
    %vm711 = vcmp.lt.s32.totalorder %v710, 2
    %vm712 = vcmp.eq.s32.totalorder %v710, 0
    %v713 = vxor.u32 %v707, 2147483648
    %v714 = vsel %vm712, %v706, %v713
    %vm715 = vcmp.eq.s32.totalorder %v710, 2
    %v716 = vxor.u32 %v706, 2147483648
    %v717 = vsel %vm715, %v716, %v707
    %v718 = vsel %vm711, %v714, %v717
    %v719 = vsel %vm708, nan, %v718
    %v720 = vsub.f32 1.0, %v201
    %v721 = vsub.f32 1.0, %v304
    %v722 = vsub.f32 1.0, %v407
    %v723 = vmul.f32 %v90, %v90
    %v724 = vmul.f32 %v91, %v91
    %v725 = vmul.f32 %v92, %v92
    %v726 = vmul.f32 %v723, %v720
    %v727 = vmul.f32 %v724, %v721
    %v728 = vmul.f32 %v725, %v722
    %v729 = vadd.f32 %v201, %v726
    %v730 = vadd.f32 %v304, %v727
    %v731 = vadd.f32 %v407, %v728
    %v732 = vmul.f32 %v90, %v93
    %v733 = vmul.f32 %v91, %v94
    %v734 = vmul.f32 %v92, %v95
    %v735 = vmul.f32 %v732, %v720
    %v736 = vmul.f32 %v733, %v721
    %v737 = vmul.f32 %v734, %v722
    %v738 = vmul.f32 %v96, %v511
    %v739 = vmul.f32 %v97, %v615
    %v740 = vmul.f32 %v98, %v719
    %v741 = vsub.f32 %v735, %v738
    %v742 = vsub.f32 %v736, %v739
    %v743 = vsub.f32 %v737, %v740
    %v744 = vmul.f32 %v90, %v96
    %v745 = vmul.f32 %v91, %v97
    %v746 = vmul.f32 %v92, %v98
    %v747 = vmul.f32 %v744, %v720
    %v748 = vmul.f32 %v745, %v721
    %v749 = vmul.f32 %v746, %v722
    %v750 = vmul.f32 %v93, %v511
    %v751 = vmul.f32 %v94, %v615
    %v752 = vmul.f32 %v95, %v719
    %v753 = vadd.f32 %v747, %v750
    %v754 = vadd.f32 %v748, %v751
    %v755 = vadd.f32 %v749, %v752
    %v756 = vadd.f32 %v735, %v738
    %v757 = vadd.f32 %v736, %v739
    %v758 = vadd.f32 %v737, %v740
    %v759 = vmul.f32 %v93, %v93
    %v760 = vmul.f32 %v94, %v94
    %v761 = vmul.f32 %v95, %v95
    %v762 = vmul.f32 %v759, %v720
    %v763 = vmul.f32 %v760, %v721
    %v764 = vmul.f32 %v761, %v722
    %v765 = vadd.f32 %v201, %v762
    %v766 = vadd.f32 %v304, %v763
    %v767 = vadd.f32 %v407, %v764
    %v768 = vmul.f32 %v93, %v96
    %v769 = vmul.f32 %v94, %v97
    %v770 = vmul.f32 %v95, %v98
    %v771 = vmul.f32 %v768, %v720
    %v772 = vmul.f32 %v769, %v721
    %v773 = vmul.f32 %v770, %v722
    %v774 = vmul.f32 %v90, %v511
    %v775 = vmul.f32 %v91, %v615
    %v776 = vmul.f32 %v92, %v719
    %v777 = vsub.f32 %v771, %v774
    %v778 = vsub.f32 %v772, %v775
    %v779 = vsub.f32 %v773, %v776
    %v780 = vsub.f32 %v747, %v750
    %v781 = vsub.f32 %v748, %v751
    %v782 = vsub.f32 %v749, %v752
    %v783 = vadd.f32 %v771, %v774
    %v784 = vadd.f32 %v772, %v775
    %v785 = vadd.f32 %v773, %v776
    %v786 = vmul.f32 %v96, %v96
    %v787 = vmul.f32 %v97, %v97
    %v788 = vmul.f32 %v98, %v98
    %v789 = vmul.f32 %v786, %v720
    %v790 = vmul.f32 %v787, %v721
    %v791 = vmul.f32 %v788, %v722
    %v792 = vadd.f32 %v201, %v789
    %v793 = vadd.f32 %v304, %v790
    %v794 = vadd.f32 %v407, %v791
    %795 = vst [vmem:[#allocation5] sm:$0xff] %v729
    %796 = vst [vmem:[#allocation5 + $0x8] sm:$0xff] %v730
    %797 = vst [vmem:[#allocation5 + $0x10] sm:$0xff] %v731
    %798 = vst [vmem:[#allocation5 + $0x18] sm:$0xff] %v741
    %799 = vst [vmem:[#allocation5 + $0x20] sm:$0xff] %v742
    %800 = vst [vmem:[#allocation5 + $0x28] sm:$0xff] %v743
    %801 = vst [vmem:[#allocation5 + $0x30] sm:$0xff] %v753
    %802 = vst [vmem:[#allocation5 + $0x38] sm:$0xff] %v754
    %803 = vst [vmem:[#allocation5 + $0x40] sm:$0xff] %v755
    %804 = vst [vmem:[#allocation5 + $0x48] sm:$0xff] %v756
    %805 = vst [vmem:[#allocation5 + $0x50] sm:$0xff] %v757
    %806 = vst [vmem:[#allocation5 + $0x58] sm:$0xff] %v758
    %807 = vst [vmem:[#allocation5 + $0x60] sm:$0xff] %v765
    %808 = vst [vmem:[#allocation5 + $0x68] sm:$0xff] %v766
    %809 = vst [vmem:[#allocation5 + $0x70] sm:$0xff] %v767
    %810 = vst [vmem:[#allocation5 + $0x78] sm:$0xff] %v777
    %811 = vst [vmem:[#allocation5 + $0x80] sm:$0xff] %v778
    %812 = vst [vmem:[#allocation5 + $0x88] sm:$0xff] %v779
    %813 = vst [vmem:[#allocation5 + $0x90] sm:$0xff] %v780
    %814 = vst [vmem:[#allocation5 + $0x98] sm:$0xff] %v781
    %815 = vst [vmem:[#allocation5 + $0xa0] sm:$0xff] %v782
    %816 = vst [vmem:[#allocation5 + $0xa8] sm:$0xff] %v783
    %817 = vst [vmem:[#allocation5 + $0xb0] sm:$0xff] %v784
    %818 = vst [vmem:[#allocation5 + $0xb8] sm:$0xff] %v785
    %819 = vst [vmem:[#allocation5 + $0xc0] sm:$0xff] %v792
    %820 = vst [vmem:[#allocation5 + $0xc8] sm:$0xff] %v793
    %821 = vst [vmem:[#allocation5 + $0xd0] sm:$0xff] %v794
    %v822 = vlaneseq
    %v823 = vshrl.u32 %v822, 7
    %v824 = vsub.s32 0, %v823
    %v825 = vrot.slane %v729, %v824
    %v826 = vmul.f32 %v825, %v729
    %v827 = vlaneseq
    %v828 = vshrl.u32 %v827, 7
    %v829 = vsub.s32 0, %v828
    %v830 = vrot.slane %v741, %v829
    %v831 = vmul.f32 %v830, %v756
    %v832 = vadd.f32 %v826, %v831
    %v833 = vlaneseq
    %v834 = vshrl.u32 %v833, 7
    %v835 = vsub.s32 0, %v834
    %v836 = vrot.slane %v753, %v835
    %v837 = vmul.f32 %v836, %v780
    %v838 = vadd.f32 %v832, %v837
    %v839 = vmul.f32 %v825, %v741
    %v840 = vmul.f32 %v830, %v765
    %v841 = vadd.f32 %v839, %v840
    %v842 = vmul.f32 %v836, %v783
    %v843 = vadd.f32 %v841, %v842
    %v844 = vmul.f32 %v825, %v753
    %v845 = vmul.f32 %v830, %v777
    %v846 = vadd.f32 %v844, %v845
    %v847 = vmul.f32 %v836, %v792
    %v848 = vadd.f32 %v846, %v847
    %v849 = vlaneseq
    %v850 = vshrl.u32 %v849, 7
    %v851 = vsub.s32 0, %v850
    %v852 = vrot.slane %v756, %v851
    %v853 = vmul.f32 %v852, %v729
    %v854 = vlaneseq
    %v855 = vshrl.u32 %v854, 7
    %v856 = vsub.s32 0, %v855
    %v857 = vrot.slane %v765, %v856
    %v858 = vmul.f32 %v857, %v756
    %v859 = vadd.f32 %v853, %v858
    %v860 = vlaneseq
    %v861 = vshrl.u32 %v860, 7
    %v862 = vsub.s32 0, %v861
    %v863 = vrot.slane %v777, %v862
    %v864 = vmul.f32 %v863, %v780
    %v865 = vadd.f32 %v859, %v864
    %v866 = vmul.f32 %v852, %v741
    %v867 = vmul.f32 %v857, %v765
    %v868 = vadd.f32 %v866, %v867
    %v869 = vmul.f32 %v863, %v783
    %v870 = vadd.f32 %v868, %v869
    %v871 = vmul.f32 %v852, %v753
    %v872 = vmul.f32 %v857, %v777
    %v873 = vadd.f32 %v871, %v872
    %v874 = vmul.f32 %v863, %v792
    %v875 = vadd.f32 %v873, %v874
    %v876 = vlaneseq
    %v877 = vshrl.u32 %v876, 7
    %v878 = vsub.s32 0, %v877
    %v879 = vrot.slane %v780, %v878
    %v880 = vmul.f32 %v879, %v729
    %v881 = vlaneseq
    %v882 = vshrl.u32 %v881, 7
    %v883 = vsub.s32 0, %v882
    %v884 = vrot.slane %v783, %v883
    %v885 = vmul.f32 %v884, %v756
    %v886 = vadd.f32 %v880, %v885
    %v887 = vlaneseq
    %v888 = vshrl.u32 %v887, 7
    %v889 = vsub.s32 0, %v888
    %v890 = vrot.slane %v792, %v889
    %v891 = vmul.f32 %v890, %v780
    %v892 = vadd.f32 %v886, %v891
    %v893 = vmul.f32 %v879, %v741
    %v894 = vmul.f32 %v884, %v765
    %v895 = vadd.f32 %v893, %v894
    %v896 = vmul.f32 %v890, %v783
    %v897 = vadd.f32 %v895, %v896
    %v898 = vmul.f32 %v879, %v753
    %v899 = vmul.f32 %v884, %v777
    %v900 = vadd.f32 %v898, %v899
    %v901 = vmul.f32 %v890, %v792
    %v902 = vadd.f32 %v900, %v901
    %904 = vset.pattern.permute.xlu0 0
    %905 = vperm.xlu0 %904, %v45
    %v906 = vpop.permute.xlu0 %905
    %v908 = vmul.f32 %v825, %v906
    %909 = vset.pattern.permute.xlu0 1
    %910 = vperm.xlu0 %909, %v45
    %v911 = vpop.permute.xlu0 %910
    %v913 = vmul.f32 %v830, %v911
    %v914 = vadd.f32 %v908, %v913
    %915 = vset.pattern.permute.xlu0 2
    %916 = vperm.xlu0 %915, %v45
    %v917 = vpop.permute.xlu0 %916
    %v919 = vmul.f32 %v836, %v917
    %v920 = vadd.f32 %v914, %v919
    %s921 = vtos %v45
    %v922 = vstv %s921
    %v924 = vadd.f32 %v920, %v922
    %v925 = vmul.f32 %v852, %v906
    %v926 = vmul.f32 %v857, %v911
    %v927 = vadd.f32 %v925, %v926
    %v928 = vmul.f32 %v863, %v917
    %v929 = vadd.f32 %v927, %v928
    %930 = vrot.lane.b32.xlu0 %v45, 127
    %v931 = vpop.permute.xlu0 %930
    %s932 = vtos %v931
    %v933 = vstv %s932
    %v935 = vadd.f32 %v929, %v933
    %v936 = vmul.f32 %v879, %v906
    %v937 = vmul.f32 %v884, %v911
    %v938 = vadd.f32 %v936, %v937
    %v939 = vmul.f32 %v890, %v917
    %v940 = vadd.f32 %v938, %v939
    %941 = vrot.lane.b32.xlu0 %v45, 126
    %v942 = vpop.permute.xlu0 %941
    %s943 = vtos %v942
    %v944 = vstv %s943
    %v946 = vadd.f32 %v940, %v944
    %v948 = vrot.slane %v729, 3
    %v950 = vmul.f32 %v838, %v948
    %v952 = vrot.slane %v756, 3
    %v954 = vmul.f32 %v843, %v952
    %v955 = vadd.f32 %v950, %v954
    %v957 = vrot.slane %v780, 3
    %v959 = vmul.f32 %v848, %v957
    %v960 = vadd.f32 %v955, %v959
    %v962 = vrot.slane %v741, 3
    %v964 = vmul.f32 %v838, %v962
    %v966 = vrot.slane %v765, 3
    %v968 = vmul.f32 %v843, %v966
    %v969 = vadd.f32 %v964, %v968
    %v971 = vrot.slane %v783, 3
    %v973 = vmul.f32 %v848, %v971
    %v974 = vadd.f32 %v969, %v973
    %v976 = vrot.slane %v753, 3
    %v978 = vmul.f32 %v838, %v976
    %v980 = vrot.slane %v777, 3
    %v982 = vmul.f32 %v843, %v980
    %v983 = vadd.f32 %v978, %v982
    %v985 = vrot.slane %v792, 3
    %v987 = vmul.f32 %v848, %v985
    %v988 = vadd.f32 %v983, %v987
    %v989 = vmul.f32 %v865, %v948
    %v990 = vmul.f32 %v870, %v952
    %v991 = vadd.f32 %v989, %v990
    %v992 = vmul.f32 %v875, %v957
    %v993 = vadd.f32 %v991, %v992
    %v994 = vmul.f32 %v865, %v962
    %v995 = vmul.f32 %v870, %v966
    %v996 = vadd.f32 %v994, %v995
    %v997 = vmul.f32 %v875, %v971
    %v998 = vadd.f32 %v996, %v997
    %v999 = vmul.f32 %v865, %v976
    %v1000 = vmul.f32 %v870, %v980
    %v1001 = vadd.f32 %v999, %v1000
    %v1002 = vmul.f32 %v875, %v985
    %v1003 = vadd.f32 %v1001, %v1002
    %v1004 = vmul.f32 %v892, %v948
    %v1005 = vmul.f32 %v897, %v952
    %v1006 = vadd.f32 %v1004, %v1005
    %v1007 = vmul.f32 %v902, %v957
    %v1008 = vadd.f32 %v1006, %v1007
    %v1009 = vmul.f32 %v892, %v962
    %v1010 = vmul.f32 %v897, %v966
    %v1011 = vadd.f32 %v1009, %v1010
    %v1012 = vmul.f32 %v902, %v971
    %v1013 = vadd.f32 %v1011, %v1012
    %v1014 = vmul.f32 %v892, %v976
    %v1015 = vmul.f32 %v897, %v980
    %v1016 = vadd.f32 %v1014, %v1015
    %v1017 = vmul.f32 %v902, %v985
    %v1018 = vadd.f32 %v1016, %v1017
    %v1019 = vrot.slane %v906, 3
    %v1021 = vmul.f32 %v838, %v1019
    %v1022 = vrot.slane %v911, 3
    %v1024 = vmul.f32 %v843, %v1022
    %v1025 = vadd.f32 %v1021, %v1024
    %v1026 = vrot.slane %v917, 3
    %v1028 = vmul.f32 %v848, %v1026
    %v1029 = vadd.f32 %v1025, %v1028
    %v1030 = vadd.f32 %v1029, %v924
    %v1031 = vmul.f32 %v865, %v1019
    %v1032 = vmul.f32 %v870, %v1022
    %v1033 = vadd.f32 %v1031, %v1032
    %v1034 = vmul.f32 %v875, %v1026
    %v1035 = vadd.f32 %v1033, %v1034
    %v1036 = vadd.f32 %v1035, %v935
    %v1037 = vmul.f32 %v892, %v1019
    %v1038 = vmul.f32 %v897, %v1022
    %v1039 = vadd.f32 %v1037, %v1038
    %v1040 = vmul.f32 %v902, %v1026
    %v1041 = vadd.f32 %v1039, %v1040
    %v1042 = vadd.f32 %v1041, %v946
    %vm1044 = vcmask 1041408
    %v1045 = vrot.slane %v729, 6
    %v1046 = vrot.slane %v730, 6
    %v1047 = vsel %vm1044, %v1045, %v1046
    %v1049 = vmul.f32 %v960, %v1047
    %v1051 = vrot.slane %v756, 6
    %v1052 = vrot.slane %v757, 6
    %v1053 = vsel %vm1044, %v1051, %v1052
    %v1055 = vmul.f32 %v974, %v1053
    %v1056 = vadd.f32 %v1049, %v1055
    %v1058 = vrot.slane %v780, 6
    %v1059 = vrot.slane %v781, 6
    %v1060 = vsel %vm1044, %v1058, %v1059
    %v1062 = vmul.f32 %v988, %v1060
    %v1063 = vadd.f32 %v1056, %v1062
    %v1065 = vrot.slane %v741, 6
    %v1066 = vrot.slane %v742, 6
    %v1067 = vsel %vm1044, %v1065, %v1066
    %v1069 = vmul.f32 %v960, %v1067
    %v1071 = vrot.slane %v765, 6
    %v1072 = vrot.slane %v766, 6
    %v1073 = vsel %vm1044, %v1071, %v1072
    %v1075 = vmul.f32 %v974, %v1073
    %v1076 = vadd.f32 %v1069, %v1075
    %v1078 = vrot.slane %v783, 6
    %v1079 = vrot.slane %v784, 6
    %v1080 = vsel %vm1044, %v1078, %v1079
    %v1082 = vmul.f32 %v988, %v1080
    %v1083 = vadd.f32 %v1076, %v1082
    %v1085 = vrot.slane %v753, 6
    %v1086 = vrot.slane %v754, 6
    %v1087 = vsel %vm1044, %v1085, %v1086
    %v1089 = vmul.f32 %v960, %v1087
    %v1091 = vrot.slane %v777, 6
    %v1092 = vrot.slane %v778, 6
    %v1093 = vsel %vm1044, %v1091, %v1092
    %v1095 = vmul.f32 %v974, %v1093
    %v1096 = vadd.f32 %v1089, %v1095
    %v1098 = vrot.slane %v792, 6
    %v1099 = vrot.slane %v793, 6
    %v1100 = vsel %vm1044, %v1098, %v1099
    %v1102 = vmul.f32 %v988, %v1100
    %v1103 = vadd.f32 %v1096, %v1102
    %v1104 = vmul.f32 %v993, %v1047
    %v1105 = vmul.f32 %v998, %v1053
    %v1106 = vadd.f32 %v1104, %v1105
    %v1107 = vmul.f32 %v1003, %v1060
    %v1108 = vadd.f32 %v1106, %v1107
    %v1109 = vmul.f32 %v993, %v1067
    %v1110 = vmul.f32 %v998, %v1073
    %v1111 = vadd.f32 %v1109, %v1110
    %v1112 = vmul.f32 %v1003, %v1080
    %v1113 = vadd.f32 %v1111, %v1112
    %v1114 = vmul.f32 %v993, %v1087
    %v1115 = vmul.f32 %v998, %v1093
    %v1116 = vadd.f32 %v1114, %v1115
    %v1117 = vmul.f32 %v1003, %v1100
    %v1118 = vadd.f32 %v1116, %v1117
    %v1119 = vmul.f32 %v1008, %v1047
    %v1120 = vmul.f32 %v1013, %v1053
    %v1121 = vadd.f32 %v1119, %v1120
    %v1122 = vmul.f32 %v1018, %v1060
    %v1123 = vadd.f32 %v1121, %v1122
    %v1124 = vmul.f32 %v1008, %v1067
    %v1125 = vmul.f32 %v1013, %v1073
    %v1126 = vadd.f32 %v1124, %v1125
    %v1127 = vmul.f32 %v1018, %v1080
    %v1128 = vadd.f32 %v1126, %v1127
    %v1129 = vmul.f32 %v1008, %v1087
    %v1130 = vmul.f32 %v1013, %v1093
    %v1131 = vadd.f32 %v1129, %v1130
    %v1132 = vmul.f32 %v1018, %v1100
    %v1133 = vadd.f32 %v1131, %v1132
    %1135 = vset.pattern.permute.xlu0 0
    %1136 = vperm.xlu0 %1135, %v46
    %v1137 = vpop.permute.xlu0 %1136
    %v1138 = vrot.slane %v906, 6
    %v1139 = vrot.slane %v1137, 6
    %v1140 = vsel %vm1044, %v1138, %v1139
    %v1142 = vmul.f32 %v960, %v1140
    %1143 = vset.pattern.permute.xlu0 1
    %1144 = vperm.xlu0 %1143, %v46
    %v1145 = vpop.permute.xlu0 %1144
    %v1146 = vrot.slane %v911, 6
    %v1147 = vrot.slane %v1145, 6
    %v1148 = vsel %vm1044, %v1146, %v1147
    %v1150 = vmul.f32 %v974, %v1148
    %v1151 = vadd.f32 %v1142, %v1150
    %1152 = vset.pattern.permute.xlu0 2
    %1153 = vperm.xlu0 %1152, %v46
    %v1154 = vpop.permute.xlu0 %1153
    %v1155 = vrot.slane %v917, 6
    %v1156 = vrot.slane %v1154, 6
    %v1157 = vsel %vm1044, %v1155, %v1156
    %v1159 = vmul.f32 %v988, %v1157
    %v1160 = vadd.f32 %v1151, %v1159
    %v1161 = vadd.f32 %v1160, %v1030
    %v1162 = vmul.f32 %v993, %v1140
    %v1163 = vmul.f32 %v998, %v1148
    %v1164 = vadd.f32 %v1162, %v1163
    %v1165 = vmul.f32 %v1003, %v1157
    %v1166 = vadd.f32 %v1164, %v1165
    %v1167 = vadd.f32 %v1166, %v1036
    %v1168 = vmul.f32 %v1008, %v1140
    %v1169 = vmul.f32 %v1013, %v1148
    %v1170 = vadd.f32 %v1168, %v1169
    %v1171 = vmul.f32 %v1018, %v1157
    %v1172 = vadd.f32 %v1170, %v1171
    %v1173 = vadd.f32 %v1172, %v1042
    %v1175 = vrot.slane %v1063, 1
    %v1177 = vrot.slane %v1063, 7
    %vm1179 = vcmask 1042432
    %v1180 = vsel %vm1179, %v1175, %v1063
    %vm1181 = vcmask 1043456
    %v1182 = vsel %vm1181, %v1180, %v1177
    %v1184 = vrot.slane %v1083, 1
    %v1186 = vrot.slane %v1083, 7
    %v1188 = vsel %vm1179, %v1184, %v1083
    %v1189 = vsel %vm1181, %v1188, %v1186
    %v1191 = vrot.slane %v1103, 1
    %v1193 = vrot.slane %v1103, 7
    %v1195 = vsel %vm1179, %v1191, %v1103
    %v1196 = vsel %vm1181, %v1195, %v1193
    %v1198 = vrot.slane %v1108, 1
    %v1200 = vrot.slane %v1108, 7
    %v1202 = vsel %vm1179, %v1198, %v1108
    %v1203 = vsel %vm1181, %v1202, %v1200
    %v1205 = vrot.slane %v1113, 1
    %v1207 = vrot.slane %v1113, 7
    %v1209 = vsel %vm1179, %v1205, %v1113
    %v1210 = vsel %vm1181, %v1209, %v1207
    %v1212 = vrot.slane %v1118, 1
    %v1214 = vrot.slane %v1118, 7
    %v1216 = vsel %vm1179, %v1212, %v1118
    %v1217 = vsel %vm1181, %v1216, %v1214
    %v1219 = vrot.slane %v1123, 1
    %v1221 = vrot.slane %v1123, 7
    %v1223 = vsel %vm1179, %v1219, %v1123
    %v1224 = vsel %vm1181, %v1223, %v1221
    %v1226 = vrot.slane %v1128, 1
    %v1228 = vrot.slane %v1128, 7
    %v1230 = vsel %vm1179, %v1226, %v1128
    %v1231 = vsel %vm1181, %v1230, %v1228
    %v1233 = vrot.slane %v1133, 1
    %v1235 = vrot.slane %v1133, 7
    %v1237 = vsel %vm1179, %v1233, %v1133
    %v1238 = vsel %vm1181, %v1237, %v1235
    %v1240 = vrot.slane %v1161, 1
    %v1242 = vrot.slane %v1161, 7
    %v1244 = vsel %vm1179, %v1240, %v1161
    %v1245 = vsel %vm1181, %v1244, %v1242
    %v1247 = vrot.slane %v1167, 1
    %v1249 = vrot.slane %v1167, 7
    %v1251 = vsel %vm1179, %v1247, %v1167
    %v1252 = vsel %vm1181, %v1251, %v1249
    %v1254 = vrot.slane %v1173, 1
    %v1256 = vrot.slane %v1173, 7
    %v1258 = vsel %vm1179, %v1254, %v1173
    %v1259 = vsel %vm1181, %v1258, %v1256
    %v1260 = vrot.slane %v730, 2
    %v1262 = vmul.f32 %v1182, %v1260
    %v1263 = vrot.slane %v757, 2
    %v1265 = vmul.f32 %v1189, %v1263
    %v1266 = vadd.f32 %v1262, %v1265
    %v1267 = vrot.slane %v781, 2
    %v1269 = vmul.f32 %v1196, %v1267
    %v1270 = vadd.f32 %v1266, %v1269
    %v1271 = vrot.slane %v742, 2
    %v1273 = vmul.f32 %v1182, %v1271
    %v1274 = vrot.slane %v766, 2
    %v1276 = vmul.f32 %v1189, %v1274
    %v1277 = vadd.f32 %v1273, %v1276
    %v1278 = vrot.slane %v784, 2
    %v1280 = vmul.f32 %v1196, %v1278
    %v1281 = vadd.f32 %v1277, %v1280
    %v1282 = vrot.slane %v754, 2
    %v1284 = vmul.f32 %v1182, %v1282
    %v1285 = vrot.slane %v778, 2
    %v1287 = vmul.f32 %v1189, %v1285
    %v1288 = vadd.f32 %v1284, %v1287
    %v1289 = vrot.slane %v793, 2
    %v1291 = vmul.f32 %v1196, %v1289
    %v1292 = vadd.f32 %v1288, %v1291
    %v1293 = vmul.f32 %v1203, %v1260
    %v1294 = vmul.f32 %v1210, %v1263
    %v1295 = vadd.f32 %v1293, %v1294
    %v1296 = vmul.f32 %v1217, %v1267
    %v1297 = vadd.f32 %v1295, %v1296
    %v1298 = vmul.f32 %v1203, %v1271
    %v1299 = vmul.f32 %v1210, %v1274
    %v1300 = vadd.f32 %v1298, %v1299
    %v1301 = vmul.f32 %v1217, %v1278
    %v1302 = vadd.f32 %v1300, %v1301
    %v1303 = vmul.f32 %v1203, %v1282
    %v1304 = vmul.f32 %v1210, %v1285
    %v1305 = vadd.f32 %v1303, %v1304
    %v1306 = vmul.f32 %v1217, %v1289
    %v1307 = vadd.f32 %v1305, %v1306
    %v1308 = vmul.f32 %v1224, %v1260
    %v1309 = vmul.f32 %v1231, %v1263
    %v1310 = vadd.f32 %v1308, %v1309
    %v1311 = vmul.f32 %v1238, %v1267
    %v1312 = vadd.f32 %v1310, %v1311
    %v1313 = vmul.f32 %v1224, %v1271
    %v1314 = vmul.f32 %v1231, %v1274
    %v1315 = vadd.f32 %v1313, %v1314
    %v1316 = vmul.f32 %v1238, %v1278
    %v1317 = vadd.f32 %v1315, %v1316
    %v1318 = vmul.f32 %v1224, %v1282
    %v1319 = vmul.f32 %v1231, %v1285
    %v1320 = vadd.f32 %v1318, %v1319
    %v1321 = vmul.f32 %v1238, %v1289
    %v1322 = vadd.f32 %v1320, %v1321
    %v1323 = vrot.slane %v1137, 2
    %v1325 = vmul.f32 %v1182, %v1323
    %v1326 = vrot.slane %v1145, 2
    %v1328 = vmul.f32 %v1189, %v1326
    %v1329 = vadd.f32 %v1325, %v1328
    %v1330 = vrot.slane %v1154, 2
    %v1332 = vmul.f32 %v1196, %v1330
    %v1333 = vadd.f32 %v1329, %v1332
    %v1334 = vadd.f32 %v1333, %v1245
    %v1335 = vmul.f32 %v1203, %v1323
    %v1336 = vmul.f32 %v1210, %v1326
    %v1337 = vadd.f32 %v1335, %v1336
    %v1338 = vmul.f32 %v1217, %v1330
    %v1339 = vadd.f32 %v1337, %v1338
    %v1340 = vadd.f32 %v1339, %v1252
    %v1341 = vmul.f32 %v1224, %v1323
    %v1342 = vmul.f32 %v1231, %v1326
    %v1343 = vadd.f32 %v1341, %v1342
    %v1344 = vmul.f32 %v1238, %v1330
    %v1345 = vadd.f32 %v1343, %v1344
    %v1346 = vadd.f32 %v1345, %v1259
    %v1348 = vrot.slane %v730, 5
    %v1349 = vrot.slane %v731, 5
    %v1350 = vsel %vm1179, %v1348, %v1349
    %v1352 = vmul.f32 %v1270, %v1350
    %v1354 = vrot.slane %v757, 5
    %v1355 = vrot.slane %v758, 5
    %v1356 = vsel %vm1179, %v1354, %v1355
    %v1358 = vmul.f32 %v1281, %v1356
    %v1359 = vadd.f32 %v1352, %v1358
    %v1361 = vrot.slane %v781, 5
    %v1362 = vrot.slane %v782, 5
    %v1363 = vsel %vm1179, %v1361, %v1362
    %v1365 = vmul.f32 %v1292, %v1363
    %v1366 = vadd.f32 %v1359, %v1365
    %v1368 = vrot.slane %v742, 5
    %v1369 = vrot.slane %v743, 5
    %v1370 = vsel %vm1179, %v1368, %v1369
    %v1372 = vmul.f32 %v1270, %v1370
    %v1374 = vrot.slane %v766, 5
    %v1375 = vrot.slane %v767, 5
    %v1376 = vsel %vm1179, %v1374, %v1375
    %v1378 = vmul.f32 %v1281, %v1376
    %v1379 = vadd.f32 %v1372, %v1378
    %v1381 = vrot.slane %v784, 5
    %v1382 = vrot.slane %v785, 5
    %v1383 = vsel %vm1179, %v1381, %v1382
    %v1385 = vmul.f32 %v1292, %v1383
    %v1386 = vadd.f32 %v1379, %v1385
    %v1388 = vrot.slane %v754, 5
    %v1389 = vrot.slane %v755, 5
    %v1390 = vsel %vm1179, %v1388, %v1389
    %v1392 = vmul.f32 %v1270, %v1390
    %v1394 = vrot.slane %v778, 5
    %v1395 = vrot.slane %v779, 5
    %v1396 = vsel %vm1179, %v1394, %v1395
    %v1398 = vmul.f32 %v1281, %v1396
    %v1399 = vadd.f32 %v1392, %v1398
    %v1401 = vrot.slane %v793, 5
    %v1402 = vrot.slane %v794, 5
    %v1403 = vsel %vm1179, %v1401, %v1402
    %v1405 = vmul.f32 %v1292, %v1403
    %v1406 = vadd.f32 %v1399, %v1405
    %v1407 = vmul.f32 %v1297, %v1350
    %v1408 = vmul.f32 %v1302, %v1356
    %v1409 = vadd.f32 %v1407, %v1408
    %v1410 = vmul.f32 %v1307, %v1363
    %v1411 = vadd.f32 %v1409, %v1410
    %v1412 = vmul.f32 %v1297, %v1370
    %v1413 = vmul.f32 %v1302, %v1376
    %v1414 = vadd.f32 %v1412, %v1413
    %v1415 = vmul.f32 %v1307, %v1383
    %v1416 = vadd.f32 %v1414, %v1415
    %v1417 = vmul.f32 %v1297, %v1390
    %v1418 = vmul.f32 %v1302, %v1396
    %v1419 = vadd.f32 %v1417, %v1418
    %v1420 = vmul.f32 %v1307, %v1403
    %v1421 = vadd.f32 %v1419, %v1420
    %v1422 = vmul.f32 %v1312, %v1350
    %v1423 = vmul.f32 %v1317, %v1356
    %v1424 = vadd.f32 %v1422, %v1423
    %v1425 = vmul.f32 %v1322, %v1363
    %v1426 = vadd.f32 %v1424, %v1425
    %v1427 = vmul.f32 %v1312, %v1370
    %v1428 = vmul.f32 %v1317, %v1376
    %v1429 = vadd.f32 %v1427, %v1428
    %v1430 = vmul.f32 %v1322, %v1383
    %v1431 = vadd.f32 %v1429, %v1430
    %v1432 = vmul.f32 %v1312, %v1390
    %v1433 = vmul.f32 %v1317, %v1396
    %v1434 = vadd.f32 %v1432, %v1433
    %v1435 = vmul.f32 %v1322, %v1403
    %v1436 = vadd.f32 %v1434, %v1435
    %1438 = vset.pattern.permute.xlu0 0
    %1439 = vperm.xlu0 %1438, %v47
    %v1440 = vpop.permute.xlu0 %1439
    %v1441 = vrot.slane %v1137, 5
    %v1442 = vrot.slane %v1440, 5
    %v1443 = vsel %vm1179, %v1441, %v1442
    %v1445 = vmul.f32 %v1270, %v1443
    %1446 = vset.pattern.permute.xlu0 1
    %1447 = vperm.xlu0 %1446, %v47
    %v1448 = vpop.permute.xlu0 %1447
    %v1449 = vrot.slane %v1145, 5
    %v1450 = vrot.slane %v1448, 5
    %v1451 = vsel %vm1179, %v1449, %v1450
    %v1453 = vmul.f32 %v1281, %v1451
    %v1454 = vadd.f32 %v1445, %v1453
    %1455 = vset.pattern.permute.xlu0 2
    %1456 = vperm.xlu0 %1455, %v47
    %v1457 = vpop.permute.xlu0 %1456
    %v1458 = vrot.slane %v1154, 5
    %v1459 = vrot.slane %v1457, 5
    %v1460 = vsel %vm1179, %v1458, %v1459
    %v1462 = vmul.f32 %v1292, %v1460
    %v1463 = vadd.f32 %v1454, %v1462
    %v1464 = vadd.f32 %v1463, %v1334
    %v1465 = vmul.f32 %v1297, %v1443
    %v1466 = vmul.f32 %v1302, %v1451
    %v1467 = vadd.f32 %v1465, %v1466
    %v1468 = vmul.f32 %v1307, %v1460
    %v1469 = vadd.f32 %v1467, %v1468
    %v1470 = vadd.f32 %v1469, %v1340
    %v1471 = vmul.f32 %v1312, %v1443
    %v1472 = vmul.f32 %v1317, %v1451
    %v1473 = vadd.f32 %v1471, %v1472
    %v1474 = vmul.f32 %v1322, %v1460
    %v1475 = vadd.f32 %v1473, %v1474
    %v1476 = vadd.f32 %v1475, %v1346
    %v1477 = vrot.slane %v731, 7
    %v1479 = vmul.f32 %v1366, %v1477
    %v1480 = vrot.slane %v758, 7
    %v1482 = vmul.f32 %v1386, %v1480
    %v1483 = vadd.f32 %v1479, %v1482
    %v1484 = vrot.slane %v782, 7
    %v1486 = vmul.f32 %v1406, %v1484
    %v1487 = vadd.f32 %v1483, %v1486
    %v1488 = vrot.slane %v743, 7
    %v1490 = vmul.f32 %v1366, %v1488
    %v1491 = vrot.slane %v767, 7
    %v1493 = vmul.f32 %v1386, %v1491
    %v1494 = vadd.f32 %v1490, %v1493
    %v1495 = vrot.slane %v785, 7
    %v1497 = vmul.f32 %v1406, %v1495
    %v1498 = vadd.f32 %v1494, %v1497
    %v1499 = vrot.slane %v755, 7
    %v1501 = vmul.f32 %v1366, %v1499
    %v1502 = vrot.slane %v779, 7
    %v1504 = vmul.f32 %v1386, %v1502
    %v1505 = vadd.f32 %v1501, %v1504
    %v1506 = vrot.slane %v794, 7
    %v1508 = vmul.f32 %v1406, %v1506
    %v1509 = vadd.f32 %v1505, %v1508
    %v1510 = vmul.f32 %v1411, %v1477
    %v1511 = vmul.f32 %v1416, %v1480
    %v1512 = vadd.f32 %v1510, %v1511
    %v1513 = vmul.f32 %v1421, %v1484
    %v1514 = vadd.f32 %v1512, %v1513
    %v1515 = vmul.f32 %v1411, %v1488
    %v1516 = vmul.f32 %v1416, %v1491
    %v1517 = vadd.f32 %v1515, %v1516
    %v1518 = vmul.f32 %v1421, %v1495
    %v1519 = vadd.f32 %v1517, %v1518
    %v1520 = vmul.f32 %v1411, %v1499
    %v1521 = vmul.f32 %v1416, %v1502
    %v1522 = vadd.f32 %v1520, %v1521
    %v1523 = vmul.f32 %v1421, %v1506
    %v1524 = vadd.f32 %v1522, %v1523
    %v1525 = vmul.f32 %v1426, %v1477
    %v1526 = vmul.f32 %v1431, %v1480
    %v1527 = vadd.f32 %v1525, %v1526
    %v1528 = vmul.f32 %v1436, %v1484
    %v1529 = vadd.f32 %v1527, %v1528
    %v1530 = vmul.f32 %v1426, %v1488
    %v1531 = vmul.f32 %v1431, %v1491
    %v1532 = vadd.f32 %v1530, %v1531
    %v1533 = vmul.f32 %v1436, %v1495
    %v1534 = vadd.f32 %v1532, %v1533
    %v1535 = vmul.f32 %v1426, %v1499
    %v1536 = vmul.f32 %v1431, %v1502
    %v1537 = vadd.f32 %v1535, %v1536
    %v1538 = vmul.f32 %v1436, %v1506
    %v1539 = vadd.f32 %v1537, %v1538
    %v1540 = vrot.slane %v1440, 7
    %v1542 = vmul.f32 %v1366, %v1540
    %v1543 = vrot.slane %v1448, 7
    %v1545 = vmul.f32 %v1386, %v1543
    %v1546 = vadd.f32 %v1542, %v1545
    %v1547 = vrot.slane %v1457, 7
    %v1549 = vmul.f32 %v1406, %v1547
    %v1550 = vadd.f32 %v1546, %v1549
    %v1551 = vadd.f32 %v1550, %v1464
    %v1552 = vmul.f32 %v1411, %v1540
    %v1553 = vmul.f32 %v1416, %v1543
    %v1554 = vadd.f32 %v1552, %v1553
    %v1555 = vmul.f32 %v1421, %v1547
    %v1556 = vadd.f32 %v1554, %v1555
    %v1557 = vadd.f32 %v1556, %v1470
    %v1558 = vmul.f32 %v1426, %v1540
    %v1559 = vmul.f32 %v1431, %v1543
    %v1560 = vadd.f32 %v1558, %v1559
    %v1561 = vmul.f32 %v1436, %v1547
    %v1562 = vadd.f32 %v1560, %v1561
    %v1563 = vadd.f32 %v1562, %v1476
    %v1564 = vrot.slane %v731, 1
    %v1566 = vmul.f32 %v1487, %v1564
    %v1567 = vrot.slane %v758, 1
    %v1569 = vmul.f32 %v1498, %v1567
    %v1570 = vadd.f32 %v1566, %v1569
    %v1571 = vrot.slane %v782, 1
    %v1573 = vmul.f32 %v1509, %v1571
    %v1574 = vadd.f32 %v1570, %v1573
    %v1575 = vrot.slane %v743, 1
    %v1577 = vmul.f32 %v1487, %v1575
    %v1578 = vrot.slane %v767, 1
    %v1580 = vmul.f32 %v1498, %v1578
    %v1581 = vadd.f32 %v1577, %v1580
    %v1582 = vrot.slane %v785, 1
    %v1584 = vmul.f32 %v1509, %v1582
    %v1585 = vadd.f32 %v1581, %v1584
    %v1586 = vrot.slane %v755, 1
    %v1588 = vmul.f32 %v1487, %v1586
    %v1589 = vrot.slane %v779, 1
    %v1591 = vmul.f32 %v1498, %v1589
    %v1592 = vadd.f32 %v1588, %v1591
    %v1593 = vrot.slane %v794, 1
    %v1595 = vmul.f32 %v1509, %v1593
    %v1596 = vadd.f32 %v1592, %v1595
    %v1597 = vmul.f32 %v1514, %v1564
    %v1598 = vmul.f32 %v1519, %v1567
    %v1599 = vadd.f32 %v1597, %v1598
    %v1600 = vmul.f32 %v1524, %v1571
    %v1601 = vadd.f32 %v1599, %v1600
    %v1602 = vmul.f32 %v1514, %v1575
    %v1603 = vmul.f32 %v1519, %v1578
    %v1604 = vadd.f32 %v1602, %v1603
    %v1605 = vmul.f32 %v1524, %v1582
    %v1606 = vadd.f32 %v1604, %v1605
    %v1607 = vmul.f32 %v1514, %v1586
    %v1608 = vmul.f32 %v1519, %v1589
    %v1609 = vadd.f32 %v1607, %v1608
    %v1610 = vmul.f32 %v1524, %v1593
    %v1611 = vadd.f32 %v1609, %v1610
    %v1612 = vmul.f32 %v1529, %v1564
    %v1613 = vmul.f32 %v1534, %v1567
    %v1614 = vadd.f32 %v1612, %v1613
    %v1615 = vmul.f32 %v1539, %v1571
    %v1616 = vadd.f32 %v1614, %v1615
    %v1617 = vmul.f32 %v1529, %v1575
    %v1618 = vmul.f32 %v1534, %v1578
    %v1619 = vadd.f32 %v1617, %v1618
    %v1620 = vmul.f32 %v1539, %v1582
    %v1621 = vadd.f32 %v1619, %v1620
    %v1622 = vmul.f32 %v1529, %v1586
    %v1623 = vmul.f32 %v1534, %v1589
    %v1624 = vadd.f32 %v1622, %v1623
    %v1625 = vmul.f32 %v1539, %v1593
    %v1626 = vadd.f32 %v1624, %v1625
    %v1627 = vrot.slane %v1440, 1
    %v1629 = vmul.f32 %v1487, %v1627
    %v1630 = vrot.slane %v1448, 1
    %v1632 = vmul.f32 %v1498, %v1630
    %v1633 = vadd.f32 %v1629, %v1632
    %v1634 = vrot.slane %v1457, 1
    %v1636 = vmul.f32 %v1509, %v1634
    %v1637 = vadd.f32 %v1633, %v1636
    %v1638 = vadd.f32 %v1637, %v1551
    %v1639 = vmul.f32 %v1514, %v1627
    %v1640 = vmul.f32 %v1519, %v1630
    %v1641 = vadd.f32 %v1639, %v1640
    %v1642 = vmul.f32 %v1524, %v1634
    %v1643 = vadd.f32 %v1641, %v1642
    %v1644 = vadd.f32 %v1643, %v1557
    %v1645 = vmul.f32 %v1529, %v1627
    %v1646 = vmul.f32 %v1534, %v1630
    %v1647 = vadd.f32 %v1645, %v1646
    %v1648 = vmul.f32 %v1539, %v1634
    %v1649 = vadd.f32 %v1647, %v1648
    %v1650 = vadd.f32 %v1649, %v1563
    %v1651 = vrot.slane %v731, 3
    %v1653 = vmul.f32 %v1574, %v1651
    %v1654 = vrot.slane %v758, 3
    %v1656 = vmul.f32 %v1585, %v1654
    %v1657 = vadd.f32 %v1653, %v1656
    %v1658 = vrot.slane %v782, 3
    %v1660 = vmul.f32 %v1596, %v1658
    %v1661 = vadd.f32 %v1657, %v1660
    %v1662 = vrot.slane %v743, 3
    %v1664 = vmul.f32 %v1574, %v1662
    %v1665 = vrot.slane %v767, 3
    %v1667 = vmul.f32 %v1585, %v1665
    %v1668 = vadd.f32 %v1664, %v1667
    %v1669 = vrot.slane %v785, 3
    %v1671 = vmul.f32 %v1596, %v1669
    %v1672 = vadd.f32 %v1668, %v1671
    %v1673 = vrot.slane %v755, 3
    %v1675 = vmul.f32 %v1574, %v1673
    %v1676 = vrot.slane %v779, 3
    %v1678 = vmul.f32 %v1585, %v1676
    %v1679 = vadd.f32 %v1675, %v1678
    %v1680 = vrot.slane %v794, 3
    %v1682 = vmul.f32 %v1596, %v1680
    %v1683 = vadd.f32 %v1679, %v1682
    %v1684 = vmul.f32 %v1601, %v1651
    %v1685 = vmul.f32 %v1606, %v1654
    %v1686 = vadd.f32 %v1684, %v1685
    %v1687 = vmul.f32 %v1611, %v1658
    %v1688 = vadd.f32 %v1686, %v1687
    %v1689 = vmul.f32 %v1601, %v1662
    %v1690 = vmul.f32 %v1606, %v1665
    %v1691 = vadd.f32 %v1689, %v1690
    %v1692 = vmul.f32 %v1611, %v1669
    %v1693 = vadd.f32 %v1691, %v1692
    %v1694 = vmul.f32 %v1601, %v1673
    %v1695 = vmul.f32 %v1606, %v1676
    %v1696 = vadd.f32 %v1694, %v1695
    %v1697 = vmul.f32 %v1611, %v1680
    %v1698 = vadd.f32 %v1696, %v1697
    %v1699 = vmul.f32 %v1616, %v1651
    %v1700 = vmul.f32 %v1621, %v1654
    %v1701 = vadd.f32 %v1699, %v1700
    %v1702 = vmul.f32 %v1626, %v1658
    %v1703 = vadd.f32 %v1701, %v1702
    %v1704 = vmul.f32 %v1616, %v1662
    %v1705 = vmul.f32 %v1621, %v1665
    %v1706 = vadd.f32 %v1704, %v1705
    %v1707 = vmul.f32 %v1626, %v1669
    %v1708 = vadd.f32 %v1706, %v1707
    %v1709 = vmul.f32 %v1616, %v1673
    %v1710 = vmul.f32 %v1621, %v1676
    %v1711 = vadd.f32 %v1709, %v1710
    %v1712 = vmul.f32 %v1626, %v1680
    %v1713 = vadd.f32 %v1711, %v1712
    %v1714 = vrot.slane %v1440, 3
    %v1716 = vmul.f32 %v1574, %v1714
    %v1717 = vrot.slane %v1448, 3
    %v1719 = vmul.f32 %v1585, %v1717
    %v1720 = vadd.f32 %v1716, %v1719
    %v1721 = vrot.slane %v1457, 3
    %v1723 = vmul.f32 %v1596, %v1721
    %v1724 = vadd.f32 %v1720, %v1723
    %v1725 = vadd.f32 %v1724, %v1638
    %v1726 = vmul.f32 %v1601, %v1714
    %v1727 = vmul.f32 %v1606, %v1717
    %v1728 = vadd.f32 %v1726, %v1727
    %v1729 = vmul.f32 %v1611, %v1721
    %v1730 = vadd.f32 %v1728, %v1729
    %v1731 = vadd.f32 %v1730, %v1644
    %v1732 = vmul.f32 %v1616, %v1714
    %v1733 = vmul.f32 %v1621, %v1717
    %v1734 = vadd.f32 %v1732, %v1733
    %v1735 = vmul.f32 %v1626, %v1721
    %v1736 = vadd.f32 %v1734, %v1735
    %v1737 = vadd.f32 %v1736, %v1650
    %v1739 = vrot.slane %v960, 5
    %v1741 = vrot.slane %v1063, 2
    %v1744 = vrot.slane %v1270, 6
    %v1747 = vrot.slane %v1366, 3
    %v1750 = vrot.slane %v1487, 1
    %v1753 = vrot.slane %v1574, 7
    %v1756 = vrot.slane %v1661, 5
    %vm1758 = vcmask 1040384
    %v1759 = vsel %vm1758, %v729, %v838
    %v1760 = vsel %vm1181, %v1759, %v1739
    %vm1761 = vcmask 1046528
    %v1762 = vsel %vm1761, %v1760, %v1741
    %v1763 = vsel %vm1044, %v1741, %v1744
    %v1764 = vsel %vm1761, %v1763, %v1747
    %v1765 = vsel %vm1044, %v1747, %v1750
    %v1766 = vsel %vm1181, %v1765, %v1753
    %vm1767 = vcmask 1045504
    %v1768 = vsel %vm1767, %v1766, %v1756
    %v1770 = vrot.slane %v974, 5
    %v1772 = vrot.slane %v1083, 2
    %v1775 = vrot.slane %v1281, 6
    %v1778 = vrot.slane %v1386, 3
    %v1781 = vrot.slane %v1498, 1
    %v1784 = vrot.slane %v1585, 7
    %v1787 = vrot.slane %v1672, 5
    %v1789 = vsel %vm1758, %v741, %v843
    %v1790 = vsel %vm1181, %v1789, %v1770
    %v1791 = vsel %vm1761, %v1790, %v1772
    %v1792 = vsel %vm1044, %v1772, %v1775
    %v1793 = vsel %vm1761, %v1792, %v1778
    %v1794 = vsel %vm1044, %v1778, %v1781
    %v1795 = vsel %vm1181, %v1794, %v1784
    %v1796 = vsel %vm1767, %v1795, %v1787
    %v1798 = vrot.slane %v988, 5
    %v1800 = vrot.slane %v1103, 2
    %v1803 = vrot.slane %v1292, 6
    %v1806 = vrot.slane %v1406, 3
    %v1809 = vrot.slane %v1509, 1
    %v1812 = vrot.slane %v1596, 7
    %v1815 = vrot.slane %v1683, 5
    %v1817 = vsel %vm1758, %v753, %v848
    %v1818 = vsel %vm1181, %v1817, %v1798
    %v1819 = vsel %vm1761, %v1818, %v1800
    %v1820 = vsel %vm1044, %v1800, %v1803
    %v1821 = vsel %vm1761, %v1820, %v1806
    %v1822 = vsel %vm1044, %v1806, %v1809
    %v1823 = vsel %vm1181, %v1822, %v1812
    %v1824 = vsel %vm1767, %v1823, %v1815
    %v1826 = vrot.slane %v993, 5
    %v1828 = vrot.slane %v1108, 2
    %v1831 = vrot.slane %v1297, 6
    %v1834 = vrot.slane %v1411, 3
    %v1837 = vrot.slane %v1514, 1
    %v1840 = vrot.slane %v1601, 7
    %v1843 = vrot.slane %v1688, 5
    %v1845 = vsel %vm1758, %v756, %v865
    %v1846 = vsel %vm1181, %v1845, %v1826
    %v1847 = vsel %vm1761, %v1846, %v1828
    %v1848 = vsel %vm1044, %v1828, %v1831
    %v1849 = vsel %vm1761, %v1848, %v1834
    %v1850 = vsel %vm1044, %v1834, %v1837
    %v1851 = vsel %vm1181, %v1850, %v1840
    %v1852 = vsel %vm1767, %v1851, %v1843
    %v1854 = vrot.slane %v998, 5
    %v1856 = vrot.slane %v1113, 2
    %v1859 = vrot.slane %v1302, 6
    %v1862 = vrot.slane %v1416, 3
    %v1865 = vrot.slane %v1519, 1
    %v1868 = vrot.slane %v1606, 7
    %v1871 = vrot.slane %v1693, 5
    %v1873 = vsel %vm1758, %v765, %v870
    %v1874 = vsel %vm1181, %v1873, %v1854
    %v1875 = vsel %vm1761, %v1874, %v1856
    %v1876 = vsel %vm1044, %v1856, %v1859
    %v1877 = vsel %vm1761, %v1876, %v1862
    %v1878 = vsel %vm1044, %v1862, %v1865
    %v1879 = vsel %vm1181, %v1878, %v1868
    %v1880 = vsel %vm1767, %v1879, %v1871
    %v1882 = vrot.slane %v1003, 5
    %v1884 = vrot.slane %v1118, 2
    %v1887 = vrot.slane %v1307, 6
    %v1890 = vrot.slane %v1421, 3
    %v1893 = vrot.slane %v1524, 1
    %v1896 = vrot.slane %v1611, 7
    %v1899 = vrot.slane %v1698, 5
    %v1901 = vsel %vm1758, %v777, %v875
    %v1902 = vsel %vm1181, %v1901, %v1882
    %v1903 = vsel %vm1761, %v1902, %v1884
    %v1904 = vsel %vm1044, %v1884, %v1887
    %v1905 = vsel %vm1761, %v1904, %v1890
    %v1906 = vsel %vm1044, %v1890, %v1893
    %v1907 = vsel %vm1181, %v1906, %v1896
    %v1908 = vsel %vm1767, %v1907, %v1899
    %v1910 = vrot.slane %v1008, 5
    %v1912 = vrot.slane %v1123, 2
    %v1915 = vrot.slane %v1312, 6
    %v1918 = vrot.slane %v1426, 3
    %v1921 = vrot.slane %v1529, 1
    %v1924 = vrot.slane %v1616, 7
    %v1927 = vrot.slane %v1703, 5
    %v1929 = vsel %vm1758, %v780, %v892
    %v1930 = vsel %vm1181, %v1929, %v1910
    %v1931 = vsel %vm1761, %v1930, %v1912
    %v1932 = vsel %vm1044, %v1912, %v1915
    %v1933 = vsel %vm1761, %v1932, %v1918
    %v1934 = vsel %vm1044, %v1918, %v1921
    %v1935 = vsel %vm1181, %v1934, %v1924
    %v1936 = vsel %vm1767, %v1935, %v1927
    %v1938 = vrot.slane %v1013, 5
    %v1940 = vrot.slane %v1128, 2
    %v1943 = vrot.slane %v1317, 6
    %v1946 = vrot.slane %v1431, 3
    %v1949 = vrot.slane %v1534, 1
    %v1952 = vrot.slane %v1621, 7
    %v1955 = vrot.slane %v1708, 5
    %v1957 = vsel %vm1758, %v783, %v897
    %v1958 = vsel %vm1181, %v1957, %v1938
    %v1959 = vsel %vm1761, %v1958, %v1940
    %v1960 = vsel %vm1044, %v1940, %v1943
    %v1961 = vsel %vm1761, %v1960, %v1946
    %v1962 = vsel %vm1044, %v1946, %v1949
    %v1963 = vsel %vm1181, %v1962, %v1952
    %v1964 = vsel %vm1767, %v1963, %v1955
    %v1966 = vrot.slane %v1018, 5
    %v1968 = vrot.slane %v1133, 2
    %v1971 = vrot.slane %v1322, 6
    %v1974 = vrot.slane %v1436, 3
    %v1977 = vrot.slane %v1539, 1
    %v1980 = vrot.slane %v1626, 7
    %v1983 = vrot.slane %v1713, 5
    %v1985 = vsel %vm1758, %v792, %v902
    %v1986 = vsel %vm1181, %v1985, %v1966
    %v1987 = vsel %vm1761, %v1986, %v1968
    %v1988 = vsel %vm1044, %v1968, %v1971
    %v1989 = vsel %vm1761, %v1988, %v1974
    %v1990 = vsel %vm1044, %v1974, %v1977
    %v1991 = vsel %vm1181, %v1990, %v1980
    %v1992 = vsel %vm1767, %v1991, %v1983
    %v1994 = vrot.slane %v1030, 5
    %v1996 = vrot.slane %v1161, 2
    %v1999 = vrot.slane %v1334, 6
    %v2002 = vrot.slane %v1464, 3
    %v2005 = vrot.slane %v1551, 1
    %v2008 = vrot.slane %v1638, 7
    %v2011 = vrot.slane %v1725, 5
    %v2013 = vsel %vm1758, %v906, %v924
    %v2014 = vsel %vm1181, %v2013, %v1994
    %v2015 = vsel %vm1761, %v2014, %v1996
    %v2016 = vsel %vm1044, %v1996, %v1999
    %v2017 = vsel %vm1761, %v2016, %v2002
    %v2018 = vsel %vm1044, %v2002, %v2005
    %v2019 = vsel %vm1181, %v2018, %v2008
    %v2020 = vsel %vm1767, %v2019, %v2011
    %v2022 = vrot.slane %v1036, 5
    %v2024 = vrot.slane %v1167, 2
    %v2027 = vrot.slane %v1340, 6
    %v2030 = vrot.slane %v1470, 3
    %v2033 = vrot.slane %v1557, 1
    %v2036 = vrot.slane %v1644, 7
    %v2039 = vrot.slane %v1731, 5
    %v2041 = vsel %vm1758, %v911, %v935
    %v2042 = vsel %vm1181, %v2041, %v2022
    %v2043 = vsel %vm1761, %v2042, %v2024
    %v2044 = vsel %vm1044, %v2024, %v2027
    %v2045 = vsel %vm1761, %v2044, %v2030
    %v2046 = vsel %vm1044, %v2030, %v2033
    %v2047 = vsel %vm1181, %v2046, %v2036
    %v2048 = vsel %vm1767, %v2047, %v2039
    %v2050 = vrot.slane %v1042, 5
    %v2052 = vrot.slane %v1173, 2
    %v2055 = vrot.slane %v1346, 6
    %v2058 = vrot.slane %v1476, 3
    %v2061 = vrot.slane %v1563, 1
    %v2064 = vrot.slane %v1650, 7
    %v2067 = vrot.slane %v1737, 5
    %v2069 = vsel %vm1758, %v917, %v946
    %v2070 = vsel %vm1181, %v2069, %v2050
    %v2071 = vsel %vm1761, %v2070, %v2052
    %v2072 = vsel %vm1044, %v2052, %v2055
    %v2073 = vsel %vm1761, %v2072, %v2058
    %v2074 = vsel %vm1044, %v2058, %v2061
    %v2075 = vsel %vm1181, %v2074, %v2064
    %v2076 = vsel %vm1767, %v2075, %v2067
    %v2077 = vlaneseq
    %v2078 = vshrl.u32 %v2077, 7
    %v2079 = vsub.s32 0, %v2078
    %v2080 = vrot.slane %v42, %v2079
    %v2081 = vadd.f32 %v2015, %v2080
    %v2082 = vadd.f32 %v2017, %v2080
    %v2083 = vadd.f32 %v2020, %v2080
    %v2084 = vlaneseq
    %v2085 = vshrl.u32 %v2084, 7
    %v2086 = vsub.s32 0, %v2085
    %v2087 = vrot.slane %v43, %v2086
    %v2088 = vadd.f32 %v2043, %v2087
    %v2089 = vadd.f32 %v2045, %v2087
    %v2090 = vadd.f32 %v2048, %v2087
    %v2091 = vlaneseq
    %v2092 = vshrl.u32 %v2091, 7
    %v2093 = vsub.s32 0, %v2092
    %v2094 = vrot.slane %v44, %v2093
    %v2095 = vadd.f32 %v2071, %v2094
    %v2096 = vadd.f32 %v2073, %v2094
    %v2097 = vadd.f32 %v2076, %v2094
    %2098 = vst [vmem:[#allocation6] sm:$0xff] %v1762
    %2099 = vst [vmem:[#allocation6 + $0x8] sm:$0xff] %v1764
    %2100 = vst [vmem:[#allocation6 + $0x10] sm:$0xff] %v1768
    %2101 = vst [vmem:[#allocation6 + $0x18] sm:$0xff] %v1791
    %2102 = vst [vmem:[#allocation6 + $0x20] sm:$0xff] %v1793
    %2103 = vst [vmem:[#allocation6 + $0x28] sm:$0xff] %v1796
    %2104 = vst [vmem:[#allocation6 + $0x30] sm:$0xff] %v1819
    %2105 = vst [vmem:[#allocation6 + $0x38] sm:$0xff] %v1821
    %2106 = vst [vmem:[#allocation6 + $0x40] sm:$0xff] %v1824
    %2107 = vst [vmem:[#allocation6 + $0x48] sm:$0xff] %v2081
    %2108 = vst [vmem:[#allocation6 + $0x50] sm:$0xff] %v2082
    %2109 = vst [vmem:[#allocation6 + $0x58] sm:$0xff] %v2083
    %2110 = vst [vmem:[#allocation6 + $0x60] sm:$0xff] %v1847
    %2111 = vst [vmem:[#allocation6 + $0x68] sm:$0xff] %v1849
    %2112 = vst [vmem:[#allocation6 + $0x70] sm:$0xff] %v1852
    %2113 = vst [vmem:[#allocation6 + $0x78] sm:$0xff] %v1875
    %2114 = vst [vmem:[#allocation6 + $0x80] sm:$0xff] %v1877
    %2115 = vst [vmem:[#allocation6 + $0x88] sm:$0xff] %v1880
    %2116 = vst [vmem:[#allocation6 + $0x90] sm:$0xff] %v1903
    %2117 = vst [vmem:[#allocation6 + $0x98] sm:$0xff] %v1905
    %2118 = vst [vmem:[#allocation6 + $0xa0] sm:$0xff] %v1908
    %2119 = vst [vmem:[#allocation6 + $0xa8] sm:$0xff] %v2088
    %2120 = vst [vmem:[#allocation6 + $0xb0] sm:$0xff] %v2089
    %2121 = vst [vmem:[#allocation6 + $0xb8] sm:$0xff] %v2090
    %2122 = vst [vmem:[#allocation6 + $0xc0] sm:$0xff] %v1931
    %2123 = vst [vmem:[#allocation6 + $0xc8] sm:$0xff] %v1933
    %2124 = vst [vmem:[#allocation6 + $0xd0] sm:$0xff] %v1936
    %2125 = vst [vmem:[#allocation6 + $0xd8] sm:$0xff] %v1959
    %2126 = vst [vmem:[#allocation6 + $0xe0] sm:$0xff] %v1961
    %2127 = vst [vmem:[#allocation6 + $0xe8] sm:$0xff] %v1964
    %2128 = vst [vmem:[#allocation6 + $0xf0] sm:$0xff] %v1987
    %2129 = vst [vmem:[#allocation6 + $0xf8] sm:$0xff] %v1989
    %2130 = vst [vmem:[#allocation6 + $0x100] sm:$0xff] %v1992
    %2131 = vst [vmem:[#allocation6 + $0x108] sm:$0xff] %v2095
    %2132 = vst [vmem:[#allocation6 + $0x110] sm:$0xff] %v2096
    %2133 = vst [vmem:[#allocation6 + $0x118] sm:$0xff] %v2097
    %v2134 = vmul.f32 %v1875, %v1987
    %v2135 = vmul.f32 %v1877, %v1989
    %v2136 = vmul.f32 %v1880, %v1992
    %v2137 = vmul.f32 %v1903, %v1959
    %v2138 = vmul.f32 %v1905, %v1961
    %v2139 = vmul.f32 %v1908, %v1964
    %v2140 = vsub.f32 %v2134, %v2137
    %v2141 = vsub.f32 %v2135, %v2138
    %v2142 = vsub.f32 %v2136, %v2139
    %v2143 = vmul.f32 %v1819, %v1959
    %v2144 = vmul.f32 %v1821, %v1961
    %v2145 = vmul.f32 %v1824, %v1964
    %v2146 = vmul.f32 %v1791, %v1987
    %v2147 = vmul.f32 %v1793, %v1989
    %v2148 = vmul.f32 %v1796, %v1992
    %v2149 = vsub.f32 %v2143, %v2146
    %v2150 = vsub.f32 %v2144, %v2147
    %v2151 = vsub.f32 %v2145, %v2148
    %v2152 = vmul.f32 %v1791, %v1903
    %v2153 = vmul.f32 %v1793, %v1905
    %v2154 = vmul.f32 %v1796, %v1908
    %v2155 = vmul.f32 %v1819, %v1875
    %v2156 = vmul.f32 %v1821, %v1877
    %v2157 = vmul.f32 %v1824, %v1880
    %v2158 = vsub.f32 %v2152, %v2155
    %v2159 = vsub.f32 %v2153, %v2156
    %v2160 = vsub.f32 %v2154, %v2157
    %v2161 = vmul.f32 %v1903, %v1931
    %v2162 = vmul.f32 %v1905, %v1933
    %v2163 = vmul.f32 %v1908, %v1936
    %v2164 = vmul.f32 %v1847, %v1987
    %v2165 = vmul.f32 %v1849, %v1989
    %v2166 = vmul.f32 %v1852, %v1992
    %v2167 = vsub.f32 %v2161, %v2164
    %v2168 = vsub.f32 %v2162, %v2165
    %v2169 = vsub.f32 %v2163, %v2166
    %v2170 = vmul.f32 %v1762, %v1987
    %v2171 = vmul.f32 %v1764, %v1989
    %v2172 = vmul.f32 %v1768, %v1992
    %v2173 = vmul.f32 %v1819, %v1931
    %v2174 = vmul.f32 %v1821, %v1933
    %v2175 = vmul.f32 %v1824, %v1936
    %v2176 = vsub.f32 %v2170, %v2173
    %v2177 = vsub.f32 %v2171, %v2174
    %v2178 = vsub.f32 %v2172, %v2175
    %v2179 = vmul.f32 %v1819, %v1847
    %v2180 = vmul.f32 %v1821, %v1849
    %v2181 = vmul.f32 %v1824, %v1852
    %v2182 = vmul.f32 %v1762, %v1903
    %v2183 = vmul.f32 %v1764, %v1905
    %v2184 = vmul.f32 %v1768, %v1908
    %v2185 = vsub.f32 %v2179, %v2182
    %v2186 = vsub.f32 %v2180, %v2183
    %v2187 = vsub.f32 %v2181, %v2184
    %v2188 = vmul.f32 %v1847, %v1959
    %v2189 = vmul.f32 %v1849, %v1961
    %v2190 = vmul.f32 %v1852, %v1964
    %v2191 = vmul.f32 %v1875, %v1931
    %v2192 = vmul.f32 %v1877, %v1933
    %v2193 = vmul.f32 %v1880, %v1936
    %v2194 = vsub.f32 %v2188, %v2191
    %v2195 = vsub.f32 %v2189, %v2192
    %v2196 = vsub.f32 %v2190, %v2193
    %v2197 = vmul.f32 %v1791, %v1931
    %v2198 = vmul.f32 %v1793, %v1933
    %v2199 = vmul.f32 %v1796, %v1936
    %v2200 = vmul.f32 %v1762, %v1959
    %v2201 = vmul.f32 %v1764, %v1961
    %v2202 = vmul.f32 %v1768, %v1964
    %v2203 = vsub.f32 %v2197, %v2200
    %v2204 = vsub.f32 %v2198, %v2201
    %v2205 = vsub.f32 %v2199, %v2202
    %v2206 = vmul.f32 %v1762, %v1875
    %v2207 = vmul.f32 %v1764, %v1877
    %v2208 = vmul.f32 %v1768, %v1880
    %v2209 = vmul.f32 %v1791, %v1847
    %v2210 = vmul.f32 %v1793, %v1849
    %v2211 = vmul.f32 %v1796, %v1852
    %v2212 = vsub.f32 %v2206, %v2209
    %v2213 = vsub.f32 %v2207, %v2210
    %v2214 = vsub.f32 %v2208, %v2211
    %v2215 = vmul.f32 %v1762, %v2140
    %v2216 = vmul.f32 %v1764, %v2141
    %v2217 = vmul.f32 %v1768, %v2142
    %v2218 = vmul.f32 %v1791, %v2167
    %v2219 = vmul.f32 %v1793, %v2168
    %v2220 = vmul.f32 %v1796, %v2169
    %v2221 = vadd.f32 %v2215, %v2218
    %v2222 = vadd.f32 %v2216, %v2219
    %v2223 = vadd.f32 %v2217, %v2220
    %v2224 = vmul.f32 %v1819, %v2194
    %v2225 = vmul.f32 %v1821, %v2195
    %v2226 = vmul.f32 %v1824, %v2196
    %v2227 = vadd.f32 %v2221, %v2224
    %v2228 = vadd.f32 %v2222, %v2225
    %v2229 = vadd.f32 %v2223, %v2226
    %v2230 = vrcp.pop %v2227
    %v2231 = vmul.f32 1.0, %v2230
    %v2232 = vrcp.pop %v2228
    %v2233 = vmul.f32 1.0, %v2232
    %v2234 = vrcp.pop %v2229
    %v2235 = vmul.f32 1.0, %v2234
    %v2236 = vmul.f32 %v2140, %v2231
    %v2237 = vmul.f32 %v2141, %v2233
    %v2238 = vmul.f32 %v2142, %v2235
    %v2239 = vmul.f32 %v2149, %v2231
    %v2240 = vmul.f32 %v2150, %v2233
    %v2241 = vmul.f32 %v2151, %v2235
    %v2242 = vmul.f32 %v2158, %v2231
    %v2243 = vmul.f32 %v2159, %v2233
    %v2244 = vmul.f32 %v2160, %v2235
    %v2245 = vmul.f32 %v2167, %v2231
    %v2246 = vmul.f32 %v2168, %v2233
    %v2247 = vmul.f32 %v2169, %v2235
    %v2248 = vmul.f32 %v2176, %v2231
    %v2249 = vmul.f32 %v2177, %v2233
    %v2250 = vmul.f32 %v2178, %v2235
    %v2251 = vmul.f32 %v2185, %v2231
    %v2252 = vmul.f32 %v2186, %v2233
    %v2253 = vmul.f32 %v2187, %v2235
    %v2254 = vmul.f32 %v2194, %v2231
    %v2255 = vmul.f32 %v2195, %v2233
    %v2256 = vmul.f32 %v2196, %v2235
    %v2257 = vmul.f32 %v2203, %v2231
    %v2258 = vmul.f32 %v2204, %v2233
    %v2259 = vmul.f32 %v2205, %v2235
    %v2260 = vmul.f32 %v2212, %v2231
    %v2261 = vmul.f32 %v2213, %v2233
    %v2262 = vmul.f32 %v2214, %v2235
    %v2263 = vmul.f32 %v2236, %v2081
    %v2264 = vmul.f32 %v2237, %v2082
    %v2265 = vmul.f32 %v2238, %v2083
    %v2266 = vmul.f32 %v2239, %v2088
    %v2267 = vmul.f32 %v2240, %v2089
    %v2268 = vmul.f32 %v2241, %v2090
    %v2269 = vadd.f32 %v2263, %v2266
    %v2270 = vadd.f32 %v2264, %v2267
    %v2271 = vadd.f32 %v2265, %v2268
    %v2272 = vmul.f32 %v2242, %v2095
    %v2273 = vmul.f32 %v2243, %v2096
    %v2274 = vmul.f32 %v2244, %v2097
    %v2275 = vadd.f32 %v2269, %v2272
    %v2276 = vadd.f32 %v2270, %v2273
    %v2277 = vadd.f32 %v2271, %v2274
    %v2278 = vsub.f32 0.0, %v2275
    %v2279 = vsub.f32 0.0, %v2276
    %v2280 = vsub.f32 0.0, %v2277
    %v2281 = vmul.f32 %v2245, %v2081
    %v2282 = vmul.f32 %v2246, %v2082
    %v2283 = vmul.f32 %v2247, %v2083
    %v2284 = vmul.f32 %v2248, %v2088
    %v2285 = vmul.f32 %v2249, %v2089
    %v2286 = vmul.f32 %v2250, %v2090
    %v2287 = vadd.f32 %v2281, %v2284
    %v2288 = vadd.f32 %v2282, %v2285
    %v2289 = vadd.f32 %v2283, %v2286
    %v2290 = vmul.f32 %v2251, %v2095
    %v2291 = vmul.f32 %v2252, %v2096
    %v2292 = vmul.f32 %v2253, %v2097
    %v2293 = vadd.f32 %v2287, %v2290
    %v2294 = vadd.f32 %v2288, %v2291
    %v2295 = vadd.f32 %v2289, %v2292
    %v2296 = vsub.f32 0.0, %v2293
    %v2297 = vsub.f32 0.0, %v2294
    %v2298 = vsub.f32 0.0, %v2295
    %v2299 = vmul.f32 %v2254, %v2081
    %v2300 = vmul.f32 %v2255, %v2082
    %v2301 = vmul.f32 %v2256, %v2083
    %v2302 = vmul.f32 %v2257, %v2088
    %v2303 = vmul.f32 %v2258, %v2089
    %v2304 = vmul.f32 %v2259, %v2090
    %v2305 = vadd.f32 %v2299, %v2302
    %v2306 = vadd.f32 %v2300, %v2303
    %v2307 = vadd.f32 %v2301, %v2304
    %v2308 = vmul.f32 %v2260, %v2095
    %v2309 = vmul.f32 %v2261, %v2096
    %v2310 = vmul.f32 %v2262, %v2097
    %v2311 = vadd.f32 %v2305, %v2308
    %v2312 = vadd.f32 %v2306, %v2309
    %v2313 = vadd.f32 %v2307, %v2310
    %v2314 = vsub.f32 0.0, %v2311
    %v2315 = vsub.f32 0.0, %v2312
    %v2316 = vsub.f32 0.0, %v2313
    %2317 = vst [vmem:[#allocation8] sm:$0xff] %v2236
    %2318 = vst [vmem:[#allocation8 + $0x8] sm:$0xff] %v2237
    %2319 = vst [vmem:[#allocation8 + $0x10] sm:$0xff] %v2238
    %2320 = vst [vmem:[#allocation8 + $0x18] sm:$0xff] %v2239
    %2321 = vst [vmem:[#allocation8 + $0x20] sm:$0xff] %v2240
    %2322 = vst [vmem:[#allocation8 + $0x28] sm:$0xff] %v2241
    %2323 = vst [vmem:[#allocation8 + $0x30] sm:$0xff] %v2242
    %2324 = vst [vmem:[#allocation8 + $0x38] sm:$0xff] %v2243
    %2325 = vst [vmem:[#allocation8 + $0x40] sm:$0xff] %v2244
    %2326 = vst [vmem:[#allocation8 + $0x48] sm:$0xff] %v2278
    %2327 = vst [vmem:[#allocation8 + $0x50] sm:$0xff] %v2279
    %2328 = vst [vmem:[#allocation8 + $0x58] sm:$0xff] %v2280
    %2329 = vst [vmem:[#allocation8 + $0x60] sm:$0xff] %v2245
    %2330 = vst [vmem:[#allocation8 + $0x68] sm:$0xff] %v2246
    %2331 = vst [vmem:[#allocation8 + $0x70] sm:$0xff] %v2247
    %2332 = vst [vmem:[#allocation8 + $0x78] sm:$0xff] %v2248
    %2333 = vst [vmem:[#allocation8 + $0x80] sm:$0xff] %v2249
    %2334 = vst [vmem:[#allocation8 + $0x88] sm:$0xff] %v2250
    %2335 = vst [vmem:[#allocation8 + $0x90] sm:$0xff] %v2251
    %2336 = vst [vmem:[#allocation8 + $0x98] sm:$0xff] %v2252
    %2337 = vst [vmem:[#allocation8 + $0xa0] sm:$0xff] %v2253
    %2338 = vst [vmem:[#allocation8 + $0xa8] sm:$0xff] %v2296
    %2339 = vst [vmem:[#allocation8 + $0xb0] sm:$0xff] %v2297
    %2340 = vst [vmem:[#allocation8 + $0xb8] sm:$0xff] %v2298
    %2341 = vst [vmem:[#allocation8 + $0xc0] sm:$0xff] %v2254
    %2342 = vst [vmem:[#allocation8 + $0xc8] sm:$0xff] %v2255
    %2343 = vst [vmem:[#allocation8 + $0xd0] sm:$0xff] %v2256
    %2344 = vst [vmem:[#allocation8 + $0xd8] sm:$0xff] %v2257
    %2345 = vst [vmem:[#allocation8 + $0xe0] sm:$0xff] %v2258
    %2346 = vst [vmem:[#allocation8 + $0xe8] sm:$0xff] %v2259
    %2347 = vst [vmem:[#allocation8 + $0xf0] sm:$0xff] %v2260
    %2348 = vst [vmem:[#allocation8 + $0xf8] sm:$0xff] %v2261
    %2349 = vst [vmem:[#allocation8 + $0x100] sm:$0xff] %v2262
    %2350 = vst [vmem:[#allocation8 + $0x108] sm:$0xff] %v2314
    %2351 = vst [vmem:[#allocation8 + $0x110] sm:$0xff] %v2315
    %2352 = vst [vmem:[#allocation8 + $0x118] sm:$0xff] %v2316
    // Predicated region
    $region18: #{tpu_custom_call.1} parent=1 // pred_check
      _
    $region19: #{tpu_custom_call.1} parent=1 // pred_check_branch
      %2354 = sbr.rel (0) target = $region21
    $region20: #{tpu_custom_call.1} parent=1 // pred_region
      %s2356 = ssub.s32 3456, 3456
      %2357 = vsyncadd [#allocation4], %s2356
      %s2358 = sshll.u32 [#allocation5], 4
      %s2359 = int_to_ptr.vmem [resolvable:$true] %s2358
      %2364 = dma.vmem_to_hbm [thread:$0]  %s2359, 3456, %s3, [#allocation4], 128, 128, 8
    $region21: #{tpu_custom_call.1} parent=1 // pred_fallthru
      _
    // Predicated region
    $region22: #{tpu_custom_call.1} parent=1 // pred_check
      _
    $region23: #{tpu_custom_call.1} parent=1 // pred_check_branch
      %2366 = sbr.rel (0) target = $region25
    $region24: #{tpu_custom_call.1} parent=1 // pred_region
      %s2368 = ssub.s32 4608, 4608
      %2369 = vsyncadd [#allocation7], %s2368
      %s2370 = sshll.u32 [#allocation6], 4
      %s2371 = int_to_ptr.vmem [resolvable:$true] %s2370
      %2376 = dma.vmem_to_hbm [thread:$0]  %s2371, 4608, %s4, [#allocation7], 128, 128, 8
    $region25: #{tpu_custom_call.1} parent=1 // pred_fallthru
      _
    // Predicated region
    $region26: #{tpu_custom_call.1} parent=1 // pred_check
      _
    $region27: #{tpu_custom_call.1} parent=1 // pred_check_branch
      %2378 = sbr.rel (0) target = $region29
    $region28: #{tpu_custom_call.1} parent=1 // pred_region
      %s2380 = ssub.s32 4608, 4608
      %2381 = vsyncadd [#allocation7], %s2380
      %s2382 = sshll.u32 [#allocation8], 4
      %s2383 = int_to_ptr.vmem [resolvable:$true] %s2382
      %2388 = dma.vmem_to_hbm [thread:$0]  %s2383, 4608, %s5, [#allocation7], 128, 128, 8
    $region29: #{tpu_custom_call.1} parent=1 // pred_fallthru
      _
    // Predicated region
    $region30: #{tpu_custom_call.1} parent=1 // pred_check
      _
    $region31: #{tpu_custom_call.1} parent=1 // pred_check_branch
      %2390 = sbr.rel (0) target = $region33
    $region32: #{tpu_custom_call.1} parent=1 // pred_region
      %2391 = dma.done [#allocation4], 3456
    $region33: #{tpu_custom_call.1} parent=1 // pred_fallthru
      _
    // Predicated region
    $region34: #{tpu_custom_call.1} parent=1 // pred_check
      _
    $region35: #{tpu_custom_call.1} parent=1 // pred_check_branch
      %2393 = sbr.rel (0) target = $region37
    $region36: #{tpu_custom_call.1} parent=1 // pred_region
      %2394 = dma.done [#allocation7], 4608
    $region37: #{tpu_custom_call.1} parent=1 // pred_fallthru
      _
    // Predicated region
    $region38: #{tpu_custom_call.1} parent=1 // pred_check
      _
    $region39: #{tpu_custom_call.1} parent=1 // pred_check_branch
      %2396 = sbr.rel (0) target = $region41
    $region40: #{tpu_custom_call.1} parent=1 // pred_region
      %2397 = dma.done [#allocation7], 4608
    $region41: #{tpu_custom_call.1} parent=1 // pred_fallthru
      _
    %2398 = vsyncpa [#allocation3], 1
    %2399 = vsyncpa [#allocation4], 1
    %2400 = vsyncpa [#allocation7], 1

</llo_original>
